<compile_context>
chip_gen: v6e
topology: v6e:2x2x1
jax: 0.10.0
libtpu: 0.0.40
codegen_flags: <defaults>
</compile_context>

<pallas_src>
import functools
import math

import jax
import jax.numpy as jnp
from jax.experimental import pallas as pl
from jax.experimental.pallas import tpu as pltpu


def _full_spec(shape):
    # Whole-array single block (block == full array satisfies the (8,128) rule).
    return pl.BlockSpec(shape, lambda *_: (0,) * len(shape))


# ----------------------------------------------------------------------------
# The fused kernel.
# ----------------------------------------------------------------------------
def _ccgnn_kernel(num_rs, num_ps, batch, alpha,
                  # scalar prefetch (SMEM)
                  samples_ref,
                  # inputs (VMEM)
                  xr_ref, xp_ref, a_rr_ref, a_rp_ref, a_pp_ref,
                  pw_r_ref, pb_r_ref, pw_p_ref, pb_p_ref,
                  rr_w1_ref, rr_b1_ref, rr_w2_ref, rr_b2_ref,
                  rp_w1_ref, rp_b1_ref, rp_w2_ref, rp_b2_ref,
                  pp_w1_ref, pp_b1_ref, pp_w2_ref, pp_b2_ref,
                  rat_w1_ref, rat_b1_ref, rat_w2_ref,
                  pat_w1_ref, pat_b1_ref, pat_w2_ref,
                  hw1_ref, hb1_ref, hg_ref, hbt_ref, hw2_ref, hb2_ref,
                  labels_ref,
                  # outputs
                  emb_ref, out_ref, loss_ref,
                  # scratch
                  rpx_scr, z_scr):
    f32 = jnp.float32
    n_all = num_rs + num_ps
    embed = pw_r_ref.shape[1] // 2

    xr = xr_ref[...]
    xp = xp_ref[...]

    # ---- merged feature projections: 2 wide matmuls instead of 4 narrow ----
    xr_proj = jnp.dot(xr, pw_r_ref[...], preferred_element_type=f32) + pb_r_ref[...]
    xp_proj = jnp.dot(xp, pw_p_ref[...], preferred_element_type=f32) + pb_p_ref[...]
    rr_xr = xr_proj[:, :embed]
    rp_xr = xr_proj[:, embed:]
    rp_xp = xp_proj[:, :embed]
    pp_xp = xp_proj[:, embed:]

    # rp encoder input assembled directly in a VMEM scratch (no value concat)
    rpx_scr[:num_rs, :] = rp_xr
    rpx_scr[num_rs:, :] = rp_xp
    rp_x = rpx_scr[...]

    def gcn(a, x, w_ref, b_ref):
        # GCNConv (normalize=True, add_self_loops=True) as dense matmuls + ReLU
        xw = jnp.dot(x, w_ref[...], preferred_element_type=f32)
        return jnp.maximum(jnp.dot(a, xw, preferred_element_type=f32) + b_ref[...], 0.0)

    a_rr = a_rr_ref[...]
    rr_hr = gcn(a_rr, gcn(a_rr, rr_xr, rr_w1_ref, rr_b1_ref), rr_w2_ref, rr_b2_ref)
    a_rp = a_rp_ref[...]
    rp_h = gcn(a_rp, gcn(a_rp, rp_x, rp_w1_ref, rp_b1_ref), rp_w2_ref, rp_b2_ref)
    a_pp = a_pp_ref[...]
    pp_hp = gcn(a_pp, gcn(a_pp, pp_xp, pp_w1_ref, pp_b1_ref), pp_w2_ref, pp_b2_ref)

    # packed embedding slab: rows [rr_hr | rp_h | pp_hp]  (single writeback;
    # also reused below as the VMEM gather source for rp_h and z_c)
    emb_ref[:num_rs, :] = rr_hr
    emb_ref[num_rs:num_rs + n_all, :] = rp_h
    emb_ref[num_rs + n_all:, :] = pp_hp

    rp_hr = rp_h[:num_rs]
    rp_hp = rp_h[num_rs:]

    def attend(z0, z1, w1_ref, b1_ref, w2_ref):
        # 2-view semantic attention; both views share one (2N,E)@(E,16) matmul.
        n = z0.shape[0]
        zc = jnp.concatenate([z0, z1], axis=0)
        h = jnp.tanh(jnp.dot(zc, w1_ref[...], preferred_element_type=f32) + b1_ref[...])
        # width-1 projection done as VPU multiply + lane reduce (no 1-wide matmul)
        s = jnp.sum(h * w2_ref[...], axis=-1, keepdims=True)            # (2n, 1)
        s0, s1 = s[:n], s[n:]
        m = jnp.maximum(s0, s1)
        e0 = jnp.exp(s0 - m)
        e1 = jnp.exp(s1 - m)
        inv = 1.0 / (e0 + e1)                                            # exact softmax
        return (e0 * inv) * z0 + (e1 * inv) * z1

    hr = attend(rr_hr, rp_hr, rat_w1_ref, rat_b1_ref, rat_w2_ref)
    hp = attend(pp_hp, rp_hp, pat_w1_ref, pat_b1_ref, pat_w2_ref)

    # z = [hr ; hp] kept VMEM-resident as gather source (never written to HBM)
    z_scr[:num_rs, :] = hr
    z_scr[num_rs:, :] = hp

    # ---- in-kernel sample-pair gather (indices read from SMEM) -------------
    u_z, v_z, u_i, v_i, u_c, v_c = [], [], [], [], [], []
    for i in range(batch):
        ia = samples_ref[i, 0]
        ib = samples_ref[i, 1]
        u_z.append(z_scr[pl.ds(ia, 1), :])
        v_z.append(z_scr[pl.ds(ib, 1), :])
        u_i.append(emb_ref[pl.ds(num_rs + ia, 1), :])
        v_i.append(emb_ref[pl.ds(num_rs + ib, 1), :])
        # z_c = [rr_hr ; pp_hp]: remap combined index into the packed slab
        ca = ia + jnp.where(ia < num_rs, 0, n_all)
        cb = ib + jnp.where(ib < num_rs, 0, n_all)
        u_c.append(emb_ref[pl.ds(ca, 1), :])
        v_c.append(emb_ref[pl.ds(cb, 1), :])

    uv = jnp.concatenate([jnp.concatenate(u_z, 0), jnp.concatenate(v_z, 0)], axis=1)
    uv_i = jnp.concatenate([jnp.concatenate(u_i, 0), jnp.concatenate(v_i, 0)], axis=1)
    uv_c = jnp.concatenate([jnp.concatenate(u_c, 0), jnp.concatenate(v_c, 0)], axis=1)

    # ---- three MLP heads + BCE losses, all in-kernel ------------------------
    y = labels_ref[...]                                                  # (B, 1)
    losses = []
    pred0 = None
    for i, x in enumerate((uv, uv_i, uv_c)):
        h = jnp.dot(x, hw1_ref[i], preferred_element_type=f32) + hb1_ref[i]
        mean = jnp.mean(h, axis=0, keepdims=True)
        var = jnp.mean((h - mean) ** 2, axis=0, keepdims=True)  # biased var (BN train fwd)
        h = (h - mean) * jax.lax.rsqrt(var + 1e-5) * hg_ref[i] + hbt_ref[i]
        # TODO(synk): nn.Dropout(p=0.1) is stochastic; applied as identity (eval mode).
        h = jnp.maximum(h, 0.0)
        logits = jnp.sum(h * hw2_ref[i], axis=-1, keepdims=True) + hb2_ref[i]  # (B, 1)
        p = jax.nn.sigmoid(logits)
        if i == 0:
            pred0 = p
        pc = jnp.clip(p, 1e-7, 1.0 - 1e-7)
        losses.append(jnp.mean(-(y * jnp.log(pc) + (1.0 - y) * jnp.log(1.0 - pc)),
                               keepdims=True))                            # (1, 1)

    out_ref[...] = pred0
    loss_ref[...] = losses[0] + alpha * (losses[1] + losses[2])


# ----------------------------------------------------------------------------
# Plain-JAX glue (weight packing, adjacency construction, output slicing)
# ----------------------------------------------------------------------------
def ccgnn_forward(params, data, samples, labels, alpha=0.5):
    num_rs = data["xr"].shape[0]
    num_ps = data["xp"].shape[0]
    n_all = num_rs + num_ps
    embed = params["rr_xr_proj"]["w"].shape[1]
    batch = samples.shape[0]
    f32 = jnp.float32

    # merged projection weights (two wide matmuls instead of four narrow ones)
    pw_r = jnp.concatenate([params["rr_xr_proj"]["w"], params["rp_xr_proj"]["w"]], axis=1)
    pb_r = jnp.concatenate([params["rr_xr_proj"]["b"], params["rp_xr_proj"]["b"]], axis=1)
    pw_p = jnp.concatenate([params["rp_xp_proj"]["w"], params["pp_xp_proj"]["w"]], axis=1)
    pb_p = jnp.concatenate([params["rp_xp_proj"]["b"], params["pp_xp_proj"]["b"]], axis=1)

    heads = [params["mlp"], params["i_mlp"], params["c_mlp"]]
    hw1 = jnp.stack([h["w1"] for h in heads])          # (3, 2E, E)
    hb1 = jnp.stack([h["b1"] for h in heads])          # (3, 1, E)
    hg = jnp.stack([h["gamma"] for h in heads])        # (3, 1, E)
    hbt = jnp.stack([h["beta"] for h in heads])        # (3, 1, E)
    hw2 = jnp.stack([h["w2"].T for h in heads])        # (3, 1, E) row-form
    hb2 = jnp.stack([h["b2"] for h in heads])          # (3, 1, 1)

    args = [
        data["xr"], data["xp"], data["rr_a"], data["rp_a"], data["pp_a"],
        pw_r, pb_r, pw_p, pb_p,
        params["rr_encoder"]["conv1"]["w"], params["rr_encoder"]["conv1"]["b"],
        params["rr_encoder"]["conv2"]["w"], params["rr_encoder"]["conv2"]["b"],
        params["rp_encoder"]["conv1"]["w"], params["rp_encoder"]["conv1"]["b"],
        params["rp_encoder"]["conv2"]["w"], params["rp_encoder"]["conv2"]["b"],
        params["pp_encoder"]["conv1"]["w"], params["pp_encoder"]["conv1"]["b"],
        params["pp_encoder"]["conv2"]["w"], params["pp_encoder"]["conv2"]["b"],
        params["r_at"]["w1"], params["r_at"]["b1"], params["r_at"]["w2"].T,
        params["p_at"]["w1"], params["p_at"]["b1"], params["p_at"]["w2"].T,
        hw1, hb1, hg, hbt, hw2, hb2,
        labels.astype(f32).reshape(batch, 1),
    ]

    out_shapes = (
        jax.ShapeDtypeStruct((num_rs + n_all + num_ps, embed), f32),  # [rr_hr|rp_h|pp_hp]
        jax.ShapeDtypeStruct((batch, 1), f32),                        # out (mlp head)
        jax.ShapeDtypeStruct((1, 1), f32),                            # total loss
    )

    grid_spec = pltpu.PrefetchScalarGridSpec(
        num_scalar_prefetch=1,
        grid=(1,),
        in_specs=[_full_spec(a.shape) for a in args],
        out_specs=tuple(_full_spec(s.shape) for s in out_shapes),
        scratch_shapes=[pltpu.VMEM((n_all, embed), f32),   # rp_x staging
                        pltpu.VMEM((n_all, embed), f32)],  # z = [hr ; hp]
    )

    kernel = functools.partial(_ccgnn_kernel, num_rs, num_ps, batch, alpha)
    emb, out2d, loss2d = pl.pallas_call(
        kernel,
        grid_spec=grid_spec,
        out_shape=out_shapes,
        compiler_params=pltpu.CompilerParams(
            dimension_semantics=("arbitrary",),
            vmem_limit_bytes=32 * 1024 * 1024,
        ),
    )(samples.astype(jnp.int32), *args)

    rr_hr = emb[:num_rs]
    rp_h = emb[num_rs:num_rs + n_all]
    pp_hp = emb[num_rs + n_all:]
    rp_hr, rp_hp = rp_h[:num_rs], rp_h[num_rs:]
    return out2d[:, 0], loss2d[0, 0], rr_hr, rp_hr, pp_hp, rp_hp


def gcn_norm_dense(edge_index, edge_weight, num_nodes):
    """Dense D^{-1/2} (A + I) D^{-1/2}, matching torch_geometric gcn_norm."""
    if edge_weight is None:
        edge_weight = jnp.ones((edge_index.shape[1],), dtype=jnp.float32)
    a = jnp.zeros((num_nodes, num_nodes), dtype=jnp.float32)
    # out[dst] += w * x[src]  =>  A[dst, src] = w
    a = a.at[edge_index[1], edge_index[0]].add(edge_weight)
    a = a + jnp.eye(num_nodes, dtype=jnp.float32)  # self loops (input has none)
    deg = jnp.sum(a, axis=1)
    dis = jnp.where(deg > 0, 1.0 / jnp.sqrt(deg), 0.0)
    return a * dis[:, None] * dis[None, :]


# ----------------------------------------------------------------------------
# Deterministic parameter init
# ----------------------------------------------------------------------------
def init_linear(key, in_dim, out_dim, bias=True, xavier=False, zero_bias=False):
    kw, kb = jax.random.split(key)
    bound = 1.0 / math.sqrt(in_dim)
    if xavier:
        std = math.sqrt(2.0 / (in_dim + out_dim))
        w = std * jax.random.normal(kw, (in_dim, out_dim), dtype=jnp.float32)
    else:
        w = jax.random.uniform(kw, (in_dim, out_dim), minval=-bound, maxval=bound,
                               dtype=jnp.float32)
    p = {"w": w}
    if bias:
        if zero_bias:
            p["b"] = jnp.zeros((1, out_dim), dtype=jnp.float32)
        else:
            p["b"] = jax.random.uniform(kb, (1, out_dim), minval=-bound, maxval=bound,
                                        dtype=jnp.float32)
    return p


def init_params(key, feature_dim, embed):
    ks = jax.random.split(key, 32)
    params = {
        "rr_xr_proj": init_linear(ks[0], feature_dim, embed, xavier=True),
        "rp_xr_proj": init_linear(ks[1], feature_dim, embed, xavier=True),
        "rp_xp_proj": init_linear(ks[2], feature_dim, embed, xavier=True),
        "pp_xp_proj": init_linear(ks[3], feature_dim, embed, xavier=True),
    }
    for i, name in enumerate(["rr_encoder", "rp_encoder", "pp_encoder"]):
        params[name] = {
            "conv1": init_linear(ks[4 + 2 * i], embed, embed, xavier=True, zero_bias=True),
            "conv2": init_linear(ks[5 + 2 * i], embed, embed, xavier=True, zero_bias=True),
        }
    for i, name in enumerate(["r_at", "p_at"]):
        l1 = init_linear(ks[10 + 2 * i], embed, 16)
        l2 = init_linear(ks[11 + 2 * i], 16, 1, bias=False)
        params[name] = {"w1": l1["w"], "b1": l1["b"], "w2": l2["w"]}
    for i, name in enumerate(["mlp", "i_mlp", "c_mlp"]):
        l1 = init_linear(ks[14 + 2 * i], 2 * embed, embed)
        l2 = init_linear(ks[15 + 2 * i], embed, 1)
        params[name] = {
            "w1": l1["w"], "b1": l1["b"],
            "gamma": jnp.ones((1, embed), dtype=jnp.float32),
            "beta": jnp.zeros((1, embed), dtype=jnp.float32),
            "w2": l2["w"], "b2": l2["b"],
        }
    return params


def make_graph(key, n_edges, n_src, n_dst, dst_offset, weighted):
    k1, k2, k3 = jax.random.split(key, 3)
    src = jax.random.randint(k1, (n_edges,), 0, n_src, dtype=jnp.int32)
    if dst_offset == 0:
        dst = (src + 1 + jax.random.randint(k2, (n_edges,), 0, n_dst - 1,
                                            dtype=jnp.int32)) % n_dst
    else:
        dst = dst_offset + jax.random.randint(k2, (n_edges,), 0, n_dst, dtype=jnp.int32)
    ei = jnp.stack([jnp.concatenate([src, dst]), jnp.concatenate([dst, src])], axis=0)
    ew = None
    if weighted:
        w = jax.random.uniform(k3, (n_edges,), minval=0.1, maxval=1.0, dtype=jnp.float32)
        ew = jnp.concatenate([w, w])
    return ei, ew


# ----------------------------------------------------------------------------
if __name__ == "__main__":
    key = jax.random.PRNGKey(0)
    num_rs, num_ps = 8, 8
    feature_dim, embed = 16, 32
    n_samples = 8

    k_xr, k_xp, k_rr, k_pp, k_rp, k_s, k_l, k_p = jax.random.split(key, 8)

    xr = jax.random.normal(k_xr, (num_rs, feature_dim), dtype=jnp.float32)
    xp = jax.random.normal(k_xp, (num_ps, feature_dim), dtype=jnp.float32)

    rr_ei, rr_ew = make_graph(k_rr, 12, num_rs, num_rs, 0, weighted=True)
    pp_ei, pp_ew = make_graph(k_pp, 12, num_ps, num_ps, 0, weighted=True)
    rp_ei, _ = make_graph(k_rp, 16, num_rs, num_ps, num_rs, weighted=False)

    data = {
        "xr": xr,
        "xp": xp,
        "rr_a": gcn_norm_dense(rr_ei, rr_ew, num_rs),
        "pp_a": gcn_norm_dense(pp_ei, pp_ew, num_ps),
        "rp_a": gcn_norm_dense(rp_ei, None, num_rs + num_ps),
    }

    samples = jax.random.randint(k_s, (n_samples, 2), 0, num_rs + num_ps, dtype=jnp.int32)
    labels = jax.random.bernoulli(k_l, 0.5, (n_samples,)).astype(jnp.float32)

    params = init_params(k_p, feature_dim, embed)

    fwd = jax.jit(ccgnn_forward)
    out, loss, rr_hr, rp_hr, pp_hp, rp_hp = fwd(params, data, samples, labels)
    jax.block_until_ready((out, loss, rr_hr, rp_hr, pp_hp, rp_hp))

    assert out.shape == (n_samples,)
    assert rr_hr.shape == (num_rs, embed) and rp_hr.shape == (num_rs, embed)
    assert pp_hp.shape == (num_ps, embed) and rp_hp.shape == (num_ps, embed)
    assert jnp.isfinite(loss)
    print("KERNEL_OK")
</pallas_src>

<mosaic_0001>
module attributes {stable_mosaic.version = 11 : i64} {
  func.func @_ccgnn_kernel(%arg0: i32, %arg1: memref<8x2xi32, #tpu.memory_space<smem>>, %arg2: memref<8x16xf32, #tpu.memory_space<vmem>>, %arg3: memref<8x16xf32, #tpu.memory_space<vmem>>, %arg4: memref<8x8xf32, #tpu.memory_space<vmem>>, %arg5: memref<16x16xf32, #tpu.memory_space<vmem>>, %arg6: memref<8x8xf32, #tpu.memory_space<vmem>>, %arg7: memref<16x64xf32, #tpu.memory_space<vmem>>, %arg8: memref<1x64xf32, #tpu.memory_space<vmem>>, %arg9: memref<16x64xf32, #tpu.memory_space<vmem>>, %arg10: memref<1x64xf32, #tpu.memory_space<vmem>>, %arg11: memref<32x32xf32, #tpu.memory_space<vmem>>, %arg12: memref<1x32xf32, #tpu.memory_space<vmem>>, %arg13: memref<32x32xf32, #tpu.memory_space<vmem>>, %arg14: memref<1x32xf32, #tpu.memory_space<vmem>>, %arg15: memref<32x32xf32, #tpu.memory_space<vmem>>, %arg16: memref<1x32xf32, #tpu.memory_space<vmem>>, %arg17: memref<32x32xf32, #tpu.memory_space<vmem>>, %arg18: memref<1x32xf32, #tpu.memory_space<vmem>>, %arg19: memref<32x32xf32, #tpu.memory_space<vmem>>, %arg20: memref<1x32xf32, #tpu.memory_space<vmem>>, %arg21: memref<32x32xf32, #tpu.memory_space<vmem>>, %arg22: memref<1x32xf32, #tpu.memory_space<vmem>>, %arg23: memref<32x16xf32, #tpu.memory_space<vmem>>, %arg24: memref<1x16xf32, #tpu.memory_space<vmem>>, %arg25: memref<1x16xf32, #tpu.memory_space<vmem>>, %arg26: memref<32x16xf32, #tpu.memory_space<vmem>>, %arg27: memref<1x16xf32, #tpu.memory_space<vmem>>, %arg28: memref<1x16xf32, #tpu.memory_space<vmem>>, %arg29: memref<3x64x32xf32, #tpu.memory_space<vmem>>, %arg30: memref<3x1x32xf32, #tpu.memory_space<vmem>>, %arg31: memref<3x1x32xf32, #tpu.memory_space<vmem>>, %arg32: memref<3x1x32xf32, #tpu.memory_space<vmem>>, %arg33: memref<3x1x32xf32, #tpu.memory_space<vmem>>, %arg34: memref<3x1x1xf32, #tpu.memory_space<vmem>>, %arg35: memref<8x1xf32, #tpu.memory_space<vmem>>, %arg36: memref<32x32xf32, #tpu.memory_space<vmem>>, %arg37: memref<8x1xf32, #tpu.memory_space<vmem>>, %arg38: memref<1x1xf32, #tpu.memory_space<vmem>>, %arg39: memref<16x32xf32, #tpu.memory_space<vmem>>, %arg40: memref<16x32xf32, #tpu.memory_space<vmem>>) attributes {dimension_semantics = [#tpu.dimension_semantics<arbitrary>], iteration_bounds = array<i64: 1>, scalar_prefetch = 1 : i64, scratch_operands = 2 : i64, tpu.core_type = #tpu.core_type<tc>, window_params = [{pipeline_mode = #tpu.pipeline_mode<synchronous>, transform_indices = @transform_0, window_bounds = array<i64: 8, 16>}, {pipeline_mode = #tpu.pipeline_mode<synchronous>, transform_indices = @transform_1, window_bounds = array<i64: 8, 16>}, {pipeline_mode = #tpu.pipeline_mode<synchronous>, transform_indices = @transform_2, window_bounds = array<i64: 8, 8>}, {pipeline_mode = #tpu.pipeline_mode<synchronous>, transform_indices = @transform_3, window_bounds = array<i64: 16, 16>}, {pipeline_mode = #tpu.pipeline_mode<synchronous>, transform_indices = @transform_4, window_bounds = array<i64: 8, 8>}, {pipeline_mode = #tpu.pipeline_mode<synchronous>, transform_indices = @transform_5, window_bounds = array<i64: 16, 64>}, {pipeline_mode = #tpu.pipeline_mode<synchronous>, transform_indices = @transform_6, window_bounds = array<i64: 1, 64>}, {pipeline_mode = #tpu.pipeline_mode<synchronous>, transform_indices = @transform_7, window_bounds = array<i64: 16, 64>}, {pipeline_mode = #tpu.pipeline_mode<synchronous>, transform_indices = @transform_8, window_bounds = array<i64: 1, 64>}, {pipeline_mode = #tpu.pipeline_mode<synchronous>, transform_indices = @transform_9, window_bounds = array<i64: 32, 32>}, {pipeline_mode = #tpu.pipeline_mode<synchronous>, transform_indices = @transform_10, window_bounds = array<i64: 1, 32>}, {pipeline_mode = #tpu.pipeline_mode<synchronous>, transform_indices = @transform_11, window_bounds = array<i64: 32, 32>}, {pipeline_mode = #tpu.pipeline_mode<synchronous>, transform_indices = @transform_12, window_bounds = array<i64: 1, 32>}, {pipeline_mode = #tpu.pipeline_mode<synchronous>, transform_indices = @transform_13, window_bounds = array<i64: 32, 32>}, {pipeline_mode = #tpu.pipeline_mode<synchronous>, transform_indices = @transform_14, window_bounds = array<i64: 1, 32>}, {pipeline_mode = #tpu.pipeline_mode<synchronous>, transform_indices = @transform_15, window_bounds = array<i64: 32, 32>}, {pipeline_mode = #tpu.pipeline_mode<synchronous>, transform_indices = @transform_16, window_bounds = array<i64: 1, 32>}, {pipeline_mode = #tpu.pipeline_mode<synchronous>, transform_indices = @transform_17, window_bounds = array<i64: 32, 32>}, {pipeline_mode = #tpu.pipeline_mode<synchronous>, transform_indices = @transform_18, window_bounds = array<i64: 1, 32>}, {pipeline_mode = #tpu.pipeline_mode<synchronous>, transform_indices = @transform_19, window_bounds = array<i64: 32, 32>}, {pipeline_mode = #tpu.pipeline_mode<synchronous>, transform_indices = @transform_20, window_bounds = array<i64: 1, 32>}, {pipeline_mode = #tpu.pipeline_mode<synchronous>, transform_indices = @transform_21, window_bounds = array<i64: 32, 16>}, {pipeline_mode = #tpu.pipeline_mode<synchronous>, transform_indices = @transform_22, window_bounds = array<i64: 1, 16>}, {pipeline_mode = #tpu.pipeline_mode<synchronous>, transform_indices = @transform_23, window_bounds = array<i64: 1, 16>}, {pipeline_mode = #tpu.pipeline_mode<synchronous>, transform_indices = @transform_24, window_bounds = array<i64: 32, 16>}, {pipeline_mode = #tpu.pipeline_mode<synchronous>, transform_indices = @transform_25, window_bounds = array<i64: 1, 16>}, {pipeline_mode = #tpu.pipeline_mode<synchronous>, transform_indices = @transform_26, window_bounds = array<i64: 1, 16>}, {pipeline_mode = #tpu.pipeline_mode<synchronous>, transform_indices = @transform_27, window_bounds = array<i64: 3, 64, 32>}, {pipeline_mode = #tpu.pipeline_mode<synchronous>, transform_indices = @transform_28, window_bounds = array<i64: 3, 1, 32>}, {pipeline_mode = #tpu.pipeline_mode<synchronous>, transform_indices = @transform_29, window_bounds = array<i64: 3, 1, 32>}, {pipeline_mode = #tpu.pipeline_mode<synchronous>, transform_indices = @transform_30, window_bounds = array<i64: 3, 1, 32>}, {pipeline_mode = #tpu.pipeline_mode<synchronous>, transform_indices = @transform_31, window_bounds = array<i64: 3, 1, 32>}, {pipeline_mode = #tpu.pipeline_mode<synchronous>, transform_indices = @transform_32, window_bounds = array<i64: 3, 1, 1>}, {pipeline_mode = #tpu.pipeline_mode<synchronous>, transform_indices = @transform_33, window_bounds = array<i64: 8, 1>}, {pipeline_mode = #tpu.pipeline_mode<synchronous>, transform_indices = @transform_34, window_bounds = array<i64: 32, 32>}, {pipeline_mode = #tpu.pipeline_mode<synchronous>, transform_indices = @transform_35, window_bounds = array<i64: 8, 1>}, {pipeline_mode = #tpu.pipeline_mode<synchronous>, transform_indices = @transform_36, window_bounds = array<i64: 1, 1>}]} {
    %c0 = arith.constant 0 : index
    %c0_0 = arith.constant 0 : index
    %0 = vector.load %arg2[%c0, %c0_0] : memref<8x16xf32, #tpu.memory_space<vmem>>, vector<8x16xf32>
    %c0_1 = arith.constant 0 : index
    %c0_2 = arith.constant 0 : index
    %1 = vector.load %arg3[%c0_1, %c0_2] : memref<8x16xf32, #tpu.memory_space<vmem>>, vector<8x16xf32>
    %c0_3 = arith.constant 0 : index
    %c0_4 = arith.constant 0 : index
    %2 = vector.load %arg7[%c0_3, %c0_4] : memref<16x64xf32, #tpu.memory_space<vmem>>, vector<16x64xf32>
    %cst = arith.constant dense<0.000000e+00> : vector<8x64xf32>
    %3 = tpu.matmul %0, %2, %cst {dimension_numbers = #tpu.dot_dimension_numbers<[1], [0], [0], [1], [0, 0, 1, 1], [], []>} : vector<8x16xf32>, vector<16x64xf32>, vector<8x64xf32> -> vector<8x64xf32>
    %c0_5 = arith.constant 0 : index
    %c0_6 = arith.constant 0 : index
    %4 = vector.load %arg8[%c0_5, %c0_6] : memref<1x64xf32, #tpu.memory_space<vmem>>, vector<1x64xf32>
    %5 = vector.broadcast %4 : vector<1x64xf32> to vector<8x64xf32>
    %6 = arith.addf %3, %5 : vector<8x64xf32>
    %c0_7 = arith.constant 0 : index
    %c0_8 = arith.constant 0 : index
    %7 = vector.load %arg9[%c0_7, %c0_8] : memref<16x64xf32, #tpu.memory_space<vmem>>, vector<16x64xf32>
    %cst_9 = arith.constant dense<0.000000e+00> : vector<8x64xf32>
    %8 = tpu.matmul %1, %7, %cst_9 {dimension_numbers = #tpu.dot_dimension_numbers<[1], [0], [0], [1], [0, 0, 1, 1], [], []>} : vector<8x16xf32>, vector<16x64xf32>, vector<8x64xf32> -> vector<8x64xf32>
    %c0_10 = arith.constant 0 : index
    %c0_11 = arith.constant 0 : index
    %9 = vector.load %arg10[%c0_10, %c0_11] : memref<1x64xf32, #tpu.memory_space<vmem>>, vector<1x64xf32>
    %10 = vector.broadcast %9 : vector<1x64xf32> to vector<8x64xf32>
    %11 = arith.addf %8, %10 : vector<8x64xf32>
    %12 = vector.extract_strided_slice %6 {offsets = [0, 0], sizes = [8, 32], strides = [1, 1]} : vector<8x64xf32> to vector<8x32xf32>
    %13 = vector.extract_strided_slice %6 {offsets = [0, 32], sizes = [8, 32], strides = [1, 1]} : vector<8x64xf32> to vector<8x32xf32>
    %14 = vector.extract_strided_slice %11 {offsets = [0, 0], sizes = [8, 32], strides = [1, 1]} : vector<8x64xf32> to vector<8x32xf32>
    %15 = vector.extract_strided_slice %11 {offsets = [0, 32], sizes = [8, 32], strides = [1, 1]} : vector<8x64xf32> to vector<8x32xf32>
    %c0_12 = arith.constant 0 : index
    %c0_13 = arith.constant 0 : index
    %16 = vector.load %arg39[%c0_12, %c0_13] : memref<16x32xf32, #tpu.memory_space<vmem>>, vector<8x32xf32>
    tpu.vector_store %arg39[%c0_12, %c0_13], %13 {strides = array<i32>} : memref<16x32xf32, #tpu.memory_space<vmem>>, vector<8x32xf32>,
    %c8 = arith.constant 8 : index
    %c0_14 = arith.constant 0 : index
    %17 = vector.load %arg39[%c8, %c0_14] : memref<16x32xf32, #tpu.memory_space<vmem>>, vector<8x32xf32>
    tpu.vector_store %arg39[%c8, %c0_14], %14 {strides = array<i32>} : memref<16x32xf32, #tpu.memory_space<vmem>>, vector<8x32xf32>,
    %c0_15 = arith.constant 0 : index
    %c0_16 = arith.constant 0 : index
    %18 = vector.load %arg39[%c0_15, %c0_16] : memref<16x32xf32, #tpu.memory_space<vmem>>, vector<16x32xf32>
    %c0_17 = arith.constant 0 : index
    %c0_18 = arith.constant 0 : index
    %19 = vector.load %arg4[%c0_17, %c0_18] : memref<8x8xf32, #tpu.memory_space<vmem>>, vector<8x8xf32>
    %c0_19 = arith.constant 0 : index
    %c0_20 = arith.constant 0 : index
    %20 = vector.load %arg11[%c0_19, %c0_20] : memref<32x32xf32, #tpu.memory_space<vmem>>, vector<32x32xf32>
    %cst_21 = arith.constant dense<0.000000e+00> : vector<8x32xf32>
    %21 = tpu.matmul %12, %20, %cst_21 {dimension_numbers = #tpu.dot_dimension_numbers<[1], [0], [0], [1], [0, 0, 1, 1], [], []>} : vector<8x32xf32>, vector<32x32xf32>, vector<8x32xf32> -> vector<8x32xf32>
    %cst_22 = arith.constant dense<0.000000e+00> : vector<8x32xf32>
    %22 = tpu.matmul %19, %21, %cst_22 {dimension_numbers = #tpu.dot_dimension_numbers<[1], [0], [0], [1], [0, 0, 1, 1], [], []>} : vector<8x8xf32>, vector<8x32xf32>, vector<8x32xf32> -> vector<8x32xf32>
    %c0_23 = arith.constant 0 : index
    %c0_24 = arith.constant 0 : index
    %23 = vector.load %arg12[%c0_23, %c0_24] : memref<1x32xf32, #tpu.memory_space<vmem>>, vector<1x32xf32>
    %24 = vector.broadcast %23 : vector<1x32xf32> to vector<8x32xf32>
    %25 = arith.addf %22, %24 : vector<8x32xf32>
    %cst_25 = arith.constant 0.000000e+00 : f32
    %26 = vector.broadcast %cst_25 : f32 to vector<8x32xf32>
    %27 = arith.maximumf %25, %26 : vector<8x32xf32>
    %c0_26 = arith.constant 0 : index
    %c0_27 = arith.constant 0 : index
    %28 = vector.load %arg13[%c0_26, %c0_27] : memref<32x32xf32, #tpu.memory_space<vmem>>, vector<32x32xf32>
    %cst_28 = arith.constant dense<0.000000e+00> : vector<8x32xf32>
    %29 = tpu.matmul %27, %28, %cst_28 {dimension_numbers = #tpu.dot_dimension_numbers<[1], [0], [0], [1], [0, 0, 1, 1], [], []>} : vector<8x32xf32>, vector<32x32xf32>, vector<8x32xf32> -> vector<8x32xf32>
    %cst_29 = arith.constant dense<0.000000e+00> : vector<8x32xf32>
    %30 = tpu.matmul %19, %29, %cst_29 {dimension_numbers = #tpu.dot_dimension_numbers<[1], [0], [0], [1], [0, 0, 1, 1], [], []>} : vector<8x8xf32>, vector<8x32xf32>, vector<8x32xf32> -> vector<8x32xf32>
    %c0_30 = arith.constant 0 : index
    %c0_31 = arith.constant 0 : index
    %31 = vector.load %arg14[%c0_30, %c0_31] : memref<1x32xf32, #tpu.memory_space<vmem>>, vector<1x32xf32>
    %32 = vector.broadcast %31 : vector<1x32xf32> to vector<8x32xf32>
    %33 = arith.addf %30, %32 : vector<8x32xf32>
    %cst_32 = arith.constant 0.000000e+00 : f32
    %34 = vector.broadcast %cst_32 : f32 to vector<8x32xf32>
    %35 = arith.maximumf %33, %34 : vector<8x32xf32>
    %c0_33 = arith.constant 0 : index
    %c0_34 = arith.constant 0 : index
    %36 = vector.load %arg5[%c0_33, %c0_34] : memref<16x16xf32, #tpu.memory_space<vmem>>, vector<16x16xf32>
    %c0_35 = arith.constant 0 : index
    %c0_36 = arith.constant 0 : index
    %37 = vector.load %arg15[%c0_35, %c0_36] : memref<32x32xf32, #tpu.memory_space<vmem>>, vector<32x32xf32>
    %cst_37 = arith.constant dense<0.000000e+00> : vector<16x32xf32>
    %38 = tpu.matmul %18, %37, %cst_37 {dimension_numbers = #tpu.dot_dimension_numbers<[1], [0], [0], [1], [0, 0, 1, 1], [], []>} : vector<16x32xf32>, vector<32x32xf32>, vector<16x32xf32> -> vector<16x32xf32>
    %cst_38 = arith.constant dense<0.000000e+00> : vector<16x32xf32>
    %39 = tpu.matmul %36, %38, %cst_38 {dimension_numbers = #tpu.dot_dimension_numbers<[1], [0], [0], [1], [0, 0, 1, 1], [], []>} : vector<16x16xf32>, vector<16x32xf32>, vector<16x32xf32> -> vector<16x32xf32>
    %c0_39 = arith.constant 0 : index
    %c0_40 = arith.constant 0 : index
    %40 = vector.load %arg16[%c0_39, %c0_40] : memref<1x32xf32, #tpu.memory_space<vmem>>, vector<1x32xf32>
    %41 = vector.broadcast %40 : vector<1x32xf32> to vector<16x32xf32>
    %42 = arith.addf %39, %41 : vector<16x32xf32>
    %cst_41 = arith.constant 0.000000e+00 : f32
    %43 = vector.broadcast %cst_41 : f32 to vector<16x32xf32>
    %44 = arith.maximumf %42, %43 : vector<16x32xf32>
    %c0_42 = arith.constant 0 : index
    %c0_43 = arith.constant 0 : index
    %45 = vector.load %arg17[%c0_42, %c0_43] : memref<32x32xf32, #tpu.memory_space<vmem>>, vector<32x32xf32>
    %cst_44 = arith.constant dense<0.000000e+00> : vector<16x32xf32>
    %46 = tpu.matmul %44, %45, %cst_44 {dimension_numbers = #tpu.dot_dimension_numbers<[1], [0], [0], [1], [0, 0, 1, 1], [], []>} : vector<16x32xf32>, vector<32x32xf32>, vector<16x32xf32> -> vector<16x32xf32>
    %cst_45 = arith.constant dense<0.000000e+00> : vector<16x32xf32>
    %47 = tpu.matmul %36, %46, %cst_45 {dimension_numbers = #tpu.dot_dimension_numbers<[1], [0], [0], [1], [0, 0, 1, 1], [], []>} : vector<16x16xf32>, vector<16x32xf32>, vector<16x32xf32> -> vector<16x32xf32>
    %c0_46 = arith.constant 0 : index
    %c0_47 = arith.constant 0 : index
    %48 = vector.load %arg18[%c0_46, %c0_47] : memref<1x32xf32, #tpu.memory_space<vmem>>, vector<1x32xf32>
    %49 = vector.broadcast %48 : vector<1x32xf32> to vector<16x32xf32>
    %50 = arith.addf %47, %49 : vector<16x32xf32>
    %cst_48 = arith.constant 0.000000e+00 : f32
    %51 = vector.broadcast %cst_48 : f32 to vector<16x32xf32>
    %52 = arith.maximumf %50, %51 : vector<16x32xf32>
    %c0_49 = arith.constant 0 : index
    %c0_50 = arith.constant 0 : index
    %53 = vector.load %arg6[%c0_49, %c0_50] : memref<8x8xf32, #tpu.memory_space<vmem>>, vector<8x8xf32>
    %c0_51 = arith.constant 0 : index
    %c0_52 = arith.constant 0 : index
    %54 = vector.load %arg19[%c0_51, %c0_52] : memref<32x32xf32, #tpu.memory_space<vmem>>, vector<32x32xf32>
    %cst_53 = arith.constant dense<0.000000e+00> : vector<8x32xf32>
    %55 = tpu.matmul %15, %54, %cst_53 {dimension_numbers = #tpu.dot_dimension_numbers<[1], [0], [0], [1], [0, 0, 1, 1], [], []>} : vector<8x32xf32>, vector<32x32xf32>, vector<8x32xf32> -> vector<8x32xf32>
    %cst_54 = arith.constant dense<0.000000e+00> : vector<8x32xf32>
    %56 = tpu.matmul %53, %55, %cst_54 {dimension_numbers = #tpu.dot_dimension_numbers<[1], [0], [0], [1], [0, 0, 1, 1], [], []>} : vector<8x8xf32>, vector<8x32xf32>, vector<8x32xf32> -> vector<8x32xf32>
    %c0_55 = arith.constant 0 : index
    %c0_56 = arith.constant 0 : index
    %57 = vector.load %arg20[%c0_55, %c0_56] : memref<1x32xf32, #tpu.memory_space<vmem>>, vector<1x32xf32>
    %58 = vector.broadcast %57 : vector<1x32xf32> to vector<8x32xf32>
    %59 = arith.addf %56, %58 : vector<8x32xf32>
    %cst_57 = arith.constant 0.000000e+00 : f32
    %60 = vector.broadcast %cst_57 : f32 to vector<8x32xf32>
    %61 = arith.maximumf %59, %60 : vector<8x32xf32>
    %c0_58 = arith.constant 0 : index
    %c0_59 = arith.constant 0 : index
    %62 = vector.load %arg21[%c0_58, %c0_59] : memref<32x32xf32, #tpu.memory_space<vmem>>, vector<32x32xf32>
    %cst_60 = arith.constant dense<0.000000e+00> : vector<8x32xf32>
    %63 = tpu.matmul %61, %62, %cst_60 {dimension_numbers = #tpu.dot_dimension_numbers<[1], [0], [0], [1], [0, 0, 1, 1], [], []>} : vector<8x32xf32>, vector<32x32xf32>, vector<8x32xf32> -> vector<8x32xf32>
    %cst_61 = arith.constant dense<0.000000e+00> : vector<8x32xf32>
    %64 = tpu.matmul %53, %63, %cst_61 {dimension_numbers = #tpu.dot_dimension_numbers<[1], [0], [0], [1], [0, 0, 1, 1], [], []>} : vector<8x8xf32>, vector<8x32xf32>, vector<8x32xf32> -> vector<8x32xf32>
    %c0_62 = arith.constant 0 : index
    %c0_63 = arith.constant 0 : index
    %65 = vector.load %arg22[%c0_62, %c0_63] : memref<1x32xf32, #tpu.memory_space<vmem>>, vector<1x32xf32>
    %66 = vector.broadcast %65 : vector<1x32xf32> to vector<8x32xf32>
    %67 = arith.addf %64, %66 : vector<8x32xf32>
    %cst_64 = arith.constant 0.000000e+00 : f32
    %68 = vector.broadcast %cst_64 : f32 to vector<8x32xf32>
    %69 = arith.maximumf %67, %68 : vector<8x32xf32>
    %c0_65 = arith.constant 0 : index
    %c0_66 = arith.constant 0 : index
    %70 = vector.load %arg36[%c0_65, %c0_66] : memref<32x32xf32, #tpu.memory_space<vmem>>, vector<8x32xf32>
    tpu.vector_store %arg36[%c0_65, %c0_66], %35 {strides = array<i32>} : memref<32x32xf32, #tpu.memory_space<vmem>>, vector<8x32xf32>,
    %c8_67 = arith.constant 8 : index
    %c0_68 = arith.constant 0 : index
    %71 = vector.load %arg36[%c8_67, %c0_68] : memref<32x32xf32, #tpu.memory_space<vmem>>, vector<16x32xf32>
    tpu.vector_store %arg36[%c8_67, %c0_68], %52 {strides = array<i32>} : memref<32x32xf32, #tpu.memory_space<vmem>>, vector<16x32xf32>,
    %c24 = arith.constant 24 : index
    %c0_69 = arith.constant 0 : index
    %72 = vector.load %arg36[%c24, %c0_69] : memref<32x32xf32, #tpu.memory_space<vmem>>, vector<8x32xf32>
    tpu.vector_store %arg36[%c24, %c0_69], %69 {strides = array<i32>} : memref<32x32xf32, #tpu.memory_space<vmem>>, vector<8x32xf32>,
    %73 = vector.extract_strided_slice %52 {offsets = [0, 0], sizes = [8, 32], strides = [1, 1]} : vector<16x32xf32> to vector<8x32xf32>
    %74 = vector.extract_strided_slice %52 {offsets = [8, 0], sizes = [8, 32], strides = [1, 1]} : vector<16x32xf32> to vector<8x32xf32>
    %75 = tpu.concatenate %35, %73 in 0 : vector<8x32xf32>, vector<8x32xf32> -> vector<16x32xf32>
    %c0_70 = arith.constant 0 : index
    %c0_71 = arith.constant 0 : index
    %76 = vector.load %arg23[%c0_70, %c0_71] : memref<32x16xf32, #tpu.memory_space<vmem>>, vector<32x16xf32>
    %cst_72 = arith.constant dense<0.000000e+00> : vector<16x16xf32>
    %77 = tpu.matmul %75, %76, %cst_72 {dimension_numbers = #tpu.dot_dimension_numbers<[1], [0], [0], [1], [0, 0, 1, 1], [], []>} : vector<16x32xf32>, vector<32x16xf32>, vector<16x16xf32> -> vector<16x16xf32>
    %c0_73 = arith.constant 0 : index
    %c0_74 = arith.constant 0 : index
    %78 = vector.load %arg24[%c0_73, %c0_74] : memref<1x16xf32, #tpu.memory_space<vmem>>, vector<1x16xf32>
    %79 = vector.broadcast %78 : vector<1x16xf32> to vector<16x16xf32>
    %80 = arith.addf %77, %79 : vector<16x16xf32>
    %81 = math.tanh %80 : vector<16x16xf32>
    %c0_75 = arith.constant 0 : index
    %c0_76 = arith.constant 0 : index
    %82 = vector.load %arg25[%c0_75, %c0_76] : memref<1x16xf32, #tpu.memory_space<vmem>>, vector<1x16xf32>
    %83 = vector.broadcast %82 : vector<1x16xf32> to vector<16x16xf32>
    %84 = arith.mulf %81, %83 : vector<16x16xf32>
    %cst_77 = arith.constant dense<0.000000e+00> : vector<16xf32>
    %85 = vector.multi_reduction <add>, %84, %cst_77 [1] : vector<16x16xf32> to vector<16xf32>
    %86 = vector.shape_cast %85 : vector<16xf32> to vector<16x1xf32>
    %87 = vector.extract_strided_slice %86 {offsets = [0, 0], sizes = [8, 1], strides = [1, 1]} : vector<16x1xf32> to vector<8x1xf32>
    %88 = vector.extract_strided_slice %86 {offsets = [8, 0], sizes = [8, 1], strides = [1, 1]} : vector<16x1xf32> to vector<8x1xf32>
    %89 = arith.maximumf %87, %88 : vector<8x1xf32>
    %90 = arith.subf %87, %89 : vector<8x1xf32>
    %91 = math.exp %90 : vector<8x1xf32>
    %92 = arith.subf %88, %89 : vector<8x1xf32>
    %93 = math.exp %92 : vector<8x1xf32>
    %94 = arith.addf %91, %93 : vector<8x1xf32>
    %cst_78 = arith.constant 1.000000e+00 : f32
    %95 = vector.broadcast %cst_78 : f32 to vector<8x1xf32>
    %96 = arith.divf %95, %94 : vector<8x1xf32>
    %97 = arith.mulf %91, %96 : vector<8x1xf32>
    %98 = vector.broadcast %97 : vector<8x1xf32> to vector<8x32xf32>
    %99 = arith.mulf %98, %35 : vector<8x32xf32>
    %100 = arith.mulf %93, %96 : vector<8x1xf32>
    %101 = vector.broadcast %100 : vector<8x1xf32> to vector<8x32xf32>
    %102 = arith.mulf %101, %73 : vector<8x32xf32>
    %103 = arith.addf %99, %102 : vector<8x32xf32>
    %104 = tpu.concatenate %69, %74 in 0 : vector<8x32xf32>, vector<8x32xf32> -> vector<16x32xf32>
    %c0_79 = arith.constant 0 : index
    %c0_80 = arith.constant 0 : index
    %105 = vector.load %arg26[%c0_79, %c0_80] : memref<32x16xf32, #tpu.memory_space<vmem>>, vector<32x16xf32>
    %cst_81 = arith.constant dense<0.000000e+00> : vector<16x16xf32>
    %106 = tpu.matmul %104, %105, %cst_81 {dimension_numbers = #tpu.dot_dimension_numbers<[1], [0], [0], [1], [0, 0, 1, 1], [], []>} : vector<16x32xf32>, vector<32x16xf32>, vector<16x16xf32> -> vector<16x16xf32>
    %c0_82 = arith.constant 0 : index
    %c0_83 = arith.constant 0 : index
    %107 = vector.load %arg27[%c0_82, %c0_83] : memref<1x16xf32, #tpu.memory_space<vmem>>, vector<1x16xf32>
    %108 = vector.broadcast %107 : vector<1x16xf32> to vector<16x16xf32>
    %109 = arith.addf %106, %108 : vector<16x16xf32>
    %110 = math.tanh %109 : vector<16x16xf32>
    %c0_84 = arith.constant 0 : index
    %c0_85 = arith.constant 0 : index
    %111 = vector.load %arg28[%c0_84, %c0_85] : memref<1x16xf32, #tpu.memory_space<vmem>>, vector<1x16xf32>
    %112 = vector.broadcast %111 : vector<1x16xf32> to vector<16x16xf32>
    %113 = arith.mulf %110, %112 : vector<16x16xf32>
    %cst_86 = arith.constant dense<0.000000e+00> : vector<16xf32>
    %114 = vector.multi_reduction <add>, %113, %cst_86 [1] : vector<16x16xf32> to vector<16xf32>
    %115 = vector.shape_cast %114 : vector<16xf32> to vector<16x1xf32>
    %116 = vector.extract_strided_slice %115 {offsets = [0, 0], sizes = [8, 1], strides = [1, 1]} : vector<16x1xf32> to vector<8x1xf32>
    %117 = vector.extract_strided_slice %115 {offsets = [8, 0], sizes = [8, 1], strides = [1, 1]} : vector<16x1xf32> to vector<8x1xf32>
    %118 = arith.maximumf %116, %117 : vector<8x1xf32>
    %119 = arith.subf %116, %118 : vector<8x1xf32>
    %120 = math.exp %119 : vector<8x1xf32>
    %121 = arith.subf %117, %118 : vector<8x1xf32>
    %122 = math.exp %121 : vector<8x1xf32>
    %123 = arith.addf %120, %122 : vector<8x1xf32>
    %cst_87 = arith.constant 1.000000e+00 : f32
    %124 = vector.broadcast %cst_87 : f32 to vector<8x1xf32>
    %125 = arith.divf %124, %123 : vector<8x1xf32>
    %126 = arith.mulf %120, %125 : vector<8x1xf32>
    %127 = vector.broadcast %126 : vector<8x1xf32> to vector<8x32xf32>
    %128 = arith.mulf %127, %69 : vector<8x32xf32>
    %129 = arith.mulf %122, %125 : vector<8x1xf32>
    %130 = vector.broadcast %129 : vector<8x1xf32> to vector<8x32xf32>
    %131 = arith.mulf %130, %74 : vector<8x32xf32>
    %132 = arith.addf %128, %131 : vector<8x32xf32>
    %c0_88 = arith.constant 0 : index
    %c0_89 = arith.constant 0 : index
    %133 = vector.load %arg40[%c0_88, %c0_89] : memref<16x32xf32, #tpu.memory_space<vmem>>, vector<8x32xf32>
    tpu.vector_store %arg40[%c0_88, %c0_89], %103 {strides = array<i32>} : memref<16x32xf32, #tpu.memory_space<vmem>>, vector<8x32xf32>,
    %c8_90 = arith.constant 8 : index
    %c0_91 = arith.constant 0 : index
    %134 = vector.load %arg40[%c8_90, %c0_91] : memref<16x32xf32, #tpu.memory_space<vmem>>, vector<8x32xf32>
    tpu.vector_store %arg40[%c8_90, %c0_91], %132 {strides = array<i32>} : memref<16x32xf32, #tpu.memory_space<vmem>>, vector<8x32xf32>,
    %c0_92 = arith.constant 0 : index
    %c0_93 = arith.constant 0 : index
    %135 = memref.load %arg1[%c0_92, %c0_93] : memref<8x2xi32, #tpu.memory_space<smem>>
    %c0_94 = arith.constant 0 : index
    %c1 = arith.constant 1 : index
    %136 = memref.load %arg1[%c0_94, %c1] : memref<8x2xi32, #tpu.memory_space<smem>>
    %137 = arith.index_cast %135 : i32 to index
    %c0_95 = arith.constant 0 : index
    %138 = vector.load %arg40[%137, %c0_95] : memref<16x32xf32, #tpu.memory_space<vmem>>, vector<1x32xf32>
    %139 = arith.index_cast %136 : i32 to index
    %c0_96 = arith.constant 0 : index
    %140 = vector.load %arg40[%139, %c0_96] : memref<16x32xf32, #tpu.memory_space<vmem>>, vector<1x32xf32>
    %c8_i32 = arith.constant 8 : i32
    %141 = arith.addi %c8_i32, %135 : i32
    %142 = arith.index_cast %141 : i32 to index
    %c0_97 = arith.constant 0 : index
    %143 = vector.load %arg36[%142, %c0_97] : memref<32x32xf32, #tpu.memory_space<vmem>>, vector<1x32xf32>
    %c8_i32_98 = arith.constant 8 : i32
    %144 = arith.addi %c8_i32_98, %136 : i32
    %145 = arith.index_cast %144 : i32 to index
    %c0_99 = arith.constant 0 : index
    %146 = vector.load %arg36[%145, %c0_99] : memref<32x32xf32, #tpu.memory_space<vmem>>, vector<1x32xf32>
    %c8_i32_100 = arith.constant 8 : i32
    %147 = arith.cmpi slt, %135, %c8_i32_100 : i32
    %c0_i32 = arith.constant 0 : i32
    %c16_i32 = arith.constant 16 : i32
    %148 = arith.select %147, %c0_i32, %c16_i32 : i32
    %149 = arith.addi %135, %148 : i32
    %c8_i32_101 = arith.constant 8 : i32
    %150 = arith.cmpi slt, %136, %c8_i32_101 : i32
    %c0_i32_102 = arith.constant 0 : i32
    %c16_i32_103 = arith.constant 16 : i32
    %151 = arith.select %150, %c0_i32_102, %c16_i32_103 : i32
    %152 = arith.addi %136, %151 : i32
    %153 = arith.index_cast %149 : i32 to index
    %c0_104 = arith.constant 0 : index
    %154 = vector.load %arg36[%153, %c0_104] : memref<32x32xf32, #tpu.memory_space<vmem>>, vector<1x32xf32>
    %155 = arith.index_cast %152 : i32 to index
    %c0_105 = arith.constant 0 : index
    %156 = vector.load %arg36[%155, %c0_105] : memref<32x32xf32, #tpu.memory_space<vmem>>, vector<1x32xf32>
    %c1_106 = arith.constant 1 : index
    %c0_107 = arith.constant 0 : index
    %157 = memref.load %arg1[%c1_106, %c0_107] : memref<8x2xi32, #tpu.memory_space<smem>>
    %c1_108 = arith.constant 1 : index
    %c1_109 = arith.constant 1 : index
    %158 = memref.load %arg1[%c1_108, %c1_109] : memref<8x2xi32, #tpu.memory_space<smem>>
    %159 = arith.index_cast %157 : i32 to index
    %c0_110 = arith.constant 0 : index
    %160 = vector.load %arg40[%159, %c0_110] : memref<16x32xf32, #tpu.memory_space<vmem>>, vector<1x32xf32>
    %161 = arith.index_cast %158 : i32 to index
    %c0_111 = arith.constant 0 : index
    %162 = vector.load %arg40[%161, %c0_111] : memref<16x32xf32, #tpu.memory_space<vmem>>, vector<1x32xf32>
    %c8_i32_112 = arith.constant 8 : i32
    %163 = arith.addi %c8_i32_112, %157 : i32
    %164 = arith.index_cast %163 : i32 to index
    %c0_113 = arith.constant 0 : index
    %165 = vector.load %arg36[%164, %c0_113] : memref<32x32xf32, #tpu.memory_space<vmem>>, vector<1x32xf32>
    %c8_i32_114 = arith.constant 8 : i32
    %166 = arith.addi %c8_i32_114, %158 : i32
    %167 = arith.index_cast %166 : i32 to index
    %c0_115 = arith.constant 0 : index
    %168 = vector.load %arg36[%167, %c0_115] : memref<32x32xf32, #tpu.memory_space<vmem>>, vector<1x32xf32>
    %c8_i32_116 = arith.constant 8 : i32
    %169 = arith.cmpi slt, %157, %c8_i32_116 : i32
    %c0_i32_117 = arith.constant 0 : i32
    %c16_i32_118 = arith.constant 16 : i32
    %170 = arith.select %169, %c0_i32_117, %c16_i32_118 : i32
    %171 = arith.addi %157, %170 : i32
    %c8_i32_119 = arith.constant 8 : i32
    %172 = arith.cmpi slt, %158, %c8_i32_119 : i32
    %c0_i32_120 = arith.constant 0 : i32
    %c16_i32_121 = arith.constant 16 : i32
    %173 = arith.select %172, %c0_i32_120, %c16_i32_121 : i32
    %174 = arith.addi %158, %173 : i32
    %175 = arith.index_cast %171 : i32 to index
    %c0_122 = arith.constant 0 : index
    %176 = vector.load %arg36[%175, %c0_122] : memref<32x32xf32, #tpu.memory_space<vmem>>, vector<1x32xf32>
    %177 = arith.index_cast %174 : i32 to index
    %c0_123 = arith.constant 0 : index
    %178 = vector.load %arg36[%177, %c0_123] : memref<32x32xf32, #tpu.memory_space<vmem>>, vector<1x32xf32>
    %c2 = arith.constant 2 : index
    %c0_124 = arith.constant 0 : index
    %179 = memref.load %arg1[%c2, %c0_124] : memref<8x2xi32, #tpu.memory_space<smem>>
    %c2_125 = arith.constant 2 : index
    %c1_126 = arith.constant 1 : index
    %180 = memref.load %arg1[%c2_125, %c1_126] : memref<8x2xi32, #tpu.memory_space<smem>>
    %181 = arith.index_cast %179 : i32 to index
    %c0_127 = arith.constant 0 : index
    %182 = vector.load %arg40[%181, %c0_127] : memref<16x32xf32, #tpu.memory_space<vmem>>, vector<1x32xf32>
    %183 = arith.index_cast %180 : i32 to index
    %c0_128 = arith.constant 0 : index
    %184 = vector.load %arg40[%183, %c0_128] : memref<16x32xf32, #tpu.memory_space<vmem>>, vector<1x32xf32>
    %c8_i32_129 = arith.constant 8 : i32
    %185 = arith.addi %c8_i32_129, %179 : i32
    %186 = arith.index_cast %185 : i32 to index
    %c0_130 = arith.constant 0 : index
    %187 = vector.load %arg36[%186, %c0_130] : memref<32x32xf32, #tpu.memory_space<vmem>>, vector<1x32xf32>
    %c8_i32_131 = arith.constant 8 : i32
    %188 = arith.addi %c8_i32_131, %180 : i32
    %189 = arith.index_cast %188 : i32 to index
    %c0_132 = arith.constant 0 : index
    %190 = vector.load %arg36[%189, %c0_132] : memref<32x32xf32, #tpu.memory_space<vmem>>, vector<1x32xf32>
    %c8_i32_133 = arith.constant 8 : i32
    %191 = arith.cmpi slt, %179, %c8_i32_133 : i32
    %c0_i32_134 = arith.constant 0 : i32
    %c16_i32_135 = arith.constant 16 : i32
    %192 = arith.select %191, %c0_i32_134, %c16_i32_135 : i32
    %193 = arith.addi %179, %192 : i32
    %c8_i32_136 = arith.constant 8 : i32
    %194 = arith.cmpi slt, %180, %c8_i32_136 : i32
    %c0_i32_137 = arith.constant 0 : i32
    %c16_i32_138 = arith.constant 16 : i32
    %195 = arith.select %194, %c0_i32_137, %c16_i32_138 : i32
    %196 = arith.addi %180, %195 : i32
    %197 = arith.index_cast %193 : i32 to index
    %c0_139 = arith.constant 0 : index
    %198 = vector.load %arg36[%197, %c0_139] : memref<32x32xf32, #tpu.memory_space<vmem>>, vector<1x32xf32>
    %199 = arith.index_cast %196 : i32 to index
    %c0_140 = arith.constant 0 : index
    %200 = vector.load %arg36[%199, %c0_140] : memref<32x32xf32, #tpu.memory_space<vmem>>, vector<1x32xf32>
    %c3 = arith.constant 3 : index
    %c0_141 = arith.constant 0 : index
    %201 = memref.load %arg1[%c3, %c0_141] : memref<8x2xi32, #tpu.memory_space<smem>>
    %c3_142 = arith.constant 3 : index
    %c1_143 = arith.constant 1 : index
    %202 = memref.load %arg1[%c3_142, %c1_143] : memref<8x2xi32, #tpu.memory_space<smem>>
    %203 = arith.index_cast %201 : i32 to index
    %c0_144 = arith.constant 0 : index
    %204 = vector.load %arg40[%203, %c0_144] : memref<16x32xf32, #tpu.memory_space<vmem>>, vector<1x32xf32>
    %205 = arith.index_cast %202 : i32 to index
    %c0_145 = arith.constant 0 : index
    %206 = vector.load %arg40[%205, %c0_145] : memref<16x32xf32, #tpu.memory_space<vmem>>, vector<1x32xf32>
    %c8_i32_146 = arith.constant 8 : i32
    %207 = arith.addi %c8_i32_146, %201 : i32
    %208 = arith.index_cast %207 : i32 to index
    %c0_147 = arith.constant 0 : index
    %209 = vector.load %arg36[%208, %c0_147] : memref<32x32xf32, #tpu.memory_space<vmem>>, vector<1x32xf32>
    %c8_i32_148 = arith.constant 8 : i32
    %210 = arith.addi %c8_i32_148, %202 : i32
    %211 = arith.index_cast %210 : i32 to index
    %c0_149 = arith.constant 0 : index
    %212 = vector.load %arg36[%211, %c0_149] : memref<32x32xf32, #tpu.memory_space<vmem>>, vector<1x32xf32>
    %c8_i32_150 = arith.constant 8 : i32
    %213 = arith.cmpi slt, %201, %c8_i32_150 : i32
    %c0_i32_151 = arith.constant 0 : i32
    %c16_i32_152 = arith.constant 16 : i32
    %214 = arith.select %213, %c0_i32_151, %c16_i32_152 : i32
    %215 = arith.addi %201, %214 : i32
    %c8_i32_153 = arith.constant 8 : i32
    %216 = arith.cmpi slt, %202, %c8_i32_153 : i32
    %c0_i32_154 = arith.constant 0 : i32
    %c16_i32_155 = arith.constant 16 : i32
    %217 = arith.select %216, %c0_i32_154, %c16_i32_155 : i32
    %218 = arith.addi %202, %217 : i32
    %219 = arith.index_cast %215 : i32 to index
    %c0_156 = arith.constant 0 : index
    %220 = vector.load %arg36[%219, %c0_156] : memref<32x32xf32, #tpu.memory_space<vmem>>, vector<1x32xf32>
    %221 = arith.index_cast %218 : i32 to index
    %c0_157 = arith.constant 0 : index
    %222 = vector.load %arg36[%221, %c0_157] : memref<32x32xf32, #tpu.memory_space<vmem>>, vector<1x32xf32>
    %c4 = arith.constant 4 : index
    %c0_158 = arith.constant 0 : index
    %223 = memref.load %arg1[%c4, %c0_158] : memref<8x2xi32, #tpu.memory_space<smem>>
    %c4_159 = arith.constant 4 : index
    %c1_160 = arith.constant 1 : index
    %224 = memref.load %arg1[%c4_159, %c1_160] : memref<8x2xi32, #tpu.memory_space<smem>>
    %225 = arith.index_cast %223 : i32 to index
    %c0_161 = arith.constant 0 : index
    %226 = vector.load %arg40[%225, %c0_161] : memref<16x32xf32, #tpu.memory_space<vmem>>, vector<1x32xf32>
    %227 = arith.index_cast %224 : i32 to index
    %c0_162 = arith.constant 0 : index
    %228 = vector.load %arg40[%227, %c0_162] : memref<16x32xf32, #tpu.memory_space<vmem>>, vector<1x32xf32>
    %c8_i32_163 = arith.constant 8 : i32
    %229 = arith.addi %c8_i32_163, %223 : i32
    %230 = arith.index_cast %229 : i32 to index
    %c0_164 = arith.constant 0 : index
    %231 = vector.load %arg36[%230, %c0_164] : memref<32x32xf32, #tpu.memory_space<vmem>>, vector<1x32xf32>
    %c8_i32_165 = arith.constant 8 : i32
    %232 = arith.addi %c8_i32_165, %224 : i32
    %233 = arith.index_cast %232 : i32 to index
    %c0_166 = arith.constant 0 : index
    %234 = vector.load %arg36[%233, %c0_166] : memref<32x32xf32, #tpu.memory_space<vmem>>, vector<1x32xf32>
    %c8_i32_167 = arith.constant 8 : i32
    %235 = arith.cmpi slt, %223, %c8_i32_167 : i32
    %c0_i32_168 = arith.constant 0 : i32
    %c16_i32_169 = arith.constant 16 : i32
    %236 = arith.select %235, %c0_i32_168, %c16_i32_169 : i32
    %237 = arith.addi %223, %236 : i32
    %c8_i32_170 = arith.constant 8 : i32
    %238 = arith.cmpi slt, %224, %c8_i32_170 : i32
    %c0_i32_171 = arith.constant 0 : i32
    %c16_i32_172 = arith.constant 16 : i32
    %239 = arith.select %238, %c0_i32_171, %c16_i32_172 : i32
    %240 = arith.addi %224, %239 : i32
    %241 = arith.index_cast %237 : i32 to index
    %c0_173 = arith.constant 0 : index
    %242 = vector.load %arg36[%241, %c0_173] : memref<32x32xf32, #tpu.memory_space<vmem>>, vector<1x32xf32>
    %243 = arith.index_cast %240 : i32 to index
    %c0_174 = arith.constant 0 : index
    %244 = vector.load %arg36[%243, %c0_174] : memref<32x32xf32, #tpu.memory_space<vmem>>, vector<1x32xf32>
    %c5 = arith.constant 5 : index
    %c0_175 = arith.constant 0 : index
    %245 = memref.load %arg1[%c5, %c0_175] : memref<8x2xi32, #tpu.memory_space<smem>>
    %c5_176 = arith.constant 5 : index
    %c1_177 = arith.constant 1 : index
    %246 = memref.load %arg1[%c5_176, %c1_177] : memref<8x2xi32, #tpu.memory_space<smem>>
    %247 = arith.index_cast %245 : i32 to index
    %c0_178 = arith.constant 0 : index
    %248 = vector.load %arg40[%247, %c0_178] : memref<16x32xf32, #tpu.memory_space<vmem>>, vector<1x32xf32>
    %249 = arith.index_cast %246 : i32 to index
    %c0_179 = arith.constant 0 : index
    %250 = vector.load %arg40[%249, %c0_179] : memref<16x32xf32, #tpu.memory_space<vmem>>, vector<1x32xf32>
    %c8_i32_180 = arith.constant 8 : i32
    %251 = arith.addi %c8_i32_180, %245 : i32
    %252 = arith.index_cast %251 : i32 to index
    %c0_181 = arith.constant 0 : index
    %253 = vector.load %arg36[%252, %c0_181] : memref<32x32xf32, #tpu.memory_space<vmem>>, vector<1x32xf32>
    %c8_i32_182 = arith.constant 8 : i32
    %254 = arith.addi %c8_i32_182, %246 : i32
    %255 = arith.index_cast %254 : i32 to index
    %c0_183 = arith.constant 0 : index
    %256 = vector.load %arg36[%255, %c0_183] : memref<32x32xf32, #tpu.memory_space<vmem>>, vector<1x32xf32>
    %c8_i32_184 = arith.constant 8 : i32
    %257 = arith.cmpi slt, %245, %c8_i32_184 : i32
    %c0_i32_185 = arith.constant 0 : i32
    %c16_i32_186 = arith.constant 16 : i32
    %258 = arith.select %257, %c0_i32_185, %c16_i32_186 : i32
    %259 = arith.addi %245, %258 : i32
    %c8_i32_187 = arith.constant 8 : i32
    %260 = arith.cmpi slt, %246, %c8_i32_187 : i32
    %c0_i32_188 = arith.constant 0 : i32
    %c16_i32_189 = arith.constant 16 : i32
    %261 = arith.select %260, %c0_i32_188, %c16_i32_189 : i32
    %262 = arith.addi %246, %261 : i32
    %263 = arith.index_cast %259 : i32 to index
    %c0_190 = arith.constant 0 : index
    %264 = vector.load %arg36[%263, %c0_190] : memref<32x32xf32, #tpu.memory_space<vmem>>, vector<1x32xf32>
    %265 = arith.index_cast %262 : i32 to index
    %c0_191 = arith.constant 0 : index
    %266 = vector.load %arg36[%265, %c0_191] : memref<32x32xf32, #tpu.memory_space<vmem>>, vector<1x32xf32>
    %c6 = arith.constant 6 : index
    %c0_192 = arith.constant 0 : index
    %267 = memref.load %arg1[%c6, %c0_192] : memref<8x2xi32, #tpu.memory_space<smem>>
    %c6_193 = arith.constant 6 : index
    %c1_194 = arith.constant 1 : index
    %268 = memref.load %arg1[%c6_193, %c1_194] : memref<8x2xi32, #tpu.memory_space<smem>>
    %269 = arith.index_cast %267 : i32 to index
    %c0_195 = arith.constant 0 : index
    %270 = vector.load %arg40[%269, %c0_195] : memref<16x32xf32, #tpu.memory_space<vmem>>, vector<1x32xf32>
    %271 = arith.index_cast %268 : i32 to index
    %c0_196 = arith.constant 0 : index
    %272 = vector.load %arg40[%271, %c0_196] : memref<16x32xf32, #tpu.memory_space<vmem>>, vector<1x32xf32>
    %c8_i32_197 = arith.constant 8 : i32
    %273 = arith.addi %c8_i32_197, %267 : i32
    %274 = arith.index_cast %273 : i32 to index
    %c0_198 = arith.constant 0 : index
    %275 = vector.load %arg36[%274, %c0_198] : memref<32x32xf32, #tpu.memory_space<vmem>>, vector<1x32xf32>
    %c8_i32_199 = arith.constant 8 : i32
    %276 = arith.addi %c8_i32_199, %268 : i32
    %277 = arith.index_cast %276 : i32 to index
    %c0_200 = arith.constant 0 : index
    %278 = vector.load %arg36[%277, %c0_200] : memref<32x32xf32, #tpu.memory_space<vmem>>, vector<1x32xf32>
    %c8_i32_201 = arith.constant 8 : i32
    %279 = arith.cmpi slt, %267, %c8_i32_201 : i32
    %c0_i32_202 = arith.constant 0 : i32
    %c16_i32_203 = arith.constant 16 : i32
    %280 = arith.select %279, %c0_i32_202, %c16_i32_203 : i32
    %281 = arith.addi %267, %280 : i32
    %c8_i32_204 = arith.constant 8 : i32
    %282 = arith.cmpi slt, %268, %c8_i32_204 : i32
    %c0_i32_205 = arith.constant 0 : i32
    %c16_i32_206 = arith.constant 16 : i32
    %283 = arith.select %282, %c0_i32_205, %c16_i32_206 : i32
    %284 = arith.addi %268, %283 : i32
    %285 = arith.index_cast %281 : i32 to index
    %c0_207 = arith.constant 0 : index
    %286 = vector.load %arg36[%285, %c0_207] : memref<32x32xf32, #tpu.memory_space<vmem>>, vector<1x32xf32>
    %287 = arith.index_cast %284 : i32 to index
    %c0_208 = arith.constant 0 : index
    %288 = vector.load %arg36[%287, %c0_208] : memref<32x32xf32, #tpu.memory_space<vmem>>, vector<1x32xf32>
    %c7 = arith.constant 7 : index
    %c0_209 = arith.constant 0 : index
    %289 = memref.load %arg1[%c7, %c0_209] : memref<8x2xi32, #tpu.memory_space<smem>>
    %c7_210 = arith.constant 7 : index
    %c1_211 = arith.constant 1 : index
    %290 = memref.load %arg1[%c7_210, %c1_211] : memref<8x2xi32, #tpu.memory_space<smem>>
    %291 = arith.index_cast %289 : i32 to index
    %c0_212 = arith.constant 0 : index
    %292 = vector.load %arg40[%291, %c0_212] : memref<16x32xf32, #tpu.memory_space<vmem>>, vector<1x32xf32>
    %293 = arith.index_cast %290 : i32 to index
    %c0_213 = arith.constant 0 : index
    %294 = vector.load %arg40[%293, %c0_213] : memref<16x32xf32, #tpu.memory_space<vmem>>, vector<1x32xf32>
    %c8_i32_214 = arith.constant 8 : i32
    %295 = arith.addi %c8_i32_214, %289 : i32
    %296 = arith.index_cast %295 : i32 to index
    %c0_215 = arith.constant 0 : index
    %297 = vector.load %arg36[%296, %c0_215] : memref<32x32xf32, #tpu.memory_space<vmem>>, vector<1x32xf32>
    %c8_i32_216 = arith.constant 8 : i32
    %298 = arith.addi %c8_i32_216, %290 : i32
    %299 = arith.index_cast %298 : i32 to index
    %c0_217 = arith.constant 0 : index
    %300 = vector.load %arg36[%299, %c0_217] : memref<32x32xf32, #tpu.memory_space<vmem>>, vector<1x32xf32>
    %c8_i32_218 = arith.constant 8 : i32
    %301 = arith.cmpi slt, %289, %c8_i32_218 : i32
    %c0_i32_219 = arith.constant 0 : i32
    %c16_i32_220 = arith.constant 16 : i32
    %302 = arith.select %301, %c0_i32_219, %c16_i32_220 : i32
    %303 = arith.addi %289, %302 : i32
    %c8_i32_221 = arith.constant 8 : i32
    %304 = arith.cmpi slt, %290, %c8_i32_221 : i32
    %c0_i32_222 = arith.constant 0 : i32
    %c16_i32_223 = arith.constant 16 : i32
    %305 = arith.select %304, %c0_i32_222, %c16_i32_223 : i32
    %306 = arith.addi %290, %305 : i32
    %307 = arith.index_cast %303 : i32 to index
    %c0_224 = arith.constant 0 : index
    %308 = vector.load %arg36[%307, %c0_224] : memref<32x32xf32, #tpu.memory_space<vmem>>, vector<1x32xf32>
    %309 = arith.index_cast %306 : i32 to index
    %c0_225 = arith.constant 0 : index
    %310 = vector.load %arg36[%309, %c0_225] : memref<32x32xf32, #tpu.memory_space<vmem>>, vector<1x32xf32>
    %311 = tpu.concatenate %138, %160, %182, %204, %226, %248, %270, %292 in 0 : vector<1x32xf32>, vector<1x32xf32>, vector<1x32xf32>, vector<1x32xf32>, vector<1x32xf32>, vector<1x32xf32>, vector<1x32xf32>, vector<1x32xf32> -> vector<8x32xf32>
    %312 = tpu.concatenate %140, %162, %184, %206, %228, %250, %272, %294 in 0 : vector<1x32xf32>, vector<1x32xf32>, vector<1x32xf32>, vector<1x32xf32>, vector<1x32xf32>, vector<1x32xf32>, vector<1x32xf32>, vector<1x32xf32> -> vector<8x32xf32>
    %313 = tpu.concatenate %311, %312 in 1 : vector<8x32xf32>, vector<8x32xf32> -> vector<8x64xf32>
    %314 = tpu.concatenate %143, %165, %187, %209, %231, %253, %275, %297 in 0 : vector<1x32xf32>, vector<1x32xf32>, vector<1x32xf32>, vector<1x32xf32>, vector<1x32xf32>, vector<1x32xf32>, vector<1x32xf32>, vector<1x32xf32> -> vector<8x32xf32>
    %315 = tpu.concatenate %146, %168, %190, %212, %234, %256, %278, %300 in 0 : vector<1x32xf32>, vector<1x32xf32>, vector<1x32xf32>, vector<1x32xf32>, vector<1x32xf32>, vector<1x32xf32>, vector<1x32xf32>, vector<1x32xf32> -> vector<8x32xf32>
    %316 = tpu.concatenate %314, %315 in 1 : vector<8x32xf32>, vector<8x32xf32> -> vector<8x64xf32>
    %317 = tpu.concatenate %154, %176, %198, %220, %242, %264, %286, %308 in 0 : vector<1x32xf32>, vector<1x32xf32>, vector<1x32xf32>, vector<1x32xf32>, vector<1x32xf32>, vector<1x32xf32>, vector<1x32xf32>, vector<1x32xf32> -> vector<8x32xf32>
    %318 = tpu.concatenate %156, %178, %200, %222, %244, %266, %288, %310 in 0 : vector<1x32xf32>, vector<1x32xf32>, vector<1x32xf32>, vector<1x32xf32>, vector<1x32xf32>, vector<1x32xf32>, vector<1x32xf32>, vector<1x32xf32> -> vector<8x32xf32>
    %319 = tpu.concatenate %317, %318 in 1 : vector<8x32xf32>, vector<8x32xf32> -> vector<8x64xf32>
    %c0_226 = arith.constant 0 : index
    %c0_227 = arith.constant 0 : index
    %320 = vector.load %arg35[%c0_226, %c0_227] : memref<8x1xf32, #tpu.memory_space<vmem>>, vector<8x1xf32>
    %c0_228 = arith.constant 0 : index
    %c0_229 = arith.constant 0 : index
    %c0_230 = arith.constant 0 : index
    %321 = vector.load %arg29[%c0_228, %c0_229, %c0_230] : memref<3x64x32xf32, #tpu.memory_space<vmem>>, vector<1x64x32xf32>
    %322 = vector.shape_cast %321 : vector<1x64x32xf32> to vector<64x32xf32>
    %cst_231 = arith.constant dense<0.000000e+00> : vector<8x32xf32>
    %323 = tpu.matmul %313, %322, %cst_231 {dimension_numbers = #tpu.dot_dimension_numbers<[1], [0], [0], [1], [0, 0, 1, 1], [], []>} : vector<8x64xf32>, vector<64x32xf32>, vector<8x32xf32> -> vector<8x32xf32>
    %c0_232 = arith.constant 0 : index
    %c0_233 = arith.constant 0 : index
    %c0_234 = arith.constant 0 : index
    %324 = vector.load %arg30[%c0_232, %c0_233, %c0_234] : memref<3x1x32xf32, #tpu.memory_space<vmem>>, vector<1x1x32xf32>
    %325 = vector.shape_cast %324 : vector<1x1x32xf32> to vector<1x32xf32>
    %326 = vector.broadcast %325 : vector<1x32xf32> to vector<8x32xf32>
    %327 = arith.addf %323, %326 : vector<8x32xf32>
    %cst_235 = arith.constant dense<0.000000e+00> : vector<32xf32>
    %328 = vector.multi_reduction <add>, %327, %cst_235 [0] : vector<8x32xf32> to vector<32xf32>
    %329 = vector.shape_cast %328 : vector<32xf32> to vector<1x32xf32>
    %cst_236 = arith.constant 8.000000e+00 : f32
    %330 = vector.broadcast %cst_236 : f32 to vector<1x32xf32>
    %331 = arith.divf %329, %330 : vector<1x32xf32>
    %332 = vector.broadcast %331 : vector<1x32xf32> to vector<8x32xf32>
    %333 = arith.subf %327, %332 : vector<8x32xf32>
    %334 = arith.mulf %333, %333 : vector<8x32xf32>
    %cst_237 = arith.constant dense<0.000000e+00> : vector<32xf32>
    %335 = vector.multi_reduction <add>, %334, %cst_237 [0] : vector<8x32xf32> to vector<32xf32>
    %336 = vector.shape_cast %335 : vector<32xf32> to vector<1x32xf32>
    %cst_238 = arith.constant 8.000000e+00 : f32
    %337 = vector.broadcast %cst_238 : f32 to vector<1x32xf32>
    %338 = arith.divf %336, %337 : vector<1x32xf32>
    %339 = vector.broadcast %331 : vector<1x32xf32> to vector<8x32xf32>
    %340 = arith.subf %327, %339 : vector<8x32xf32>
    %cst_239 = arith.constant 9.99999974E-6 : f32
    %341 = vector.broadcast %cst_239 : f32 to vector<1x32xf32>
    %342 = arith.addf %338, %341 : vector<1x32xf32>
    %343 = math.rsqrt %342 : vector<1x32xf32>
    %344 = vector.broadcast %343 : vector<1x32xf32> to vector<8x32xf32>
    %345 = arith.mulf %340, %344 : vector<8x32xf32>
    %c0_240 = arith.constant 0 : index
    %c0_241 = arith.constant 0 : index
    %c0_242 = arith.constant 0 : index
    %346 = vector.load %arg31[%c0_240, %c0_241, %c0_242] : memref<3x1x32xf32, #tpu.memory_space<vmem>>, vector<1x1x32xf32>
    %347 = vector.shape_cast %346 : vector<1x1x32xf32> to vector<1x32xf32>
    %348 = vector.broadcast %347 : vector<1x32xf32> to vector<8x32xf32>
    %349 = arith.mulf %345, %348 : vector<8x32xf32>
    %c0_243 = arith.constant 0 : index
    %c0_244 = arith.constant 0 : index
    %c0_245 = arith.constant 0 : index
    %350 = vector.load %arg32[%c0_243, %c0_244, %c0_245] : memref<3x1x32xf32, #tpu.memory_space<vmem>>, vector<1x1x32xf32>
    %351 = vector.shape_cast %350 : vector<1x1x32xf32> to vector<1x32xf32>
    %352 = vector.broadcast %351 : vector<1x32xf32> to vector<8x32xf32>
    %353 = arith.addf %349, %352 : vector<8x32xf32>
    %cst_246 = arith.constant 0.000000e+00 : f32
    %354 = vector.broadcast %cst_246 : f32 to vector<8x32xf32>
    %355 = arith.maximumf %353, %354 : vector<8x32xf32>
    %c0_247 = arith.constant 0 : index
    %c0_248 = arith.constant 0 : index
    %c0_249 = arith.constant 0 : index
    %356 = vector.load %arg33[%c0_247, %c0_248, %c0_249] : memref<3x1x32xf32, #tpu.memory_space<vmem>>, vector<1x1x32xf32>
    %357 = vector.shape_cast %356 : vector<1x1x32xf32> to vector<1x32xf32>
    %358 = vector.broadcast %357 : vector<1x32xf32> to vector<8x32xf32>
    %359 = arith.mulf %355, %358 : vector<8x32xf32>
    %cst_250 = arith.constant dense<0.000000e+00> : vector<8xf32>
    %360 = vector.multi_reduction <add>, %359, %cst_250 [1] : vector<8x32xf32> to vector<8xf32>
    %361 = vector.shape_cast %360 : vector<8xf32> to vector<8x1xf32>
    %c0_251 = arith.constant 0 : index
    %c0_252 = arith.constant 0 : index
    %c0_253 = arith.constant 0 : index
    %362 = vector.load %arg34[%c0_251, %c0_252, %c0_253] : memref<3x1x1xf32, #tpu.memory_space<vmem>>, vector<1x1x1xf32>
    %363 = vector.shape_cast %362 : vector<1x1x1xf32> to vector<1x1xf32>
    %364 = vector.broadcast %363 : vector<1x1xf32> to vector<8x1xf32>
    %365 = arith.addf %361, %364 : vector<8x1xf32>
    %366 = arith.negf %365 : vector<8x1xf32>
    %367 = math.exp %366 : vector<8x1xf32>
    %cst_254 = arith.constant 1.000000e+00 : f32
    %368 = vector.broadcast %cst_254 : f32 to vector<8x1xf32>
    %369 = arith.addf %368, %367 : vector<8x1xf32>
    %370 = arith.divf %368, %369 : vector<8x1xf32>
    %cst_255 = arith.constant 1.000000e-07 : f32
    %cst_256 = arith.constant 0.99999988 : f32
    %371 = vector.broadcast %cst_255 : f32 to vector<8x1xf32>
    %372 = arith.maximumf %371, %370 : vector<8x1xf32>
    %373 = vector.broadcast %cst_256 : f32 to vector<8x1xf32>
    %374 = arith.minimumf %373, %372 : vector<8x1xf32>
    %375 = math.log %374 : vector<8x1xf32>
    %376 = arith.mulf %320, %375 : vector<8x1xf32>
    %cst_257 = arith.constant 1.000000e+00 : f32
    %377 = vector.broadcast %cst_257 : f32 to vector<8x1xf32>
    %378 = arith.subf %377, %320 : vector<8x1xf32>
    %cst_258 = arith.constant 1.000000e+00 : f32
    %379 = vector.broadcast %cst_258 : f32 to vector<8x1xf32>
    %380 = arith.subf %379, %374 : vector<8x1xf32>
    %381 = math.log %380 : vector<8x1xf32>
    %382 = arith.mulf %378, %381 : vector<8x1xf32>
    %383 = arith.addf %376, %382 : vector<8x1xf32>
    %cst_259 = arith.constant 0.000000e+00 : f32
    %384 = vector.broadcast %cst_259 : f32 to vector<8x1xf32>
    %385 = arith.subf %384, %383 : vector<8x1xf32>
    %386 = vector.shape_cast %385 : vector<8x1xf32> to vector<1x8x1xf32>
    %cst_260 = arith.constant dense<0.000000e+00> : vector<1xf32>
    %387 = vector.multi_reduction <add>, %386, %cst_260 [1, 2] : vector<1x8x1xf32> to vector<1xf32>
    %388 = vector.shape_cast %387 : vector<1xf32> to vector<1x1x1xf32>
    %389 = vector.extract %388[0, 0, 0] : f32 from vector<1x1x1xf32>
    %390 = vector.broadcast %389 : f32 to vector<1x1xf32>
    %cst_261 = arith.constant 8.000000e+00 : f32
    %391 = vector.broadcast %cst_261 : f32 to vector<1x1xf32>
    %392 = arith.divf %390, %391 : vector<1x1xf32>
    %c1_262 = arith.constant 1 : index
    %c0_263 = arith.constant 0 : index
    %c0_264 = arith.constant 0 : index
    %393 = vector.load %arg29[%c1_262, %c0_263, %c0_264] : memref<3x64x32xf32, #tpu.memory_space<vmem>>, vector<1x64x32xf32>
    %394 = vector.shape_cast %393 : vector<1x64x32xf32> to vector<64x32xf32>
    %cst_265 = arith.constant dense<0.000000e+00> : vector<8x32xf32>
    %395 = tpu.matmul %316, %394, %cst_265 {dimension_numbers = #tpu.dot_dimension_numbers<[1], [0], [0], [1], [0, 0, 1, 1], [], []>} : vector<8x64xf32>, vector<64x32xf32>, vector<8x32xf32> -> vector<8x32xf32>
    %c1_266 = arith.constant 1 : index
    %c0_267 = arith.constant 0 : index
    %c0_268 = arith.constant 0 : index
    %396 = vector.load %arg30[%c1_266, %c0_267, %c0_268] : memref<3x1x32xf32, #tpu.memory_space<vmem>>, vector<1x1x32xf32>
    %397 = vector.shape_cast %396 : vector<1x1x32xf32> to vector<1x32xf32>
    %398 = vector.broadcast %397 : vector<1x32xf32> to vector<8x32xf32>
    %399 = arith.addf %395, %398 : vector<8x32xf32>
    %cst_269 = arith.constant dense<0.000000e+00> : vector<32xf32>
    %400 = vector.multi_reduction <add>, %399, %cst_269 [0] : vector<8x32xf32> to vector<32xf32>
    %401 = vector.shape_cast %400 : vector<32xf32> to vector<1x32xf32>
    %cst_270 = arith.constant 8.000000e+00 : f32
    %402 = vector.broadcast %cst_270 : f32 to vector<1x32xf32>
    %403 = arith.divf %401, %402 : vector<1x32xf32>
    %404 = vector.broadcast %403 : vector<1x32xf32> to vector<8x32xf32>
    %405 = arith.subf %399, %404 : vector<8x32xf32>
    %406 = arith.mulf %405, %405 : vector<8x32xf32>
    %cst_271 = arith.constant dense<0.000000e+00> : vector<32xf32>
    %407 = vector.multi_reduction <add>, %406, %cst_271 [0] : vector<8x32xf32> to vector<32xf32>
    %408 = vector.shape_cast %407 : vector<32xf32> to vector<1x32xf32>
    %cst_272 = arith.constant 8.000000e+00 : f32
    %409 = vector.broadcast %cst_272 : f32 to vector<1x32xf32>
    %410 = arith.divf %408, %409 : vector<1x32xf32>
    %411 = vector.broadcast %403 : vector<1x32xf32> to vector<8x32xf32>
    %412 = arith.subf %399, %411 : vector<8x32xf32>
    %cst_273 = arith.constant 9.99999974E-6 : f32
    %413 = vector.broadcast %cst_273 : f32 to vector<1x32xf32>
    %414 = arith.addf %410, %413 : vector<1x32xf32>
    %415 = math.rsqrt %414 : vector<1x32xf32>
    %416 = vector.broadcast %415 : vector<1x32xf32> to vector<8x32xf32>
    %417 = arith.mulf %412, %416 : vector<8x32xf32>
    %c1_274 = arith.constant 1 : index
    %c0_275 = arith.constant 0 : index
    %c0_276 = arith.constant 0 : index
    %418 = vector.load %arg31[%c1_274, %c0_275, %c0_276] : memref<3x1x32xf32, #tpu.memory_space<vmem>>, vector<1x1x32xf32>
    %419 = vector.shape_cast %418 : vector<1x1x32xf32> to vector<1x32xf32>
    %420 = vector.broadcast %419 : vector<1x32xf32> to vector<8x32xf32>
    %421 = arith.mulf %417, %420 : vector<8x32xf32>
    %c1_277 = arith.constant 1 : index
    %c0_278 = arith.constant 0 : index
    %c0_279 = arith.constant 0 : index
    %422 = vector.load %arg32[%c1_277, %c0_278, %c0_279] : memref<3x1x32xf32, #tpu.memory_space<vmem>>, vector<1x1x32xf32>
    %423 = vector.shape_cast %422 : vector<1x1x32xf32> to vector<1x32xf32>
    %424 = vector.broadcast %423 : vector<1x32xf32> to vector<8x32xf32>
    %425 = arith.addf %421, %424 : vector<8x32xf32>
    %cst_280 = arith.constant 0.000000e+00 : f32
    %426 = vector.broadcast %cst_280 : f32 to vector<8x32xf32>
    %427 = arith.maximumf %425, %426 : vector<8x32xf32>
    %c1_281 = arith.constant 1 : index
    %c0_282 = arith.constant 0 : index
    %c0_283 = arith.constant 0 : index
    %428 = vector.load %arg33[%c1_281, %c0_282, %c0_283] : memref<3x1x32xf32, #tpu.memory_space<vmem>>, vector<1x1x32xf32>
    %429 = vector.shape_cast %428 : vector<1x1x32xf32> to vector<1x32xf32>
    %430 = vector.broadcast %429 : vector<1x32xf32> to vector<8x32xf32>
    %431 = arith.mulf %427, %430 : vector<8x32xf32>
    %cst_284 = arith.constant dense<0.000000e+00> : vector<8xf32>
    %432 = vector.multi_reduction <add>, %431, %cst_284 [1] : vector<8x32xf32> to vector<8xf32>
    %433 = vector.shape_cast %432 : vector<8xf32> to vector<8x1xf32>
    %c1_285 = arith.constant 1 : index
    %c0_286 = arith.constant 0 : index
    %c0_287 = arith.constant 0 : index
    %434 = vector.load %arg34[%c1_285, %c0_286, %c0_287] : memref<3x1x1xf32, #tpu.memory_space<vmem>>, vector<1x1x1xf32>
    %435 = vector.shape_cast %434 : vector<1x1x1xf32> to vector<1x1xf32>
    %436 = vector.broadcast %435 : vector<1x1xf32> to vector<8x1xf32>
    %437 = arith.addf %433, %436 : vector<8x1xf32>
    %438 = arith.negf %437 : vector<8x1xf32>
    %439 = math.exp %438 : vector<8x1xf32>
    %cst_288 = arith.constant 1.000000e+00 : f32
    %440 = vector.broadcast %cst_288 : f32 to vector<8x1xf32>
    %441 = arith.addf %440, %439 : vector<8x1xf32>
    %442 = arith.divf %440, %441 : vector<8x1xf32>
    %cst_289 = arith.constant 1.000000e-07 : f32
    %cst_290 = arith.constant 0.99999988 : f32
    %443 = vector.broadcast %cst_289 : f32 to vector<8x1xf32>
    %444 = arith.maximumf %443, %442 : vector<8x1xf32>
    %445 = vector.broadcast %cst_290 : f32 to vector<8x1xf32>
    %446 = arith.minimumf %445, %444 : vector<8x1xf32>
    %447 = math.log %446 : vector<8x1xf32>
    %448 = arith.mulf %320, %447 : vector<8x1xf32>
    %cst_291 = arith.constant 1.000000e+00 : f32
    %449 = vector.broadcast %cst_291 : f32 to vector<8x1xf32>
    %450 = arith.subf %449, %320 : vector<8x1xf32>
    %cst_292 = arith.constant 1.000000e+00 : f32
    %451 = vector.broadcast %cst_292 : f32 to vector<8x1xf32>
    %452 = arith.subf %451, %446 : vector<8x1xf32>
    %453 = math.log %452 : vector<8x1xf32>
    %454 = arith.mulf %450, %453 : vector<8x1xf32>
    %455 = arith.addf %448, %454 : vector<8x1xf32>
    %cst_293 = arith.constant 0.000000e+00 : f32
    %456 = vector.broadcast %cst_293 : f32 to vector<8x1xf32>
    %457 = arith.subf %456, %455 : vector<8x1xf32>
    %458 = vector.shape_cast %457 : vector<8x1xf32> to vector<1x8x1xf32>
    %cst_294 = arith.constant dense<0.000000e+00> : vector<1xf32>
    %459 = vector.multi_reduction <add>, %458, %cst_294 [1, 2] : vector<1x8x1xf32> to vector<1xf32>
    %460 = vector.shape_cast %459 : vector<1xf32> to vector<1x1x1xf32>
    %461 = vector.extract %460[0, 0, 0] : f32 from vector<1x1x1xf32>
    %462 = vector.broadcast %461 : f32 to vector<1x1xf32>
    %cst_295 = arith.constant 8.000000e+00 : f32
    %463 = vector.broadcast %cst_295 : f32 to vector<1x1xf32>
    %464 = arith.divf %462, %463 : vector<1x1xf32>
    %c2_296 = arith.constant 2 : index
    %c0_297 = arith.constant 0 : index
    %c0_298 = arith.constant 0 : index
    %465 = vector.load %arg29[%c2_296, %c0_297, %c0_298] : memref<3x64x32xf32, #tpu.memory_space<vmem>>, vector<1x64x32xf32>
    %466 = vector.shape_cast %465 : vector<1x64x32xf32> to vector<64x32xf32>
    %cst_299 = arith.constant dense<0.000000e+00> : vector<8x32xf32>
    %467 = tpu.matmul %319, %466, %cst_299 {dimension_numbers = #tpu.dot_dimension_numbers<[1], [0], [0], [1], [0, 0, 1, 1], [], []>} : vector<8x64xf32>, vector<64x32xf32>, vector<8x32xf32> -> vector<8x32xf32>
    %c2_300 = arith.constant 2 : index
    %c0_301 = arith.constant 0 : index
    %c0_302 = arith.constant 0 : index
    %468 = vector.load %arg30[%c2_300, %c0_301, %c0_302] : memref<3x1x32xf32, #tpu.memory_space<vmem>>, vector<1x1x32xf32>
    %469 = vector.shape_cast %468 : vector<1x1x32xf32> to vector<1x32xf32>
    %470 = vector.broadcast %469 : vector<1x32xf32> to vector<8x32xf32>
    %471 = arith.addf %467, %470 : vector<8x32xf32>
    %cst_303 = arith.constant dense<0.000000e+00> : vector<32xf32>
    %472 = vector.multi_reduction <add>, %471, %cst_303 [0] : vector<8x32xf32> to vector<32xf32>
    %473 = vector.shape_cast %472 : vector<32xf32> to vector<1x32xf32>
    %cst_304 = arith.constant 8.000000e+00 : f32
    %474 = vector.broadcast %cst_304 : f32 to vector<1x32xf32>
    %475 = arith.divf %473, %474 : vector<1x32xf32>
    %476 = vector.broadcast %475 : vector<1x32xf32> to vector<8x32xf32>
    %477 = arith.subf %471, %476 : vector<8x32xf32>
    %478 = arith.mulf %477, %477 : vector<8x32xf32>
    %cst_305 = arith.constant dense<0.000000e+00> : vector<32xf32>
    %479 = vector.multi_reduction <add>, %478, %cst_305 [0] : vector<8x32xf32> to vector<32xf32>
    %480 = vector.shape_cast %479 : vector<32xf32> to vector<1x32xf32>
    %cst_306 = arith.constant 8.000000e+00 : f32
    %481 = vector.broadcast %cst_306 : f32 to vector<1x32xf32>
    %482 = arith.divf %480, %481 : vector<1x32xf32>
    %483 = vector.broadcast %475 : vector<1x32xf32> to vector<8x32xf32>
    %484 = arith.subf %471, %483 : vector<8x32xf32>
    %cst_307 = arith.constant 9.99999974E-6 : f32
    %485 = vector.broadcast %cst_307 : f32 to vector<1x32xf32>
    %486 = arith.addf %482, %485 : vector<1x32xf32>
    %487 = math.rsqrt %486 : vector<1x32xf32>
    %488 = vector.broadcast %487 : vector<1x32xf32> to vector<8x32xf32>
    %489 = arith.mulf %484, %488 : vector<8x32xf32>
    %c2_308 = arith.constant 2 : index
    %c0_309 = arith.constant 0 : index
    %c0_310 = arith.constant 0 : index
    %490 = vector.load %arg31[%c2_308, %c0_309, %c0_310] : memref<3x1x32xf32, #tpu.memory_space<vmem>>, vector<1x1x32xf32>
    %491 = vector.shape_cast %490 : vector<1x1x32xf32> to vector<1x32xf32>
    %492 = vector.broadcast %491 : vector<1x32xf32> to vector<8x32xf32>
    %493 = arith.mulf %489, %492 : vector<8x32xf32>
    %c2_311 = arith.constant 2 : index
    %c0_312 = arith.constant 0 : index
    %c0_313 = arith.constant 0 : index
    %494 = vector.load %arg32[%c2_311, %c0_312, %c0_313] : memref<3x1x32xf32, #tpu.memory_space<vmem>>, vector<1x1x32xf32>
    %495 = vector.shape_cast %494 : vector<1x1x32xf32> to vector<1x32xf32>
    %496 = vector.broadcast %495 : vector<1x32xf32> to vector<8x32xf32>
    %497 = arith.addf %493, %496 : vector<8x32xf32>
    %cst_314 = arith.constant 0.000000e+00 : f32
    %498 = vector.broadcast %cst_314 : f32 to vector<8x32xf32>
    %499 = arith.maximumf %497, %498 : vector<8x32xf32>
    %c2_315 = arith.constant 2 : index
    %c0_316 = arith.constant 0 : index
    %c0_317 = arith.constant 0 : index
    %500 = vector.load %arg33[%c2_315, %c0_316, %c0_317] : memref<3x1x32xf32, #tpu.memory_space<vmem>>, vector<1x1x32xf32>
    %501 = vector.shape_cast %500 : vector<1x1x32xf32> to vector<1x32xf32>
    %502 = vector.broadcast %501 : vector<1x32xf32> to vector<8x32xf32>
    %503 = arith.mulf %499, %502 : vector<8x32xf32>
    %cst_318 = arith.constant dense<0.000000e+00> : vector<8xf32>
    %504 = vector.multi_reduction <add>, %503, %cst_318 [1] : vector<8x32xf32> to vector<8xf32>
    %505 = vector.shape_cast %504 : vector<8xf32> to vector<8x1xf32>
    %c2_319 = arith.constant 2 : index
    %c0_320 = arith.constant 0 : index
    %c0_321 = arith.constant 0 : index
    %506 = vector.load %arg34[%c2_319, %c0_320, %c0_321] : memref<3x1x1xf32, #tpu.memory_space<vmem>>, vector<1x1x1xf32>
    %507 = vector.shape_cast %506 : vector<1x1x1xf32> to vector<1x1xf32>
    %508 = vector.broadcast %507 : vector<1x1xf32> to vector<8x1xf32>
    %509 = arith.addf %505, %508 : vector<8x1xf32>
    %510 = arith.negf %509 : vector<8x1xf32>
    %511 = math.exp %510 : vector<8x1xf32>
    %cst_322 = arith.constant 1.000000e+00 : f32
    %512 = vector.broadcast %cst_322 : f32 to vector<8x1xf32>
    %513 = arith.addf %512, %511 : vector<8x1xf32>
    %514 = arith.divf %512, %513 : vector<8x1xf32>
    %cst_323 = arith.constant 1.000000e-07 : f32
    %cst_324 = arith.constant 0.99999988 : f32
    %515 = vector.broadcast %cst_323 : f32 to vector<8x1xf32>
    %516 = arith.maximumf %515, %514 : vector<8x1xf32>
    %517 = vector.broadcast %cst_324 : f32 to vector<8x1xf32>
    %518 = arith.minimumf %517, %516 : vector<8x1xf32>
    %519 = math.log %518 : vector<8x1xf32>
    %520 = arith.mulf %320, %519 : vector<8x1xf32>
    %cst_325 = arith.constant 1.000000e+00 : f32
    %521 = vector.broadcast %cst_325 : f32 to vector<8x1xf32>
    %522 = arith.subf %521, %320 : vector<8x1xf32>
    %cst_326 = arith.constant 1.000000e+00 : f32
    %523 = vector.broadcast %cst_326 : f32 to vector<8x1xf32>
    %524 = arith.subf %523, %518 : vector<8x1xf32>
    %525 = math.log %524 : vector<8x1xf32>
    %526 = arith.mulf %522, %525 : vector<8x1xf32>
    %527 = arith.addf %520, %526 : vector<8x1xf32>
    %cst_327 = arith.constant 0.000000e+00 : f32
    %528 = vector.broadcast %cst_327 : f32 to vector<8x1xf32>
    %529 = arith.subf %528, %527 : vector<8x1xf32>
    %530 = vector.shape_cast %529 : vector<8x1xf32> to vector<1x8x1xf32>
    %cst_328 = arith.constant dense<0.000000e+00> : vector<1xf32>
    %531 = vector.multi_reduction <add>, %530, %cst_328 [1, 2] : vector<1x8x1xf32> to vector<1xf32>
    %532 = vector.shape_cast %531 : vector<1xf32> to vector<1x1x1xf32>
    %533 = vector.extract %532[0, 0, 0] : f32 from vector<1x1x1xf32>
    %534 = vector.broadcast %533 : f32 to vector<1x1xf32>
    %cst_329 = arith.constant 8.000000e+00 : f32
    %535 = vector.broadcast %cst_329 : f32 to vector<1x1xf32>
    %536 = arith.divf %534, %535 : vector<1x1xf32>
    %c0_330 = arith.constant 0 : index
    %c0_331 = arith.constant 0 : index
    %537 = vector.load %arg37[%c0_330, %c0_331] : memref<8x1xf32, #tpu.memory_space<vmem>>, vector<8x1xf32>
    tpu.vector_store %arg37[%c0_330, %c0_331], %370 {strides = array<i32>} : memref<8x1xf32, #tpu.memory_space<vmem>>, vector<8x1xf32>,
    %538 = arith.addf %464, %536 : vector<1x1xf32>
    %cst_332 = arith.constant 5.000000e-01 : f32
    %539 = vector.broadcast %cst_332 : f32 to vector<1x1xf32>
    %540 = arith.mulf %539, %538 : vector<1x1xf32>
    %541 = arith.addf %392, %540 : vector<1x1xf32>
    %c0_333 = arith.constant 0 : index
    %c0_334 = arith.constant 0 : index
    %542 = vector.load %arg38[%c0_333, %c0_334] : memref<1x1xf32, #tpu.memory_space<vmem>>, vector<1x1xf32>
    tpu.vector_store %arg38[%c0_333, %c0_334], %541 {strides = array<i32>} : memref<1x1xf32, #tpu.memory_space<vmem>>, vector<1x1xf32>,
    return
  }
  func.func @transform_0(%arg0: i32, %arg1: memref<8x2xi32, #tpu.memory_space<smem>>) -> (i32, i32) {
    %c0_i32 = arith.constant 0 : i32
    %c0_i32_0 = arith.constant 0 : i32
    %c0_i32_1 = arith.constant 0 : i32
    return %c0_i32, %c0_i32_0 : i32, i32
  }
  func.func @transform_1(%arg0: i32, %arg1: memref<8x2xi32, #tpu.memory_space<smem>>) -> (i32, i32) {
    %c0_i32 = arith.constant 0 : i32
    %c0_i32_0 = arith.constant 0 : i32
    %c0_i32_1 = arith.constant 0 : i32
    return %c0_i32, %c0_i32_0 : i32, i32
  }
  func.func @transform_2(%arg0: i32, %arg1: memref<8x2xi32, #tpu.memory_space<smem>>) -> (i32, i32) {
    %c0_i32 = arith.constant 0 : i32
    %c0_i32_0 = arith.constant 0 : i32
    %c0_i32_1 = arith.constant 0 : i32
    return %c0_i32, %c0_i32_0 : i32, i32
  }
  func.func @transform_3(%arg0: i32, %arg1: memref<8x2xi32, #tpu.memory_space<smem>>) -> (i32, i32) {
    %c0_i32 = arith.constant 0 : i32
    %c0_i32_0 = arith.constant 0 : i32
    %c0_i32_1 = arith.constant 0 : i32
    return %c0_i32, %c0_i32_0 : i32, i32
  }
  func.func @transform_4(%arg0: i32, %arg1: memref<8x2xi32, #tpu.memory_space<smem>>) -> (i32, i32) {
    %c0_i32 = arith.constant 0 : i32
    %c0_i32_0 = arith.constant 0 : i32
    %c0_i32_1 = arith.constant 0 : i32
    return %c0_i32, %c0_i32_0 : i32, i32
  }
  func.func @transform_5(%arg0: i32, %arg1: memref<8x2xi32, #tpu.memory_space<smem>>) -> (i32, i32) {
    %c0_i32 = arith.constant 0 : i32
    %c0_i32_0 = arith.constant 0 : i32
    %c0_i32_1 = arith.constant 0 : i32
    return %c0_i32, %c0_i32_0 : i32, i32
  }
  func.func @transform_6(%arg0: i32, %arg1: memref<8x2xi32, #tpu.memory_space<smem>>) -> (i32, i32) {
    %c0_i32 = arith.constant 0 : i32
    %c0_i32_0 = arith.constant 0 : i32
    %c0_i32_1 = arith.constant 0 : i32
    return %c0_i32, %c0_i32_0 : i32, i32
  }
  func.func @transform_7(%arg0: i32, %arg1: memref<8x2xi32, #tpu.memory_space<smem>>) -> (i32, i32) {
    %c0_i32 = arith.constant 0 : i32
    %c0_i32_0 = arith.constant 0 : i32
    %c0_i32_1 = arith.constant 0 : i32
    return %c0_i32, %c0_i32_0 : i32, i32
  }
  func.func @transform_8(%arg0: i32, %arg1: memref<8x2xi32, #tpu.memory_space<smem>>) -> (i32, i32) {
    %c0_i32 = arith.constant 0 : i32
    %c0_i32_0 = arith.constant 0 : i32
    %c0_i32_1 = arith.constant 0 : i32
    return %c0_i32, %c0_i32_0 : i32, i32
  }
  func.func @transform_9(%arg0: i32, %arg1: memref<8x2xi32, #tpu.memory_space<smem>>) -> (i32, i32) {
    %c0_i32 = arith.constant 0 : i32
    %c0_i32_0 = arith.constant 0 : i32
    %c0_i32_1 = arith.constant 0 : i32
    return %c0_i32, %c0_i32_0 : i32, i32
  }
  func.func @transform_10(%arg0: i32, %arg1: memref<8x2xi32, #tpu.memory_space<smem>>) -> (i32, i32) {
    %c0_i32 = arith.constant 0 : i32
    %c0_i32_0 = arith.constant 0 : i32
    %c0_i32_1 = arith.constant 0 : i32
    return %c0_i32, %c0_i32_0 : i32, i32
  }
  func.func @transform_11(%arg0: i32, %arg1: memref<8x2xi32, #tpu.memory_space<smem>>) -> (i32, i32) {
    %c0_i32 = arith.constant 0 : i32
    %c0_i32_0 = arith.constant 0 : i32
    %c0_i32_1 = arith.constant 0 : i32
    return %c0_i32, %c0_i32_0 : i32, i32
  }
  func.func @transform_12(%arg0: i32, %arg1: memref<8x2xi32, #tpu.memory_space<smem>>) -> (i32, i32) {
    %c0_i32 = arith.constant 0 : i32
    %c0_i32_0 = arith.constant 0 : i32
    %c0_i32_1 = arith.constant 0 : i32
    return %c0_i32, %c0_i32_0 : i32, i32
  }
  func.func @transform_13(%arg0: i32, %arg1: memref<8x2xi32, #tpu.memory_space<smem>>) -> (i32, i32) {
    %c0_i32 = arith.constant 0 : i32
    %c0_i32_0 = arith.constant 0 : i32
    %c0_i32_1 = arith.constant 0 : i32
    return %c0_i32, %c0_i32_0 : i32, i32
  }
  func.func @transform_14(%arg0: i32, %arg1: memref<8x2xi32, #tpu.memory_space<smem>>) -> (i32, i32) {
    %c0_i32 = arith.constant 0 : i32
    %c0_i32_0 = arith.constant 0 : i32
    %c0_i32_1 = arith.constant 0 : i32
    return %c0_i32, %c0_i32_0 : i32, i32
  }
  func.func @transform_15(%arg0: i32, %arg1: memref<8x2xi32, #tpu.memory_space<smem>>) -> (i32, i32) {
    %c0_i32 = arith.constant 0 : i32
    %c0_i32_0 = arith.constant 0 : i32
    %c0_i32_1 = arith.constant 0 : i32
    return %c0_i32, %c0_i32_0 : i32, i32
  }
  func.func @transform_16(%arg0: i32, %arg1: memref<8x2xi32, #tpu.memory_space<smem>>) -> (i32, i32) {
    %c0_i32 = arith.constant 0 : i32
    %c0_i32_0 = arith.constant 0 : i32
    %c0_i32_1 = arith.constant 0 : i32
    return %c0_i32, %c0_i32_0 : i32, i32
  }
  func.func @transform_17(%arg0: i32, %arg1: memref<8x2xi32, #tpu.memory_space<smem>>) -> (i32, i32) {
    %c0_i32 = arith.constant 0 : i32
    %c0_i32_0 = arith.constant 0 : i32
    %c0_i32_1 = arith.constant 0 : i32
    return %c0_i32, %c0_i32_0 : i32, i32
  }
  func.func @transform_18(%arg0: i32, %arg1: memref<8x2xi32, #tpu.memory_space<smem>>) -> (i32, i32) {
    %c0_i32 = arith.constant 0 : i32
    %c0_i32_0 = arith.constant 0 : i32
    %c0_i32_1 = arith.constant 0 : i32
    return %c0_i32, %c0_i32_0 : i32, i32
  }
  func.func @transform_19(%arg0: i32, %arg1: memref<8x2xi32, #tpu.memory_space<smem>>) -> (i32, i32) {
    %c0_i32 = arith.constant 0 : i32
    %c0_i32_0 = arith.constant 0 : i32
    %c0_i32_1 = arith.constant 0 : i32
    return %c0_i32, %c0_i32_0 : i32, i32
  }
  func.func @transform_20(%arg0: i32, %arg1: memref<8x2xi32, #tpu.memory_space<smem>>) -> (i32, i32) {
    %c0_i32 = arith.constant 0 : i32
    %c0_i32_0 = arith.constant 0 : i32
    %c0_i32_1 = arith.constant 0 : i32
    return %c0_i32, %c0_i32_0 : i32, i32
  }
  func.func @transform_21(%arg0: i32, %arg1: memref<8x2xi32, #tpu.memory_space<smem>>) -> (i32, i32) {
    %c0_i32 = arith.constant 0 : i32
    %c0_i32_0 = arith.constant 0 : i32
    %c0_i32_1 = arith.constant 0 : i32
    return %c0_i32, %c0_i32_0 : i32, i32
  }
  func.func @transform_22(%arg0: i32, %arg1: memref<8x2xi32, #tpu.memory_space<smem>>) -> (i32, i32) {
    %c0_i32 = arith.constant 0 : i32
    %c0_i32_0 = arith.constant 0 : i32
    %c0_i32_1 = arith.constant 0 : i32
    return %c0_i32, %c0_i32_0 : i32, i32
  }
  func.func @transform_23(%arg0: i32, %arg1: memref<8x2xi32, #tpu.memory_space<smem>>) -> (i32, i32) {
    %c0_i32 = arith.constant 0 : i32
    %c0_i32_0 = arith.constant 0 : i32
    %c0_i32_1 = arith.constant 0 : i32
    return %c0_i32, %c0_i32_0 : i32, i32
  }
  func.func @transform_24(%arg0: i32, %arg1: memref<8x2xi32, #tpu.memory_space<smem>>) -> (i32, i32) {
    %c0_i32 = arith.constant 0 : i32
    %c0_i32_0 = arith.constant 0 : i32
    %c0_i32_1 = arith.constant 0 : i32
    return %c0_i32, %c0_i32_0 : i32, i32
  }
  func.func @transform_25(%arg0: i32, %arg1: memref<8x2xi32, #tpu.memory_space<smem>>) -> (i32, i32) {
    %c0_i32 = arith.constant 0 : i32
    %c0_i32_0 = arith.constant 0 : i32
    %c0_i32_1 = arith.constant 0 : i32
    return %c0_i32, %c0_i32_0 : i32, i32
  }
  func.func @transform_26(%arg0: i32, %arg1: memref<8x2xi32, #tpu.memory_space<smem>>) -> (i32, i32) {
    %c0_i32 = arith.constant 0 : i32
    %c0_i32_0 = arith.constant 0 : i32
    %c0_i32_1 = arith.constant 0 : i32
    return %c0_i32, %c0_i32_0 : i32, i32
  }
  func.func @transform_27(%arg0: i32, %arg1: memref<8x2xi32, #tpu.memory_space<smem>>) -> (i32, i32, i32) {
    %c0_i32 = arith.constant 0 : i32
    %c0_i32_0 = arith.constant 0 : i32
    %c0_i32_1 = arith.constant 0 : i32
    %c0_i32_2 = arith.constant 0 : i32
    return %c0_i32, %c0_i32_0, %c0_i32_1 : i32, i32, i32
  }
  func.func @transform_28(%arg0: i32, %arg1: memref<8x2xi32, #tpu.memory_space<smem>>) -> (i32, i32, i32) {
    %c0_i32 = arith.constant 0 : i32
    %c0_i32_0 = arith.constant 0 : i32
    %c0_i32_1 = arith.constant 0 : i32
    %c0_i32_2 = arith.constant 0 : i32
    return %c0_i32, %c0_i32_0, %c0_i32_1 : i32, i32, i32
  }
  func.func @transform_29(%arg0: i32, %arg1: memref<8x2xi32, #tpu.memory_space<smem>>) -> (i32, i32, i32) {
    %c0_i32 = arith.constant 0 : i32
    %c0_i32_0 = arith.constant 0 : i32
    %c0_i32_1 = arith.constant 0 : i32
    %c0_i32_2 = arith.constant 0 : i32
    return %c0_i32, %c0_i32_0, %c0_i32_1 : i32, i32, i32
  }
  func.func @transform_30(%arg0: i32, %arg1: memref<8x2xi32, #tpu.memory_space<smem>>) -> (i32, i32, i32) {
    %c0_i32 = arith.constant 0 : i32
    %c0_i32_0 = arith.constant 0 : i32
    %c0_i32_1 = arith.constant 0 : i32
    %c0_i32_2 = arith.constant 0 : i32
    return %c0_i32, %c0_i32_0, %c0_i32_1 : i32, i32, i32
  }
  func.func @transform_31(%arg0: i32, %arg1: memref<8x2xi32, #tpu.memory_space<smem>>) -> (i32, i32, i32) {
    %c0_i32 = arith.constant 0 : i32
    %c0_i32_0 = arith.constant 0 : i32
    %c0_i32_1 = arith.constant 0 : i32
    %c0_i32_2 = arith.constant 0 : i32
    return %c0_i32, %c0_i32_0, %c0_i32_1 : i32, i32, i32
  }
  func.func @transform_32(%arg0: i32, %arg1: memref<8x2xi32, #tpu.memory_space<smem>>) -> (i32, i32, i32) {
    %c0_i32 = arith.constant 0 : i32
    %c0_i32_0 = arith.constant 0 : i32
    %c0_i32_1 = arith.constant 0 : i32
    %c0_i32_2 = arith.constant 0 : i32
    return %c0_i32, %c0_i32_0, %c0_i32_1 : i32, i32, i32
  }
  func.func @transform_33(%arg0: i32, %arg1: memref<8x2xi32, #tpu.memory_space<smem>>) -> (i32, i32) {
    %c0_i32 = arith.constant 0 : i32
    %c0_i32_0 = arith.constant 0 : i32
    %c0_i32_1 = arith.constant 0 : i32
    return %c0_i32, %c0_i32_0 : i32, i32
  }
  func.func @transform_34(%arg0: i32, %arg1: memref<8x2xi32, #tpu.memory_space<smem>>) -> (i32, i32) {
    %c0_i32 = arith.constant 0 : i32
    %c0_i32_0 = arith.constant 0 : i32
    %c0_i32_1 = arith.constant 0 : i32
    return %c0_i32, %c0_i32_0 : i32, i32
  }
  func.func @transform_35(%arg0: i32, %arg1: memref<8x2xi32, #tpu.memory_space<smem>>) -> (i32, i32) {
    %c0_i32 = arith.constant 0 : i32
    %c0_i32_0 = arith.constant 0 : i32
    %c0_i32_1 = arith.constant 0 : i32
    return %c0_i32, %c0_i32_0 : i32, i32
  }
  func.func @transform_36(%arg0: i32, %arg1: memref<8x2xi32, #tpu.memory_space<smem>>) -> (i32, i32) {
    %c0_i32 = arith.constant 0 : i32
    %c0_i32_0 = arith.constant 0 : i32
    %c0_i32_1 = arith.constant 0 : i32
    return %c0_i32, %c0_i32_0 : i32, i32
  }
}

</mosaic_0001>

<llo_original>
// kernel: ccgnn_forward.1
$region0: #{ccgnn_forward.1}
  #allocation0 [shape = 'u32[]', space=smem, size = 0x4, offset = 0x4, fixed_abs, tag = 'smem constant byte address 0x4 - core index']
  #allocation1 [shape = 'u32[144,128]{1,0:T(1,128)}', space=vmem, size = 0x12000, scoped, tag = 'internal scratch']
  #allocation2 [shape = 'f32[16,32]{1,0:T(8,128)}', space=vmem, size = 0x2000, scoped, tag = 'scratch operand']
  #allocation3 [shape = 'f32[16,32]{1,0:T(8,128)}', space=vmem, size = 0x2000, scoped, tag = 'scratch operand']
  #allocation4 [shape = 's32[1]{0}', space=sflag, size = 0x4, scoped, tag = 'scoped memory for ccgnn_forward.1']
  #allocation5 [shape = 'u8[4096]{0}', space=smem, size = 0x1000, scoped, tag = 'prefetched SMEM operand 0']
  %s0 = inlined_call_operand.smem [shape: u32[38], index: -1, kind: input, shape index: {}]
  %s1 = sld [smem:[%s0]]
  %s2 = scalar_lea.smem %s0, 1
  %s3 = sld [smem:[%s2]]
  %s4 = scalar_lea.smem %s0, 2
  %s5 = sld [smem:[%s4]]
  %s6 = scalar_lea.smem %s0, 3
  %s7 = sld [smem:[%s6]]
  %s8 = scalar_lea.smem %s0, 4
  %s9 = sld [smem:[%s8]]
  %s10 = scalar_lea.smem %s0, 5
  %s11 = sld [smem:[%s10]]
  %s12 = scalar_lea.smem %s0, 6
  %s13 = sld [smem:[%s12]]
  %s14 = scalar_lea.smem %s0, 7
  %s15 = sld [smem:[%s14]]
  %s16 = scalar_lea.smem %s0, 8
  %s17 = sld [smem:[%s16]]
  %s18 = scalar_lea.smem %s0, 9
  %s19 = sld [smem:[%s18]]
  %s20 = scalar_lea.smem %s0, 10
  %s21 = sld [smem:[%s20]]
  %s22 = scalar_lea.smem %s0, 11
  %s23 = sld [smem:[%s22]]
  %s24 = scalar_lea.smem %s0, 12
  %s25 = sld [smem:[%s24]]
  %s26 = scalar_lea.smem %s0, 13
  %s27 = sld [smem:[%s26]]
  %s28 = scalar_lea.smem %s0, 14
  %s29 = sld [smem:[%s28]]
  %s30 = scalar_lea.smem %s0, 15
  %s31 = sld [smem:[%s30]]
  %s32 = scalar_lea.smem %s0, 16
  %s33 = sld [smem:[%s32]]
  %s34 = scalar_lea.smem %s0, 17
  %s35 = sld [smem:[%s34]]
  %s36 = scalar_lea.smem %s0, 18
  %s37 = sld [smem:[%s36]]
  %s38 = scalar_lea.smem %s0, 19
  %s39 = sld [smem:[%s38]]
  %s40 = scalar_lea.smem %s0, 20
  %s41 = sld [smem:[%s40]]
  %s42 = scalar_lea.smem %s0, 21
  %s43 = sld [smem:[%s42]]
  %s44 = scalar_lea.smem %s0, 22
  %s45 = sld [smem:[%s44]]
  %s46 = scalar_lea.smem %s0, 23
  %s47 = sld [smem:[%s46]]
  %s48 = scalar_lea.smem %s0, 24
  %s49 = sld [smem:[%s48]]
  %s50 = scalar_lea.smem %s0, 25
  %s51 = sld [smem:[%s50]]
  %s52 = scalar_lea.smem %s0, 26
  %s53 = sld [smem:[%s52]]
  %s54 = scalar_lea.smem %s0, 27
  %s55 = sld [smem:[%s54]]
  %s56 = scalar_lea.smem %s0, 28
  %s57 = sld [smem:[%s56]]
  %s58 = scalar_lea.smem %s0, 29
  %s59 = sld [smem:[%s58]]
  %s60 = scalar_lea.smem %s0, 30
  %s61 = sld [smem:[%s60]]
  %s62 = scalar_lea.smem %s0, 31
  %s63 = sld [smem:[%s62]]
  %s64 = scalar_lea.smem %s0, 32
  %s65 = sld [smem:[%s64]]
  %s66 = scalar_lea.smem %s0, 33
  %s67 = sld [smem:[%s66]]
  %s68 = scalar_lea.smem %s0, 34
  %s69 = sld [smem:[%s68]]
  %s70 = scalar_lea.smem %s0, 35
  %s71 = sld [smem:[%s70]]
  %s72 = scalar_lea.smem %s0, 36
  %s73 = sld [smem:[%s72]]
  %s74 = scalar_lea.smem %s0, 37
  %s75 = sld [smem:[%s74]]
  %76 = xla_tuple %s71, %s73, %s75
  %s77 = sld [smem:[#allocation0]]
  $region162: #{ccgnn_forward.1} parent=0
    _
  %s79 = ssub.s32 1, %s77
  %s80 = scalar_select 0, %s79, %s77
  %s81 = sshll.u32 %s1, 4
  %s82 = int_to_ptr.vmem [resolvable:$true] %s81
  %84 = dma.vmem_to_smem %s82, 128, [#allocation5], [#allocation4]
  %85 = dma.done [#allocation4], 128
  %86 = sfence
  $region1: #{ccgnn_forward.1} parent=0
    #allocation6 [shape = 'u8[512]{0}', space=vmem, size = 0x400, scoped, tag = 'output window, operand 2, single buffered']
    #allocation7 [shape = 's32[1]{0}', space=sflag, size = 0x4, scoped, tag = 'scoped memory for ccgnn_forward.1']
    %87 = vsyncpa [#allocation7], 0
    // Predicated region
    $region2: #{ccgnn_forward.1} parent=1 // pred_check
      _
    $region3: #{ccgnn_forward.1} parent=1 // pred_check_branch
      %89 = sbr.rel (0) target = $region5
    $region4: #{ccgnn_forward.1} parent=1 // pred_region
      _
    $region5: #{ccgnn_forward.1} parent=1 // pred_fallthru
      _
    // Predicated region
    $region6: #{ccgnn_forward.1} parent=1 // pred_check
      _
    $region7: #{ccgnn_forward.1} parent=1 // pred_check_branch
      %91 = sbr.rel (0) target = $region9
    $region8: #{ccgnn_forward.1} parent=1 // pred_region
      _
    $region9: #{ccgnn_forward.1} parent=1 // pred_fallthru
      _
    // Predicated region
    $region10: #{ccgnn_forward.1} parent=1 // pred_check
      _
    $region11: #{ccgnn_forward.1} parent=1 // pred_check_branch
      %93 = sbr.rel (0) target = $region13
    $region12: #{ccgnn_forward.1} parent=1 // pred_region
      _
    $region13: #{ccgnn_forward.1} parent=1 // pred_fallthru
      _
    // Predicated region
    $region14: #{ccgnn_forward.1} parent=1 // pred_check
      _
    $region15: #{ccgnn_forward.1} parent=1 // pred_check_branch
      %95 = sbr.rel (0) target = $region17
    $region16: #{ccgnn_forward.1} parent=1 // pred_region
      _
    $region17: #{ccgnn_forward.1} parent=1 // pred_fallthru
      _
    // Predicated region
    $region18: #{ccgnn_forward.1} parent=1 // pred_check
      _
    $region19: #{ccgnn_forward.1} parent=1 // pred_check_branch
      %97 = sbr.rel (0) target = $region21
    $region20: #{ccgnn_forward.1} parent=1 // pred_region
      _
    $region21: #{ccgnn_forward.1} parent=1 // pred_fallthru
      _
    // Predicated region
    $region22: #{ccgnn_forward.1} parent=1 // pred_check
      _
    $region23: #{ccgnn_forward.1} parent=1 // pred_check_branch
      %99 = sbr.rel (0) target = $region25
    $region24: #{ccgnn_forward.1} parent=1 // pred_region
      _
    $region25: #{ccgnn_forward.1} parent=1 // pred_fallthru
      _
    // Predicated region
    $region26: #{ccgnn_forward.1} parent=1 // pred_check
      _
    $region27: #{ccgnn_forward.1} parent=1 // pred_check_branch
      %101 = sbr.rel (0) target = $region29
    $region28: #{ccgnn_forward.1} parent=1 // pred_region
      _
    $region29: #{ccgnn_forward.1} parent=1 // pred_fallthru
      _
    // Predicated region
    $region30: #{ccgnn_forward.1} parent=1 // pred_check
      _
    $region31: #{ccgnn_forward.1} parent=1 // pred_check_branch
      %103 = sbr.rel (0) target = $region33
    $region32: #{ccgnn_forward.1} parent=1 // pred_region
      _
    $region33: #{ccgnn_forward.1} parent=1 // pred_fallthru
      _
    // Predicated region
    $region34: #{ccgnn_forward.1} parent=1 // pred_check
      _
    $region35: #{ccgnn_forward.1} parent=1 // pred_check_branch
      %105 = sbr.rel (0) target = $region37
    $region36: #{ccgnn_forward.1} parent=1 // pred_region
      _
    $region37: #{ccgnn_forward.1} parent=1 // pred_fallthru
      _
    // Predicated region
    $region38: #{ccgnn_forward.1} parent=1 // pred_check
      _
    $region39: #{ccgnn_forward.1} parent=1 // pred_check_branch
      %107 = sbr.rel (0) target = $region41
    $region40: #{ccgnn_forward.1} parent=1 // pred_region
      _
    $region41: #{ccgnn_forward.1} parent=1 // pred_fallthru
      _
    // Predicated region
    $region42: #{ccgnn_forward.1} parent=1 // pred_check
      _
    $region43: #{ccgnn_forward.1} parent=1 // pred_check_branch
      %109 = sbr.rel (0) target = $region45
    $region44: #{ccgnn_forward.1} parent=1 // pred_region
      _
    $region45: #{ccgnn_forward.1} parent=1 // pred_fallthru
      _
    // Predicated region
    $region46: #{ccgnn_forward.1} parent=1 // pred_check
      _
    $region47: #{ccgnn_forward.1} parent=1 // pred_check_branch
      %111 = sbr.rel (0) target = $region49
    $region48: #{ccgnn_forward.1} parent=1 // pred_region
      _
    $region49: #{ccgnn_forward.1} parent=1 // pred_fallthru
      _
    // Predicated region
    $region50: #{ccgnn_forward.1} parent=1 // pred_check
      _
    $region51: #{ccgnn_forward.1} parent=1 // pred_check_branch
      %113 = sbr.rel (0) target = $region53
    $region52: #{ccgnn_forward.1} parent=1 // pred_region
      _
    $region53: #{ccgnn_forward.1} parent=1 // pred_fallthru
      _
    // Predicated region
    $region54: #{ccgnn_forward.1} parent=1 // pred_check
      _
    $region55: #{ccgnn_forward.1} parent=1 // pred_check_branch
      %115 = sbr.rel (0) target = $region57
    $region56: #{ccgnn_forward.1} parent=1 // pred_region
      _
    $region57: #{ccgnn_forward.1} parent=1 // pred_fallthru
      _
    // Predicated region
    $region58: #{ccgnn_forward.1} parent=1 // pred_check
      _
    $region59: #{ccgnn_forward.1} parent=1 // pred_check_branch
      %117 = sbr.rel (0) target = $region61
    $region60: #{ccgnn_forward.1} parent=1 // pred_region
      _
    $region61: #{ccgnn_forward.1} parent=1 // pred_fallthru
      _
    // Predicated region
    $region62: #{ccgnn_forward.1} parent=1 // pred_check
      _
    $region63: #{ccgnn_forward.1} parent=1 // pred_check_branch
      %119 = sbr.rel (0) target = $region65
    $region64: #{ccgnn_forward.1} parent=1 // pred_region
      _
    $region65: #{ccgnn_forward.1} parent=1 // pred_fallthru
      _
    // Predicated region
    $region66: #{ccgnn_forward.1} parent=1 // pred_check
      _
    $region67: #{ccgnn_forward.1} parent=1 // pred_check_branch
      %121 = sbr.rel (0) target = $region69
    $region68: #{ccgnn_forward.1} parent=1 // pred_region
      _
    $region69: #{ccgnn_forward.1} parent=1 // pred_fallthru
      _
    // Predicated region
    $region70: #{ccgnn_forward.1} parent=1 // pred_check
      _
    $region71: #{ccgnn_forward.1} parent=1 // pred_check_branch
      %123 = sbr.rel (0) target = $region73
    $region72: #{ccgnn_forward.1} parent=1 // pred_region
      _
    $region73: #{ccgnn_forward.1} parent=1 // pred_fallthru
      _
    // Predicated region
    $region74: #{ccgnn_forward.1} parent=1 // pred_check
      _
    $region75: #{ccgnn_forward.1} parent=1 // pred_check_branch
      %125 = sbr.rel (0) target = $region77
    $region76: #{ccgnn_forward.1} parent=1 // pred_region
      _
    $region77: #{ccgnn_forward.1} parent=1 // pred_fallthru
      _
    // Predicated region
    $region78: #{ccgnn_forward.1} parent=1 // pred_check
      _
    $region79: #{ccgnn_forward.1} parent=1 // pred_check_branch
      %127 = sbr.rel (0) target = $region81
    $region80: #{ccgnn_forward.1} parent=1 // pred_region
      _
    $region81: #{ccgnn_forward.1} parent=1 // pred_fallthru
      _
    // Predicated region
    $region82: #{ccgnn_forward.1} parent=1 // pred_check
      _
    $region83: #{ccgnn_forward.1} parent=1 // pred_check_branch
      %129 = sbr.rel (0) target = $region85
    $region84: #{ccgnn_forward.1} parent=1 // pred_region
      _
    $region85: #{ccgnn_forward.1} parent=1 // pred_fallthru
      _
    // Predicated region
    $region86: #{ccgnn_forward.1} parent=1 // pred_check
      _
    $region87: #{ccgnn_forward.1} parent=1 // pred_check_branch
      %131 = sbr.rel (0) target = $region89
    $region88: #{ccgnn_forward.1} parent=1 // pred_region
      _
    $region89: #{ccgnn_forward.1} parent=1 // pred_fallthru
      _
    // Predicated region
    $region90: #{ccgnn_forward.1} parent=1 // pred_check
      _
    $region91: #{ccgnn_forward.1} parent=1 // pred_check_branch
      %133 = sbr.rel (0) target = $region93
    $region92: #{ccgnn_forward.1} parent=1 // pred_region
      _
    $region93: #{ccgnn_forward.1} parent=1 // pred_fallthru
      _
    // Predicated region
    $region94: #{ccgnn_forward.1} parent=1 // pred_check
      _
    $region95: #{ccgnn_forward.1} parent=1 // pred_check_branch
      %135 = sbr.rel (0) target = $region97
    $region96: #{ccgnn_forward.1} parent=1 // pred_region
      _
    $region97: #{ccgnn_forward.1} parent=1 // pred_fallthru
      _
    // Predicated region
    $region98: #{ccgnn_forward.1} parent=1 // pred_check
      _
    $region99: #{ccgnn_forward.1} parent=1 // pred_check_branch
      %137 = sbr.rel (0) target = $region101
    $region100: #{ccgnn_forward.1} parent=1 // pred_region
      _
    $region101: #{ccgnn_forward.1} parent=1 // pred_fallthru
      _
    // Predicated region
    $region102: #{ccgnn_forward.1} parent=1 // pred_check
      _
    $region103: #{ccgnn_forward.1} parent=1 // pred_check_branch
      %139 = sbr.rel (0) target = $region105
    $region104: #{ccgnn_forward.1} parent=1 // pred_region
      _
    $region105: #{ccgnn_forward.1} parent=1 // pred_fallthru
      _
    // Predicated region
    $region106: #{ccgnn_forward.1} parent=1 // pred_check
      _
    $region107: #{ccgnn_forward.1} parent=1 // pred_check_branch
      %141 = sbr.rel (0) target = $region109
    $region108: #{ccgnn_forward.1} parent=1 // pred_region
      _
    $region109: #{ccgnn_forward.1} parent=1 // pred_fallthru
      _
    // Predicated region
    $region110: #{ccgnn_forward.1} parent=1 // pred_check
      _
    $region111: #{ccgnn_forward.1} parent=1 // pred_check_branch
      %143 = sbr.rel (0) target = $region113
    $region112: #{ccgnn_forward.1} parent=1 // pred_region
      _
    $region113: #{ccgnn_forward.1} parent=1 // pred_fallthru
      _
    // Predicated region
    $region114: #{ccgnn_forward.1} parent=1 // pred_check
      _
    $region115: #{ccgnn_forward.1} parent=1 // pred_check_branch
      %145 = sbr.rel (0) target = $region117
    $region116: #{ccgnn_forward.1} parent=1 // pred_region
      _
    $region117: #{ccgnn_forward.1} parent=1 // pred_fallthru
      _
    // Predicated region
    $region118: #{ccgnn_forward.1} parent=1 // pred_check
      _
    $region119: #{ccgnn_forward.1} parent=1 // pred_check_branch
      %147 = sbr.rel (0) target = $region121
    $region120: #{ccgnn_forward.1} parent=1 // pred_region
      _
    $region121: #{ccgnn_forward.1} parent=1 // pred_fallthru
      _
    // Predicated region
    $region122: #{ccgnn_forward.1} parent=1 // pred_check
      _
    $region123: #{ccgnn_forward.1} parent=1 // pred_check_branch
      %149 = sbr.rel (0) target = $region125
    $region124: #{ccgnn_forward.1} parent=1 // pred_region
      _
    $region125: #{ccgnn_forward.1} parent=1 // pred_fallthru
      _
    // Predicated region
    $region126: #{ccgnn_forward.1} parent=1 // pred_check
      _
    $region127: #{ccgnn_forward.1} parent=1 // pred_check_branch
      %151 = sbr.rel (0) target = $region129
    $region128: #{ccgnn_forward.1} parent=1 // pred_region
      _
    $region129: #{ccgnn_forward.1} parent=1 // pred_fallthru
      _
    // Predicated region
    $region130: #{ccgnn_forward.1} parent=1 // pred_check
      _
    $region131: #{ccgnn_forward.1} parent=1 // pred_check_branch
      %153 = sbr.rel (0) target = $region133
    $region132: #{ccgnn_forward.1} parent=1 // pred_region
      _
    $region133: #{ccgnn_forward.1} parent=1 // pred_fallthru
      _
    // Predicated region
    $region134: #{ccgnn_forward.1} parent=1 // pred_check
      _
    $region135: #{ccgnn_forward.1} parent=1 // pred_check_branch
      %155 = sbr.rel (0) target = $region137
    $region136: #{ccgnn_forward.1} parent=1 // pred_region
      _
    $region137: #{ccgnn_forward.1} parent=1 // pred_fallthru
      _
    %v156 = vld [vmem:[%s3] sm:$0xff]
    %v157 = vld [vmem:[%s5] sm:$0xff]
    %v158 = vld [vmem:[%s13] sm:$0xff]
    %v159 = vld [vmem:[%s13 + $0x8] sm:$0xff]
    %v160 = vld [vmem:[%s15] sm:$0x1]
    %v162 = vlaneseq
    %v163 = vshrl.u32 %v162, 7
    %v164 = vsub.s32 0, %v163
    %v165 = vrot.slane %v160, %v164
    %vm167 = vcmask 130048
    %v169 = vsel %vm167, %v156, 0
    %171 = vmatprep.subr.mxu0 0.0
    %172 = vmatpush1.msra.mxu0 0.0
    %173 = vmatprep.subr.mxu0 0.0
    %174 = vmatpush1.msra.mxu0 0.0
    %175 = vmatprep.subr.mxu0 0.0
    %176 = vmatpush1.msra.mxu0 0.0
    %177 = vmatprep.subr.mxu0 0.0
    %178 = vmatpush1.msra.mxu0 0.0
    %179 = vmatprep.subr.mxu0 0.0
    %180 = vmatpush1.msra.mxu0 0.0
    %181 = vmatprep.subr.mxu0 0.0
    %182 = vmatpush1.msra.mxu0 0.0
    %183 = vmatprep.subr.mxu0 0.0
    %184 = vmatpush1.msra.mxu0 0.0
    %185 = vmatprep.subr.mxu0 0.0
    %186 = vmatpush1.msra.mxu0 0.0
    %187 = vmatprep.subr.mxu0 0.0
    %188 = vmatpush1.msra.mxu0 0.0
    %189 = vmatprep.subr.mxu0 0.0
    %190 = vmatpush1.msra.mxu0 0.0
    %191 = vmatprep.subr.mxu0 0.0
    %192 = vmatpush1.msra.mxu0 0.0
    %193 = vmatprep.subr.mxu0 0.0
    %194 = vmatpush1.msra.mxu0 0.0
    %195 = vmatprep.subr.mxu0 0.0
    %196 = vmatpush1.msra.mxu0 0.0
    %197 = vmatprep.subr.mxu0 0.0
    %198 = vmatpush1.msra.mxu0 0.0
    %199 = vmatprep.subr.mxu0 0.0
    %200 = vmatpush1.msra.mxu0 %v159
    %201 = vmatprep.subr.mxu0 0.0
    %202 = vmatpush1.msra.mxu0 %v158
    %203 = vmatprep.subr.mxu0 0.0
    %204 = vmatpush2.msra.mxu0 0.0
    %205 = vmatprep.subr.mxu0 0.0
    %206 = vmatpush2.msra.mxu0 0.0
    %207 = vmatprep.subr.mxu0 0.0
    %208 = vmatpush2.msra.mxu0 0.0
    %209 = vmatprep.subr.mxu0 0.0
    %210 = vmatpush2.msra.mxu0 0.0
    %211 = vmatprep.subr.mxu0 0.0
    %212 = vmatpush2.msra.mxu0 0.0
    %213 = vmatprep.subr.mxu0 0.0
    %214 = vmatpush2.msra.mxu0 0.0
    %215 = vmatprep.subr.mxu0 0.0
    %216 = vmatpush2.msra.mxu0 0.0
    %217 = vmatprep.subr.mxu0 0.0
    %218 = vmatpush2.msra.mxu0 0.0
    %219 = vmatprep.subr.mxu0 0.0
    %220 = vmatpush2.msra.mxu0 0.0
    %221 = vmatprep.subr.mxu0 0.0
    %222 = vmatpush2.msra.mxu0 0.0
    %223 = vmatprep.subr.mxu0 0.0
    %224 = vmatpush2.msra.mxu0 0.0
    %225 = vmatprep.subr.mxu0 0.0
    %226 = vmatpush2.msra.mxu0 0.0
    %227 = vmatprep.subr.mxu0 0.0
    %228 = vmatpush2.msra.mxu0 0.0
    %229 = vmatprep.subr.mxu0 0.0
    %230 = vmatpush2.msra.mxu0 0.0
    %231 = vmatprep.subr.mxu0 0.0
    %232 = vmatpush2.msra.mxu0 0.0
    %233 = vmatprep.subr.mxu0 0.0
    %234 = vmatpush2.msra.mxu0 0.0
    %235 = vmatprep.mubr.f32.mxu0 0.0
    %236 = vmatmul.mubr.f32.gmra.mxu0 %v169
    %v237 = vpop.f32.mrf.mxu0
    %v238 = vadd.f32 %v165, %v237
    %v239 = vpop.f32.mrf.mxu0
    %240 = vdwg.mxu0
    %v241 = vld [vmem:[%s17] sm:$0xff]
    %v242 = vld [vmem:[%s17 + $0x8] sm:$0xff]
    %v243 = vld [vmem:[%s19] sm:$0x1]
    %v245 = vlaneseq
    %v246 = vshrl.u32 %v245, 7
    %v247 = vsub.s32 0, %v246
    %v248 = vrot.slane %v243, %v247
    %v251 = vsel %vm167, %v157, 0
    %253 = vmatprep.subr.mxu0 0.0
    %254 = vmatpush1.msra.mxu0 0.0
    %255 = vmatprep.subr.mxu0 0.0
    %256 = vmatpush1.msra.mxu0 0.0
    %257 = vmatprep.subr.mxu0 0.0
    %258 = vmatpush1.msra.mxu0 0.0
    %259 = vmatprep.subr.mxu0 0.0
    %260 = vmatpush1.msra.mxu0 0.0
    %261 = vmatprep.subr.mxu0 0.0
    %262 = vmatpush1.msra.mxu0 0.0
    %263 = vmatprep.subr.mxu0 0.0
    %264 = vmatpush1.msra.mxu0 0.0
    %265 = vmatprep.subr.mxu0 0.0
    %266 = vmatpush1.msra.mxu0 0.0
    %267 = vmatprep.subr.mxu0 0.0
    %268 = vmatpush1.msra.mxu0 0.0
    %269 = vmatprep.subr.mxu0 0.0
    %270 = vmatpush1.msra.mxu0 0.0
    %271 = vmatprep.subr.mxu0 0.0
    %272 = vmatpush1.msra.mxu0 0.0
    %273 = vmatprep.subr.mxu0 0.0
    %274 = vmatpush1.msra.mxu0 0.0
    %275 = vmatprep.subr.mxu0 0.0
    %276 = vmatpush1.msra.mxu0 0.0
    %277 = vmatprep.subr.mxu0 0.0
    %278 = vmatpush1.msra.mxu0 0.0
    %279 = vmatprep.subr.mxu0 0.0
    %280 = vmatpush1.msra.mxu0 0.0
    %281 = vmatprep.subr.mxu0 0.0
    %282 = vmatpush1.msra.mxu0 %v242
    %283 = vmatprep.subr.mxu0 0.0
    %284 = vmatpush1.msra.mxu0 %v241
    %285 = vmatprep.subr.mxu0 0.0
    %286 = vmatpush2.msra.mxu0 0.0
    %287 = vmatprep.subr.mxu0 0.0
    %288 = vmatpush2.msra.mxu0 0.0
    %289 = vmatprep.subr.mxu0 0.0
    %290 = vmatpush2.msra.mxu0 0.0
    %291 = vmatprep.subr.mxu0 0.0
    %292 = vmatpush2.msra.mxu0 0.0
    %293 = vmatprep.subr.mxu0 0.0
    %294 = vmatpush2.msra.mxu0 0.0
    %295 = vmatprep.subr.mxu0 0.0
    %296 = vmatpush2.msra.mxu0 0.0
    %297 = vmatprep.subr.mxu0 0.0
    %298 = vmatpush2.msra.mxu0 0.0
    %299 = vmatprep.subr.mxu0 0.0
    %300 = vmatpush2.msra.mxu0 0.0
    %301 = vmatprep.subr.mxu0 0.0
    %302 = vmatpush2.msra.mxu0 0.0
    %303 = vmatprep.subr.mxu0 0.0
    %304 = vmatpush2.msra.mxu0 0.0
    %305 = vmatprep.subr.mxu0 0.0
    %306 = vmatpush2.msra.mxu0 0.0
    %307 = vmatprep.subr.mxu0 0.0
    %308 = vmatpush2.msra.mxu0 0.0
    %309 = vmatprep.subr.mxu0 0.0
    %310 = vmatpush2.msra.mxu0 0.0
    %311 = vmatprep.subr.mxu0 0.0
    %312 = vmatpush2.msra.mxu0 0.0
    %313 = vmatprep.subr.mxu0 0.0
    %314 = vmatpush2.msra.mxu0 0.0
    %315 = vmatprep.subr.mxu0 0.0
    %316 = vmatpush2.msra.mxu0 0.0
    %317 = vmatprep.mubr.f32.mxu0 0.0
    %318 = vmatmul.mubr.f32.gmra.mxu0 %v251
    %v319 = vpop.f32.mrf.mxu0
    %v320 = vadd.f32 %v248, %v319
    %v321 = vpop.f32.mrf.mxu0
    %322 = vdwg.mxu0
    %324 = vrot.lane.b32.xlu0 %v238, 96
    %v325 = vpop.permute.xlu0 %324
    %vm327 = vcmask 261120
    %328 = vst.msk [vmem:[#allocation2] sm:$0xff] %vm327, %v325
    %329 = vst.msk [vmem:[#allocation2 + $0x8] sm:$0xff] %vm327, %v320
    %v330 = vld [vmem:[#allocation2] sm:$0xff]
    %v331 = vld [vmem:[#allocation2 + $0x8] sm:$0xff]
    %v332 = vld [vmem:[%s7] sm:$0xff]
    %v333 = vld [vmem:[%s21] sm:$0xff]
    %v334 = vld [vmem:[%s21 + $0x8] sm:$0xff]
    %v335 = vld [vmem:[%s21 + $0x10] sm:$0xff]
    %v336 = vld [vmem:[%s21 + $0x18] sm:$0xff]
    %v337 = vsel %vm327, %v238, 0
    %339 = vmatprep.subr.mxu0 0.0
    %340 = vmatpush1.msra.mxu0 0.0
    %341 = vmatprep.subr.mxu0 0.0
    %342 = vmatpush1.msra.mxu0 0.0
    %343 = vmatprep.subr.mxu0 0.0
    %344 = vmatpush1.msra.mxu0 0.0
    %345 = vmatprep.subr.mxu0 0.0
    %346 = vmatpush1.msra.mxu0 0.0
    %347 = vmatprep.subr.mxu0 0.0
    %348 = vmatpush1.msra.mxu0 0.0
    %349 = vmatprep.subr.mxu0 0.0
    %350 = vmatpush1.msra.mxu0 0.0
    %351 = vmatprep.subr.mxu0 0.0
    %352 = vmatpush1.msra.mxu0 0.0
    %353 = vmatprep.subr.mxu0 0.0
    %354 = vmatpush1.msra.mxu0 0.0
    %355 = vmatprep.subr.mxu0 0.0
    %356 = vmatpush1.msra.mxu0 0.0
    %357 = vmatprep.subr.mxu0 0.0
    %358 = vmatpush1.msra.mxu0 0.0
    %359 = vmatprep.subr.mxu0 0.0
    %360 = vmatpush1.msra.mxu0 0.0
    %361 = vmatprep.subr.mxu0 0.0
    %362 = vmatpush1.msra.mxu0 0.0
    %363 = vmatprep.subr.mxu0 0.0
    %364 = vmatpush1.msra.mxu0 %v336
    %365 = vmatprep.subr.mxu0 0.0
    %366 = vmatpush1.msra.mxu0 %v335
    %367 = vmatprep.subr.mxu0 0.0
    %368 = vmatpush1.msra.mxu0 %v334
    %369 = vmatprep.subr.mxu0 0.0
    %370 = vmatpush1.msra.mxu0 %v333
    %371 = vmatprep.subr.mxu0 0.0
    %372 = vmatpush2.msra.mxu0 0.0
    %373 = vmatprep.subr.mxu0 0.0
    %374 = vmatpush2.msra.mxu0 0.0
    %375 = vmatprep.subr.mxu0 0.0
    %376 = vmatpush2.msra.mxu0 0.0
    %377 = vmatprep.subr.mxu0 0.0
    %378 = vmatpush2.msra.mxu0 0.0
    %379 = vmatprep.subr.mxu0 0.0
    %380 = vmatpush2.msra.mxu0 0.0
    %381 = vmatprep.subr.mxu0 0.0
    %382 = vmatpush2.msra.mxu0 0.0
    %383 = vmatprep.subr.mxu0 0.0
    %384 = vmatpush2.msra.mxu0 0.0
    %385 = vmatprep.subr.mxu0 0.0
    %386 = vmatpush2.msra.mxu0 0.0
    %387 = vmatprep.subr.mxu0 0.0
    %388 = vmatpush2.msra.mxu0 0.0
    %389 = vmatprep.subr.mxu0 0.0
    %390 = vmatpush2.msra.mxu0 0.0
    %391 = vmatprep.subr.mxu0 0.0
    %392 = vmatpush2.msra.mxu0 0.0
    %393 = vmatprep.subr.mxu0 0.0
    %394 = vmatpush2.msra.mxu0 0.0
    %395 = vmatprep.subr.mxu0 0.0
    %396 = vmatpush2.msra.mxu0 0.0
    %397 = vmatprep.subr.mxu0 0.0
    %398 = vmatpush2.msra.mxu0 0.0
    %399 = vmatprep.subr.mxu0 0.0
    %400 = vmatpush2.msra.mxu0 0.0
    %401 = vmatprep.subr.mxu0 0.0
    %402 = vmatpush2.msra.mxu0 0.0
    %403 = vmatprep.mubr.f32.mxu0 0.0
    %404 = vmatmul.mubr.f32.gmra.mxu0 %v337
    %v405 = vpop.f32.mrf.mxu0
    %v406 = vadd.f32 0.0, %v405
    %v407 = vpop.f32.mrf.mxu0
    %408 = vdwg.mxu0
    %v409 = vld [vmem:[%s23] sm:$0x1]
    %v411 = vlaneseq
    %v412 = vshrl.u32 %v411, 7
    %v413 = vsub.s32 0, %v412
    %v414 = vrot.slane %v409, %v413
    %vm416 = vcmask 64512
    %v418 = vsel %vm416, %v332, 0
    %420 = vmatprep.subr.mxu0 0.0
    %421 = vmatpush1.msra.mxu0 0.0
    %422 = vmatprep.subr.mxu0 0.0
    %423 = vmatpush1.msra.mxu0 0.0
    %424 = vmatprep.subr.mxu0 0.0
    %425 = vmatpush1.msra.mxu0 0.0
    %426 = vmatprep.subr.mxu0 0.0
    %427 = vmatpush1.msra.mxu0 0.0
    %428 = vmatprep.subr.mxu0 0.0
    %429 = vmatpush1.msra.mxu0 0.0
    %430 = vmatprep.subr.mxu0 0.0
    %431 = vmatpush1.msra.mxu0 0.0
    %432 = vmatprep.subr.mxu0 0.0
    %433 = vmatpush1.msra.mxu0 0.0
    %434 = vmatprep.subr.mxu0 0.0
    %435 = vmatpush1.msra.mxu0 0.0
    %436 = vmatprep.subr.mxu0 0.0
    %437 = vmatpush1.msra.mxu0 0.0
    %438 = vmatprep.subr.mxu0 0.0
    %439 = vmatpush1.msra.mxu0 0.0
    %440 = vmatprep.subr.mxu0 0.0
    %441 = vmatpush1.msra.mxu0 0.0
    %442 = vmatprep.subr.mxu0 0.0
    %443 = vmatpush1.msra.mxu0 0.0
    %444 = vmatprep.subr.mxu0 0.0
    %445 = vmatpush1.msra.mxu0 0.0
    %446 = vmatprep.subr.mxu0 0.0
    %447 = vmatpush1.msra.mxu0 0.0
    %448 = vmatprep.subr.mxu0 0.0
    %449 = vmatpush1.msra.mxu0 0.0
    %450 = vmatprep.subr.mxu0 0.0
    %451 = vmatpush1.msra.mxu0 %v406
    %452 = vmatprep.subr.mxu0 0.0
    %453 = vmatpush2.msra.mxu0 0.0
    %454 = vmatprep.subr.mxu0 0.0
    %455 = vmatpush2.msra.mxu0 0.0
    %456 = vmatprep.subr.mxu0 0.0
    %457 = vmatpush2.msra.mxu0 0.0
    %458 = vmatprep.subr.mxu0 0.0
    %459 = vmatpush2.msra.mxu0 0.0
    %460 = vmatprep.subr.mxu0 0.0
    %461 = vmatpush2.msra.mxu0 0.0
    %462 = vmatprep.subr.mxu0 0.0
    %463 = vmatpush2.msra.mxu0 0.0
    %464 = vmatprep.subr.mxu0 0.0
    %465 = vmatpush2.msra.mxu0 0.0
    %466 = vmatprep.subr.mxu0 0.0
    %467 = vmatpush2.msra.mxu0 0.0
    %468 = vmatprep.subr.mxu0 0.0
    %469 = vmatpush2.msra.mxu0 0.0
    %470 = vmatprep.subr.mxu0 0.0
    %471 = vmatpush2.msra.mxu0 0.0
    %472 = vmatprep.subr.mxu0 0.0
    %473 = vmatpush2.msra.mxu0 0.0
    %474 = vmatprep.subr.mxu0 0.0
    %475 = vmatpush2.msra.mxu0 0.0
    %476 = vmatprep.subr.mxu0 0.0
    %477 = vmatpush2.msra.mxu0 0.0
    %478 = vmatprep.subr.mxu0 0.0
    %479 = vmatpush2.msra.mxu0 0.0
    %480 = vmatprep.subr.mxu0 0.0
    %481 = vmatpush2.msra.mxu0 0.0
    %482 = vmatprep.subr.mxu0 0.0
    %483 = vmatpush2.msra.mxu0 0.0
    %484 = vmatprep.mubr.f32.mxu0 0.0
    %485 = vmatmul.mubr.f32.gmra.mxu0 %v418
    %v486 = vpop.f32.mrf.mxu0
    %v487 = vadd.f32 %v414, %v486
    %v488 = vpop.f32.mrf.mxu0
    %489 = vdwg.mxu0
    %v490 = vmax.f32 %v487, 0.0
    %v491 = vld [vmem:[%s25] sm:$0xff]
    %v492 = vld [vmem:[%s25 + $0x8] sm:$0xff]
    %v493 = vld [vmem:[%s25 + $0x10] sm:$0xff]
    %v494 = vld [vmem:[%s25 + $0x18] sm:$0xff]
    %v496 = vsel %vm327, %v490, 0
    %498 = vmatprep.subr.mxu0 0.0
    %499 = vmatpush1.msra.mxu0 0.0
    %500 = vmatprep.subr.mxu0 0.0
    %501 = vmatpush1.msra.mxu0 0.0
    %502 = vmatprep.subr.mxu0 0.0
    %503 = vmatpush1.msra.mxu0 0.0
    %504 = vmatprep.subr.mxu0 0.0
    %505 = vmatpush1.msra.mxu0 0.0
    %506 = vmatprep.subr.mxu0 0.0
    %507 = vmatpush1.msra.mxu0 0.0
    %508 = vmatprep.subr.mxu0 0.0
    %509 = vmatpush1.msra.mxu0 0.0
    %510 = vmatprep.subr.mxu0 0.0
    %511 = vmatpush1.msra.mxu0 0.0
    %512 = vmatprep.subr.mxu0 0.0
    %513 = vmatpush1.msra.mxu0 0.0
    %514 = vmatprep.subr.mxu0 0.0
    %515 = vmatpush1.msra.mxu0 0.0
    %516 = vmatprep.subr.mxu0 0.0
    %517 = vmatpush1.msra.mxu0 0.0
    %518 = vmatprep.subr.mxu0 0.0
    %519 = vmatpush1.msra.mxu0 0.0
    %520 = vmatprep.subr.mxu0 0.0
    %521 = vmatpush1.msra.mxu0 0.0
    %522 = vmatprep.subr.mxu0 0.0
    %523 = vmatpush1.msra.mxu0 %v494
    %524 = vmatprep.subr.mxu0 0.0
    %525 = vmatpush1.msra.mxu0 %v493
    %526 = vmatprep.subr.mxu0 0.0
    %527 = vmatpush1.msra.mxu0 %v492
    %528 = vmatprep.subr.mxu0 0.0
    %529 = vmatpush1.msra.mxu0 %v491
    %530 = vmatprep.subr.mxu0 0.0
    %531 = vmatpush2.msra.mxu0 0.0
    %532 = vmatprep.subr.mxu0 0.0
    %533 = vmatpush2.msra.mxu0 0.0
    %534 = vmatprep.subr.mxu0 0.0
    %535 = vmatpush2.msra.mxu0 0.0
    %536 = vmatprep.subr.mxu0 0.0
    %537 = vmatpush2.msra.mxu0 0.0
    %538 = vmatprep.subr.mxu0 0.0
    %539 = vmatpush2.msra.mxu0 0.0
    %540 = vmatprep.subr.mxu0 0.0
    %541 = vmatpush2.msra.mxu0 0.0
    %542 = vmatprep.subr.mxu0 0.0
    %543 = vmatpush2.msra.mxu0 0.0
    %544 = vmatprep.subr.mxu0 0.0
    %545 = vmatpush2.msra.mxu0 0.0
    %546 = vmatprep.subr.mxu0 0.0
    %547 = vmatpush2.msra.mxu0 0.0
    %548 = vmatprep.subr.mxu0 0.0
    %549 = vmatpush2.msra.mxu0 0.0
    %550 = vmatprep.subr.mxu0 0.0
    %551 = vmatpush2.msra.mxu0 0.0
    %552 = vmatprep.subr.mxu0 0.0
    %553 = vmatpush2.msra.mxu0 0.0
    %554 = vmatprep.subr.mxu0 0.0
    %555 = vmatpush2.msra.mxu0 0.0
    %556 = vmatprep.subr.mxu0 0.0
    %557 = vmatpush2.msra.mxu0 0.0
    %558 = vmatprep.subr.mxu0 0.0
    %559 = vmatpush2.msra.mxu0 0.0
    %560 = vmatprep.subr.mxu0 0.0
    %561 = vmatpush2.msra.mxu0 0.0
    %562 = vmatprep.mubr.f32.mxu0 0.0
    %563 = vmatmul.mubr.f32.gmra.mxu0 %v496
    %v564 = vpop.f32.mrf.mxu0
    %v565 = vadd.f32 0.0, %v564
    %v566 = vpop.f32.mrf.mxu0
    %567 = vdwg.mxu0
    %v568 = vld [vmem:[%s27] sm:$0x1]
    %v570 = vlaneseq
    %v571 = vshrl.u32 %v570, 7
    %v572 = vsub.s32 0, %v571
    %v573 = vrot.slane %v568, %v572
    %575 = vmatprep.subr.mxu0 0.0
    %576 = vmatpush1.msra.mxu0 0.0
    %577 = vmatprep.subr.mxu0 0.0
    %578 = vmatpush1.msra.mxu0 0.0
    %579 = vmatprep.subr.mxu0 0.0
    %580 = vmatpush1.msra.mxu0 0.0
    %581 = vmatprep.subr.mxu0 0.0
    %582 = vmatpush1.msra.mxu0 0.0
    %583 = vmatprep.subr.mxu0 0.0
    %584 = vmatpush1.msra.mxu0 0.0
    %585 = vmatprep.subr.mxu0 0.0
    %586 = vmatpush1.msra.mxu0 0.0
    %587 = vmatprep.subr.mxu0 0.0
    %588 = vmatpush1.msra.mxu0 0.0
    %589 = vmatprep.subr.mxu0 0.0
    %590 = vmatpush1.msra.mxu0 0.0
    %591 = vmatprep.subr.mxu0 0.0
    %592 = vmatpush1.msra.mxu0 0.0
    %593 = vmatprep.subr.mxu0 0.0
    %594 = vmatpush1.msra.mxu0 0.0
    %595 = vmatprep.subr.mxu0 0.0
    %596 = vmatpush1.msra.mxu0 0.0
    %597 = vmatprep.subr.mxu0 0.0
    %598 = vmatpush1.msra.mxu0 0.0
    %599 = vmatprep.subr.mxu0 0.0
    %600 = vmatpush1.msra.mxu0 0.0
    %601 = vmatprep.subr.mxu0 0.0
    %602 = vmatpush1.msra.mxu0 0.0
    %603 = vmatprep.subr.mxu0 0.0
    %604 = vmatpush1.msra.mxu0 0.0
    %605 = vmatprep.subr.mxu0 0.0
    %606 = vmatpush1.msra.mxu0 %v565
    %607 = vmatprep.subr.mxu0 0.0
    %608 = vmatpush2.msra.mxu0 0.0
    %609 = vmatprep.subr.mxu0 0.0
    %610 = vmatpush2.msra.mxu0 0.0
    %611 = vmatprep.subr.mxu0 0.0
    %612 = vmatpush2.msra.mxu0 0.0
    %613 = vmatprep.subr.mxu0 0.0
    %614 = vmatpush2.msra.mxu0 0.0
    %615 = vmatprep.subr.mxu0 0.0
    %616 = vmatpush2.msra.mxu0 0.0
    %617 = vmatprep.subr.mxu0 0.0
    %618 = vmatpush2.msra.mxu0 0.0
    %619 = vmatprep.subr.mxu0 0.0
    %620 = vmatpush2.msra.mxu0 0.0
    %621 = vmatprep.subr.mxu0 0.0
    %622 = vmatpush2.msra.mxu0 0.0
    %623 = vmatprep.subr.mxu0 0.0
    %624 = vmatpush2.msra.mxu0 0.0
    %625 = vmatprep.subr.mxu0 0.0
    %626 = vmatpush2.msra.mxu0 0.0
    %627 = vmatprep.subr.mxu0 0.0
    %628 = vmatpush2.msra.mxu0 0.0
    %629 = vmatprep.subr.mxu0 0.0
    %630 = vmatpush2.msra.mxu0 0.0
    %631 = vmatprep.subr.mxu0 0.0
    %632 = vmatpush2.msra.mxu0 0.0
    %633 = vmatprep.subr.mxu0 0.0
    %634 = vmatpush2.msra.mxu0 0.0
    %635 = vmatprep.subr.mxu0 0.0
    %636 = vmatpush2.msra.mxu0 0.0
    %637 = vmatprep.subr.mxu0 0.0
    %638 = vmatpush2.msra.mxu0 0.0
    %639 = vmatprep.mubr.f32.mxu0 0.0
    %640 = vmatmul.mubr.f32.gmra.mxu0 %v418
    %v641 = vpop.f32.mrf.mxu0
    %v642 = vadd.f32 %v573, %v641
    %v643 = vpop.f32.mrf.mxu0
    %644 = vdwg.mxu0
    %v645 = vmax.f32 %v642, 0.0
    %v646 = vld [vmem:[%s9] sm:$0xff]
    %v647 = vld [vmem:[%s9 + $0x8] sm:$0xff]
    %v648 = vld [vmem:[%s29] sm:$0xff]
    %v649 = vld [vmem:[%s29 + $0x8] sm:$0xff]
    %v650 = vld [vmem:[%s29 + $0x10] sm:$0xff]
    %v651 = vld [vmem:[%s29 + $0x18] sm:$0xff]
    %v653 = vsel %vm327, %v330, 0
    %v656 = vsel %vm327, %v331, 0
    %658 = vmatprep.subr.mxu0 0.0
    %659 = vmatpush1.msra.mxu0 0.0
    %660 = vmatprep.subr.mxu0 0.0
    %661 = vmatpush1.msra.mxu0 0.0
    %662 = vmatprep.subr.mxu0 0.0
    %663 = vmatpush1.msra.mxu0 0.0
    %664 = vmatprep.subr.mxu0 0.0
    %665 = vmatpush1.msra.mxu0 0.0
    %666 = vmatprep.subr.mxu0 0.0
    %667 = vmatpush1.msra.mxu0 0.0
    %668 = vmatprep.subr.mxu0 0.0
    %669 = vmatpush1.msra.mxu0 0.0
    %670 = vmatprep.subr.mxu0 0.0
    %671 = vmatpush1.msra.mxu0 0.0
    %672 = vmatprep.subr.mxu0 0.0
    %673 = vmatpush1.msra.mxu0 0.0
    %674 = vmatprep.subr.mxu0 0.0
    %675 = vmatpush1.msra.mxu0 0.0
    %676 = vmatprep.subr.mxu0 0.0
    %677 = vmatpush1.msra.mxu0 0.0
    %678 = vmatprep.subr.mxu0 0.0
    %679 = vmatpush1.msra.mxu0 0.0
    %680 = vmatprep.subr.mxu0 0.0
    %681 = vmatpush1.msra.mxu0 0.0
    %682 = vmatprep.subr.mxu0 0.0
    %683 = vmatpush1.msra.mxu0 %v651
    %684 = vmatprep.subr.mxu0 0.0
    %685 = vmatpush1.msra.mxu0 %v650
    %686 = vmatprep.subr.mxu0 0.0
    %687 = vmatpush1.msra.mxu0 %v649
    %688 = vmatprep.subr.mxu0 0.0
    %689 = vmatpush1.msra.mxu0 %v648
    %690 = vmatprep.subr.mxu0 0.0
    %691 = vmatpush2.msra.mxu0 0.0
    %692 = vmatprep.subr.mxu0 0.0
    %693 = vmatpush2.msra.mxu0 0.0
    %694 = vmatprep.subr.mxu0 0.0
    %695 = vmatpush2.msra.mxu0 0.0
    %696 = vmatprep.subr.mxu0 0.0
    %697 = vmatpush2.msra.mxu0 0.0
    %698 = vmatprep.subr.mxu0 0.0
    %699 = vmatpush2.msra.mxu0 0.0
    %700 = vmatprep.subr.mxu0 0.0
    %701 = vmatpush2.msra.mxu0 0.0
    %702 = vmatprep.subr.mxu0 0.0
    %703 = vmatpush2.msra.mxu0 0.0
    %704 = vmatprep.subr.mxu0 0.0
    %705 = vmatpush2.msra.mxu0 0.0
    %706 = vmatprep.subr.mxu0 0.0
    %707 = vmatpush2.msra.mxu0 0.0
    %708 = vmatprep.subr.mxu0 0.0
    %709 = vmatpush2.msra.mxu0 0.0
    %710 = vmatprep.subr.mxu0 0.0
    %711 = vmatpush2.msra.mxu0 0.0
    %712 = vmatprep.subr.mxu0 0.0
    %713 = vmatpush2.msra.mxu0 0.0
    %714 = vmatprep.subr.mxu0 0.0
    %715 = vmatpush2.msra.mxu0 0.0
    %716 = vmatprep.subr.mxu0 0.0
    %717 = vmatpush2.msra.mxu0 0.0
    %718 = vmatprep.subr.mxu0 0.0
    %719 = vmatpush2.msra.mxu0 0.0
    %720 = vmatprep.subr.mxu0 0.0
    %721 = vmatpush2.msra.mxu0 0.0
    %722 = vmatprep.mubr.f32.mxu0 0.0
    %723 = vmatmul.mubr.f32.gmra.mxu0 %v653
    %v724 = vpop.f32.mrf.mxu0
    %v725 = vadd.f32 0.0, %v724
    %v726 = vpop.f32.mrf.mxu0
    %727 = vmatprep.mubr.f32.mxu0 0.0
    %728 = vmatmul.mubr.f32.gmra.mxu0 %v656
    %v729 = vpop.f32.mrf.mxu0
    %v730 = vadd.f32 0.0, %v729
    %v731 = vpop.f32.mrf.mxu0
    %732 = vdwg.mxu0
    %v733 = vld [vmem:[%s31] sm:$0x1]
    %v735 = vlaneseq
    %v736 = vshrl.u32 %v735, 7
    %v737 = vsub.s32 0, %v736
    %v738 = vrot.slane %v733, %v737
    %v741 = vsel %vm167, %v646, 0
    %v744 = vsel %vm167, %v647, 0
    %746 = vmatprep.subr.mxu0 0.0
    %747 = vmatpush1.msra.mxu0 0.0
    %748 = vmatprep.subr.mxu0 0.0
    %749 = vmatpush1.msra.mxu0 0.0
    %750 = vmatprep.subr.mxu0 0.0
    %751 = vmatpush1.msra.mxu0 0.0
    %752 = vmatprep.subr.mxu0 0.0
    %753 = vmatpush1.msra.mxu0 0.0
    %754 = vmatprep.subr.mxu0 0.0
    %755 = vmatpush1.msra.mxu0 0.0
    %756 = vmatprep.subr.mxu0 0.0
    %757 = vmatpush1.msra.mxu0 0.0
    %758 = vmatprep.subr.mxu0 0.0
    %759 = vmatpush1.msra.mxu0 0.0
    %760 = vmatprep.subr.mxu0 0.0
    %761 = vmatpush1.msra.mxu0 0.0
    %762 = vmatprep.subr.mxu0 0.0
    %763 = vmatpush1.msra.mxu0 0.0
    %764 = vmatprep.subr.mxu0 0.0
    %765 = vmatpush1.msra.mxu0 0.0
    %766 = vmatprep.subr.mxu0 0.0
    %767 = vmatpush1.msra.mxu0 0.0
    %768 = vmatprep.subr.mxu0 0.0
    %769 = vmatpush1.msra.mxu0 0.0
    %770 = vmatprep.subr.mxu0 0.0
    %771 = vmatpush1.msra.mxu0 0.0
    %772 = vmatprep.subr.mxu0 0.0
    %773 = vmatpush1.msra.mxu0 0.0
    %774 = vmatprep.subr.mxu0 0.0
    %775 = vmatpush1.msra.mxu0 %v730
    %776 = vmatprep.subr.mxu0 0.0
    %777 = vmatpush1.msra.mxu0 %v725
    %778 = vmatprep.subr.mxu0 0.0
    %779 = vmatpush2.msra.mxu0 0.0
    %780 = vmatprep.subr.mxu0 0.0
    %781 = vmatpush2.msra.mxu0 0.0
    %782 = vmatprep.subr.mxu0 0.0
    %783 = vmatpush2.msra.mxu0 0.0
    %784 = vmatprep.subr.mxu0 0.0
    %785 = vmatpush2.msra.mxu0 0.0
    %786 = vmatprep.subr.mxu0 0.0
    %787 = vmatpush2.msra.mxu0 0.0
    %788 = vmatprep.subr.mxu0 0.0
    %789 = vmatpush2.msra.mxu0 0.0
    %790 = vmatprep.subr.mxu0 0.0
    %791 = vmatpush2.msra.mxu0 0.0
    %792 = vmatprep.subr.mxu0 0.0
    %793 = vmatpush2.msra.mxu0 0.0
    %794 = vmatprep.subr.mxu0 0.0
    %795 = vmatpush2.msra.mxu0 0.0
    %796 = vmatprep.subr.mxu0 0.0
    %797 = vmatpush2.msra.mxu0 0.0
    %798 = vmatprep.subr.mxu0 0.0
    %799 = vmatpush2.msra.mxu0 0.0
    %800 = vmatprep.subr.mxu0 0.0
    %801 = vmatpush2.msra.mxu0 0.0
    %802 = vmatprep.subr.mxu0 0.0
    %803 = vmatpush2.msra.mxu0 0.0
    %804 = vmatprep.subr.mxu0 0.0
    %805 = vmatpush2.msra.mxu0 0.0
    %806 = vmatprep.subr.mxu0 0.0
    %807 = vmatpush2.msra.mxu0 0.0
    %808 = vmatprep.subr.mxu0 0.0
    %809 = vmatpush2.msra.mxu0 0.0
    %810 = vmatprep.mubr.f32.mxu0 0.0
    %811 = vmatmul.mubr.f32.gmra.mxu0 %v741
    %v812 = vpop.f32.mrf.mxu0
    %v813 = vadd.f32 %v738, %v812
    %v814 = vpop.f32.mrf.mxu0
    %815 = vmatprep.mubr.f32.mxu0 0.0
    %816 = vmatmul.mubr.f32.gmra.mxu0 %v744
    %v817 = vpop.f32.mrf.mxu0
    %v818 = vadd.f32 %v738, %v817
    %v819 = vpop.f32.mrf.mxu0
    %820 = vdwg.mxu0
    %v821 = vmax.f32 %v813, 0.0
    %v822 = vmax.f32 %v818, 0.0
    %v823 = vld [vmem:[%s33] sm:$0xff]
    %v824 = vld [vmem:[%s33 + $0x8] sm:$0xff]
    %v825 = vld [vmem:[%s33 + $0x10] sm:$0xff]
    %v826 = vld [vmem:[%s33 + $0x18] sm:$0xff]
    %v828 = vsel %vm327, %v821, 0
    %v831 = vsel %vm327, %v822, 0
    %833 = vmatprep.subr.mxu0 0.0
    %834 = vmatpush1.msra.mxu0 0.0
    %835 = vmatprep.subr.mxu0 0.0
    %836 = vmatpush1.msra.mxu0 0.0
    %837 = vmatprep.subr.mxu0 0.0
    %838 = vmatpush1.msra.mxu0 0.0
    %839 = vmatprep.subr.mxu0 0.0
    %840 = vmatpush1.msra.mxu0 0.0
    %841 = vmatprep.subr.mxu0 0.0
    %842 = vmatpush1.msra.mxu0 0.0
    %843 = vmatprep.subr.mxu0 0.0
    %844 = vmatpush1.msra.mxu0 0.0
    %845 = vmatprep.subr.mxu0 0.0
    %846 = vmatpush1.msra.mxu0 0.0
    %847 = vmatprep.subr.mxu0 0.0
    %848 = vmatpush1.msra.mxu0 0.0
    %849 = vmatprep.subr.mxu0 0.0
    %850 = vmatpush1.msra.mxu0 0.0
    %851 = vmatprep.subr.mxu0 0.0
    %852 = vmatpush1.msra.mxu0 0.0
    %853 = vmatprep.subr.mxu0 0.0
    %854 = vmatpush1.msra.mxu0 0.0
    %855 = vmatprep.subr.mxu0 0.0
    %856 = vmatpush1.msra.mxu0 0.0
    %857 = vmatprep.subr.mxu0 0.0
    %858 = vmatpush1.msra.mxu0 %v826
    %859 = vmatprep.subr.mxu0 0.0
    %860 = vmatpush1.msra.mxu0 %v825
    %861 = vmatprep.subr.mxu0 0.0
    %862 = vmatpush1.msra.mxu0 %v824
    %863 = vmatprep.subr.mxu0 0.0
    %864 = vmatpush1.msra.mxu0 %v823
    %865 = vmatprep.subr.mxu0 0.0
    %866 = vmatpush2.msra.mxu0 0.0
    %867 = vmatprep.subr.mxu0 0.0
    %868 = vmatpush2.msra.mxu0 0.0
    %869 = vmatprep.subr.mxu0 0.0
    %870 = vmatpush2.msra.mxu0 0.0
    %871 = vmatprep.subr.mxu0 0.0
    %872 = vmatpush2.msra.mxu0 0.0
    %873 = vmatprep.subr.mxu0 0.0
    %874 = vmatpush2.msra.mxu0 0.0
    %875 = vmatprep.subr.mxu0 0.0
    %876 = vmatpush2.msra.mxu0 0.0
    %877 = vmatprep.subr.mxu0 0.0
    %878 = vmatpush2.msra.mxu0 0.0
    %879 = vmatprep.subr.mxu0 0.0
    %880 = vmatpush2.msra.mxu0 0.0
    %881 = vmatprep.subr.mxu0 0.0
    %882 = vmatpush2.msra.mxu0 0.0
    %883 = vmatprep.subr.mxu0 0.0
    %884 = vmatpush2.msra.mxu0 0.0
    %885 = vmatprep.subr.mxu0 0.0
    %886 = vmatpush2.msra.mxu0 0.0
    %887 = vmatprep.subr.mxu0 0.0
    %888 = vmatpush2.msra.mxu0 0.0
    %889 = vmatprep.subr.mxu0 0.0
    %890 = vmatpush2.msra.mxu0 0.0
    %891 = vmatprep.subr.mxu0 0.0
    %892 = vmatpush2.msra.mxu0 0.0
    %893 = vmatprep.subr.mxu0 0.0
    %894 = vmatpush2.msra.mxu0 0.0
    %895 = vmatprep.subr.mxu0 0.0
    %896 = vmatpush2.msra.mxu0 0.0
    %897 = vmatprep.mubr.f32.mxu0 0.0
    %898 = vmatmul.mubr.f32.gmra.mxu0 %v828
    %v899 = vpop.f32.mrf.mxu0
    %v900 = vadd.f32 0.0, %v899
    %v901 = vpop.f32.mrf.mxu0
    %902 = vmatprep.mubr.f32.mxu0 0.0
    %903 = vmatmul.mubr.f32.gmra.mxu0 %v831
    %v904 = vpop.f32.mrf.mxu0
    %v905 = vadd.f32 0.0, %v904
    %v906 = vpop.f32.mrf.mxu0
    %907 = vdwg.mxu0
    %v908 = vld [vmem:[%s35] sm:$0x1]
    %v910 = vlaneseq
    %v911 = vshrl.u32 %v910, 7
    %v912 = vsub.s32 0, %v911
    %v913 = vrot.slane %v908, %v912
    %915 = vmatprep.subr.mxu0 0.0
    %916 = vmatpush1.msra.mxu0 0.0
    %917 = vmatprep.subr.mxu0 0.0
    %918 = vmatpush1.msra.mxu0 0.0
    %919 = vmatprep.subr.mxu0 0.0
    %920 = vmatpush1.msra.mxu0 0.0
    %921 = vmatprep.subr.mxu0 0.0
    %922 = vmatpush1.msra.mxu0 0.0
    %923 = vmatprep.subr.mxu0 0.0
    %924 = vmatpush1.msra.mxu0 0.0
    %925 = vmatprep.subr.mxu0 0.0
    %926 = vmatpush1.msra.mxu0 0.0
    %927 = vmatprep.subr.mxu0 0.0
    %928 = vmatpush1.msra.mxu0 0.0
    %929 = vmatprep.subr.mxu0 0.0
    %930 = vmatpush1.msra.mxu0 0.0
    %931 = vmatprep.subr.mxu0 0.0
    %932 = vmatpush1.msra.mxu0 0.0
    %933 = vmatprep.subr.mxu0 0.0
    %934 = vmatpush1.msra.mxu0 0.0
    %935 = vmatprep.subr.mxu0 0.0
    %936 = vmatpush1.msra.mxu0 0.0
    %937 = vmatprep.subr.mxu0 0.0
    %938 = vmatpush1.msra.mxu0 0.0
    %939 = vmatprep.subr.mxu0 0.0
    %940 = vmatpush1.msra.mxu0 0.0
    %941 = vmatprep.subr.mxu0 0.0
    %942 = vmatpush1.msra.mxu0 0.0
    %943 = vmatprep.subr.mxu0 0.0
    %944 = vmatpush1.msra.mxu0 %v905
    %945 = vmatprep.subr.mxu0 0.0
    %946 = vmatpush1.msra.mxu0 %v900
    %947 = vmatprep.subr.mxu0 0.0
    %948 = vmatpush2.msra.mxu0 0.0
    %949 = vmatprep.subr.mxu0 0.0
    %950 = vmatpush2.msra.mxu0 0.0
    %951 = vmatprep.subr.mxu0 0.0
    %952 = vmatpush2.msra.mxu0 0.0
    %953 = vmatprep.subr.mxu0 0.0
    %954 = vmatpush2.msra.mxu0 0.0
    %955 = vmatprep.subr.mxu0 0.0
    %956 = vmatpush2.msra.mxu0 0.0
    %957 = vmatprep.subr.mxu0 0.0
    %958 = vmatpush2.msra.mxu0 0.0
    %959 = vmatprep.subr.mxu0 0.0
    %960 = vmatpush2.msra.mxu0 0.0
    %961 = vmatprep.subr.mxu0 0.0
    %962 = vmatpush2.msra.mxu0 0.0
    %963 = vmatprep.subr.mxu0 0.0
    %964 = vmatpush2.msra.mxu0 0.0
    %965 = vmatprep.subr.mxu0 0.0
    %966 = vmatpush2.msra.mxu0 0.0
    %967 = vmatprep.subr.mxu0 0.0
    %968 = vmatpush2.msra.mxu0 0.0
    %969 = vmatprep.subr.mxu0 0.0
    %970 = vmatpush2.msra.mxu0 0.0
    %971 = vmatprep.subr.mxu0 0.0
    %972 = vmatpush2.msra.mxu0 0.0
    %973 = vmatprep.subr.mxu0 0.0
    %974 = vmatpush2.msra.mxu0 0.0
    %975 = vmatprep.subr.mxu0 0.0
    %976 = vmatpush2.msra.mxu0 0.0
    %977 = vmatprep.subr.mxu0 0.0
    %978 = vmatpush2.msra.mxu0 0.0
    %979 = vmatprep.mubr.f32.mxu0 0.0
    %980 = vmatmul.mubr.f32.gmra.mxu0 %v741
    %v981 = vpop.f32.mrf.mxu0
    %v982 = vadd.f32 %v913, %v981
    %v983 = vpop.f32.mrf.mxu0
    %984 = vmatprep.mubr.f32.mxu0 0.0
    %985 = vmatmul.mubr.f32.gmra.mxu0 %v744
    %v986 = vpop.f32.mrf.mxu0
    %v987 = vadd.f32 %v913, %v986
    %v988 = vpop.f32.mrf.mxu0
    %989 = vdwg.mxu0
    %v990 = vmax.f32 %v982, 0.0
    %v991 = vmax.f32 %v987, 0.0
    %v992 = vld [vmem:[%s11] sm:$0xff]
    %v993 = vld [vmem:[%s37] sm:$0xff]
    %v994 = vld [vmem:[%s37 + $0x8] sm:$0xff]
    %v995 = vld [vmem:[%s37 + $0x10] sm:$0xff]
    %v996 = vld [vmem:[%s37 + $0x18] sm:$0xff]
    %998 = vrot.lane.b32.xlu0 %v320, 96
    %v999 = vpop.permute.xlu0 %998
    %v1000 = vsel %vm327, %v999, 0
    %1002 = vmatprep.subr.mxu0 0.0
    %1003 = vmatpush1.msra.mxu0 0.0
    %1004 = vmatprep.subr.mxu0 0.0
    %1005 = vmatpush1.msra.mxu0 0.0
    %1006 = vmatprep.subr.mxu0 0.0
    %1007 = vmatpush1.msra.mxu0 0.0
    %1008 = vmatprep.subr.mxu0 0.0
    %1009 = vmatpush1.msra.mxu0 0.0
    %1010 = vmatprep.subr.mxu0 0.0
    %1011 = vmatpush1.msra.mxu0 0.0
    %1012 = vmatprep.subr.mxu0 0.0
    %1013 = vmatpush1.msra.mxu0 0.0
    %1014 = vmatprep.subr.mxu0 0.0
    %1015 = vmatpush1.msra.mxu0 0.0
    %1016 = vmatprep.subr.mxu0 0.0
    %1017 = vmatpush1.msra.mxu0 0.0
    %1018 = vmatprep.subr.mxu0 0.0
    %1019 = vmatpush1.msra.mxu0 0.0
    %1020 = vmatprep.subr.mxu0 0.0
    %1021 = vmatpush1.msra.mxu0 0.0
    %1022 = vmatprep.subr.mxu0 0.0
    %1023 = vmatpush1.msra.mxu0 0.0
    %1024 = vmatprep.subr.mxu0 0.0
    %1025 = vmatpush1.msra.mxu0 0.0
    %1026 = vmatprep.subr.mxu0 0.0
    %1027 = vmatpush1.msra.mxu0 %v996
    %1028 = vmatprep.subr.mxu0 0.0
    %1029 = vmatpush1.msra.mxu0 %v995
    %1030 = vmatprep.subr.mxu0 0.0
    %1031 = vmatpush1.msra.mxu0 %v994
    %1032 = vmatprep.subr.mxu0 0.0
    %1033 = vmatpush1.msra.mxu0 %v993
    %1034 = vmatprep.subr.mxu0 0.0
    %1035 = vmatpush2.msra.mxu0 0.0
    %1036 = vmatprep.subr.mxu0 0.0
    %1037 = vmatpush2.msra.mxu0 0.0
    %1038 = vmatprep.subr.mxu0 0.0
    %1039 = vmatpush2.msra.mxu0 0.0
    %1040 = vmatprep.subr.mxu0 0.0
    %1041 = vmatpush2.msra.mxu0 0.0
    %1042 = vmatprep.subr.mxu0 0.0
    %1043 = vmatpush2.msra.mxu0 0.0
    %1044 = vmatprep.subr.mxu0 0.0
    %1045 = vmatpush2.msra.mxu0 0.0
    %1046 = vmatprep.subr.mxu0 0.0
    %1047 = vmatpush2.msra.mxu0 0.0
    %1048 = vmatprep.subr.mxu0 0.0
    %1049 = vmatpush2.msra.mxu0 0.0
    %1050 = vmatprep.subr.mxu0 0.0
    %1051 = vmatpush2.msra.mxu0 0.0
    %1052 = vmatprep.subr.mxu0 0.0
    %1053 = vmatpush2.msra.mxu0 0.0
    %1054 = vmatprep.subr.mxu0 0.0
    %1055 = vmatpush2.msra.mxu0 0.0
    %1056 = vmatprep.subr.mxu0 0.0
    %1057 = vmatpush2.msra.mxu0 0.0
    %1058 = vmatprep.subr.mxu0 0.0
    %1059 = vmatpush2.msra.mxu0 0.0
    %1060 = vmatprep.subr.mxu0 0.0
    %1061 = vmatpush2.msra.mxu0 0.0
    %1062 = vmatprep.subr.mxu0 0.0
    %1063 = vmatpush2.msra.mxu0 0.0
    %1064 = vmatprep.subr.mxu0 0.0
    %1065 = vmatpush2.msra.mxu0 0.0
    %1066 = vmatprep.mubr.f32.mxu0 0.0
    %1067 = vmatmul.mubr.f32.gmra.mxu0 %v1000
    %v1068 = vpop.f32.mrf.mxu0
    %v1069 = vadd.f32 0.0, %v1068
    %v1070 = vpop.f32.mrf.mxu0
    %1071 = vdwg.mxu0
    %v1072 = vld [vmem:[%s39] sm:$0x1]
    %v1074 = vlaneseq
    %v1075 = vshrl.u32 %v1074, 7
    %v1076 = vsub.s32 0, %v1075
    %v1077 = vrot.slane %v1072, %v1076
    %v1080 = vsel %vm416, %v992, 0
    %1082 = vmatprep.subr.mxu0 0.0
    %1083 = vmatpush1.msra.mxu0 0.0
    %1084 = vmatprep.subr.mxu0 0.0
    %1085 = vmatpush1.msra.mxu0 0.0
    %1086 = vmatprep.subr.mxu0 0.0
    %1087 = vmatpush1.msra.mxu0 0.0
    %1088 = vmatprep.subr.mxu0 0.0
    %1089 = vmatpush1.msra.mxu0 0.0
    %1090 = vmatprep.subr.mxu0 0.0
    %1091 = vmatpush1.msra.mxu0 0.0
    %1092 = vmatprep.subr.mxu0 0.0
    %1093 = vmatpush1.msra.mxu0 0.0
    %1094 = vmatprep.subr.mxu0 0.0
    %1095 = vmatpush1.msra.mxu0 0.0
    %1096 = vmatprep.subr.mxu0 0.0
    %1097 = vmatpush1.msra.mxu0 0.0
    %1098 = vmatprep.subr.mxu0 0.0
    %1099 = vmatpush1.msra.mxu0 0.0
    %1100 = vmatprep.subr.mxu0 0.0
    %1101 = vmatpush1.msra.mxu0 0.0
    %1102 = vmatprep.subr.mxu0 0.0
    %1103 = vmatpush1.msra.mxu0 0.0
    %1104 = vmatprep.subr.mxu0 0.0
    %1105 = vmatpush1.msra.mxu0 0.0
    %1106 = vmatprep.subr.mxu0 0.0
    %1107 = vmatpush1.msra.mxu0 0.0
    %1108 = vmatprep.subr.mxu0 0.0
    %1109 = vmatpush1.msra.mxu0 0.0
    %1110 = vmatprep.subr.mxu0 0.0
    %1111 = vmatpush1.msra.mxu0 0.0
    %1112 = vmatprep.subr.mxu0 0.0
    %1113 = vmatpush1.msra.mxu0 %v1069
    %1114 = vmatprep.subr.mxu0 0.0
    %1115 = vmatpush2.msra.mxu0 0.0
    %1116 = vmatprep.subr.mxu0 0.0
    %1117 = vmatpush2.msra.mxu0 0.0
    %1118 = vmatprep.subr.mxu0 0.0
    %1119 = vmatpush2.msra.mxu0 0.0
    %1120 = vmatprep.subr.mxu0 0.0
    %1121 = vmatpush2.msra.mxu0 0.0
    %1122 = vmatprep.subr.mxu0 0.0
    %1123 = vmatpush2.msra.mxu0 0.0
    %1124 = vmatprep.subr.mxu0 0.0
    %1125 = vmatpush2.msra.mxu0 0.0
    %1126 = vmatprep.subr.mxu0 0.0
    %1127 = vmatpush2.msra.mxu0 0.0
    %1128 = vmatprep.subr.mxu0 0.0
    %1129 = vmatpush2.msra.mxu0 0.0
    %1130 = vmatprep.subr.mxu0 0.0
    %1131 = vmatpush2.msra.mxu0 0.0
    %1132 = vmatprep.subr.mxu0 0.0
    %1133 = vmatpush2.msra.mxu0 0.0
    %1134 = vmatprep.subr.mxu0 0.0
    %1135 = vmatpush2.msra.mxu0 0.0
    %1136 = vmatprep.subr.mxu0 0.0
    %1137 = vmatpush2.msra.mxu0 0.0
    %1138 = vmatprep.subr.mxu0 0.0
    %1139 = vmatpush2.msra.mxu0 0.0
    %1140 = vmatprep.subr.mxu0 0.0
    %1141 = vmatpush2.msra.mxu0 0.0
    %1142 = vmatprep.subr.mxu0 0.0
    %1143 = vmatpush2.msra.mxu0 0.0
    %1144 = vmatprep.subr.mxu0 0.0
    %1145 = vmatpush2.msra.mxu0 0.0
    %1146 = vmatprep.mubr.f32.mxu0 0.0
    %1147 = vmatmul.mubr.f32.gmra.mxu0 %v1080
    %v1148 = vpop.f32.mrf.mxu0
    %v1149 = vadd.f32 %v1077, %v1148
    %v1150 = vpop.f32.mrf.mxu0
    %1151 = vdwg.mxu0
    %v1152 = vmax.f32 %v1149, 0.0
    %v1153 = vld [vmem:[%s41] sm:$0xff]
    %v1154 = vld [vmem:[%s41 + $0x8] sm:$0xff]
    %v1155 = vld [vmem:[%s41 + $0x10] sm:$0xff]
    %v1156 = vld [vmem:[%s41 + $0x18] sm:$0xff]
    %v1158 = vsel %vm327, %v1152, 0
    %1160 = vmatprep.subr.mxu0 0.0
    %1161 = vmatpush1.msra.mxu0 0.0
    %1162 = vmatprep.subr.mxu0 0.0
    %1163 = vmatpush1.msra.mxu0 0.0
    %1164 = vmatprep.subr.mxu0 0.0
    %1165 = vmatpush1.msra.mxu0 0.0
    %1166 = vmatprep.subr.mxu0 0.0
    %1167 = vmatpush1.msra.mxu0 0.0
    %1168 = vmatprep.subr.mxu0 0.0
    %1169 = vmatpush1.msra.mxu0 0.0
    %1170 = vmatprep.subr.mxu0 0.0
    %1171 = vmatpush1.msra.mxu0 0.0
    %1172 = vmatprep.subr.mxu0 0.0
    %1173 = vmatpush1.msra.mxu0 0.0
    %1174 = vmatprep.subr.mxu0 0.0
    %1175 = vmatpush1.msra.mxu0 0.0
    %1176 = vmatprep.subr.mxu0 0.0
    %1177 = vmatpush1.msra.mxu0 0.0
    %1178 = vmatprep.subr.mxu0 0.0
    %1179 = vmatpush1.msra.mxu0 0.0
    %1180 = vmatprep.subr.mxu0 0.0
    %1181 = vmatpush1.msra.mxu0 0.0
    %1182 = vmatprep.subr.mxu0 0.0
    %1183 = vmatpush1.msra.mxu0 0.0
    %1184 = vmatprep.subr.mxu0 0.0
    %1185 = vmatpush1.msra.mxu0 %v1156
    %1186 = vmatprep.subr.mxu0 0.0
    %1187 = vmatpush1.msra.mxu0 %v1155
    %1188 = vmatprep.subr.mxu0 0.0
    %1189 = vmatpush1.msra.mxu0 %v1154
    %1190 = vmatprep.subr.mxu0 0.0
    %1191 = vmatpush1.msra.mxu0 %v1153
    %1192 = vmatprep.subr.mxu0 0.0
    %1193 = vmatpush2.msra.mxu0 0.0
    %1194 = vmatprep.subr.mxu0 0.0
    %1195 = vmatpush2.msra.mxu0 0.0
    %1196 = vmatprep.subr.mxu0 0.0
    %1197 = vmatpush2.msra.mxu0 0.0
    %1198 = vmatprep.subr.mxu0 0.0
    %1199 = vmatpush2.msra.mxu0 0.0
    %1200 = vmatprep.subr.mxu0 0.0
    %1201 = vmatpush2.msra.mxu0 0.0
    %1202 = vmatprep.subr.mxu0 0.0
    %1203 = vmatpush2.msra.mxu0 0.0
    %1204 = vmatprep.subr.mxu0 0.0
    %1205 = vmatpush2.msra.mxu0 0.0
    %1206 = vmatprep.subr.mxu0 0.0
    %1207 = vmatpush2.msra.mxu0 0.0
    %1208 = vmatprep.subr.mxu0 0.0
    %1209 = vmatpush2.msra.mxu0 0.0
    %1210 = vmatprep.subr.mxu0 0.0
    %1211 = vmatpush2.msra.mxu0 0.0
    %1212 = vmatprep.subr.mxu0 0.0
    %1213 = vmatpush2.msra.mxu0 0.0
    %1214 = vmatprep.subr.mxu0 0.0
    %1215 = vmatpush2.msra.mxu0 0.0
    %1216 = vmatprep.subr.mxu0 0.0
    %1217 = vmatpush2.msra.mxu0 0.0
    %1218 = vmatprep.subr.mxu0 0.0
    %1219 = vmatpush2.msra.mxu0 0.0
    %1220 = vmatprep.subr.mxu0 0.0
    %1221 = vmatpush2.msra.mxu0 0.0
    %1222 = vmatprep.subr.mxu0 0.0
    %1223 = vmatpush2.msra.mxu0 0.0
    %1224 = vmatprep.mubr.f32.mxu0 0.0
    %1225 = vmatmul.mubr.f32.gmra.mxu0 %v1158
    %v1226 = vpop.f32.mrf.mxu0
    %v1227 = vadd.f32 0.0, %v1226
    %v1228 = vpop.f32.mrf.mxu0
    %1229 = vdwg.mxu0
    %v1230 = vld [vmem:[%s43] sm:$0x1]
    %v1232 = vlaneseq
    %v1233 = vshrl.u32 %v1232, 7
    %v1234 = vsub.s32 0, %v1233
    %v1235 = vrot.slane %v1230, %v1234
    %1237 = vmatprep.subr.mxu0 0.0
    %1238 = vmatpush1.msra.mxu0 0.0
    %1239 = vmatprep.subr.mxu0 0.0
    %1240 = vmatpush1.msra.mxu0 0.0
    %1241 = vmatprep.subr.mxu0 0.0
    %1242 = vmatpush1.msra.mxu0 0.0
    %1243 = vmatprep.subr.mxu0 0.0
    %1244 = vmatpush1.msra.mxu0 0.0
    %1245 = vmatprep.subr.mxu0 0.0
    %1246 = vmatpush1.msra.mxu0 0.0
    %1247 = vmatprep.subr.mxu0 0.0
    %1248 = vmatpush1.msra.mxu0 0.0
    %1249 = vmatprep.subr.mxu0 0.0
    %1250 = vmatpush1.msra.mxu0 0.0
    %1251 = vmatprep.subr.mxu0 0.0
    %1252 = vmatpush1.msra.mxu0 0.0
    %1253 = vmatprep.subr.mxu0 0.0
    %1254 = vmatpush1.msra.mxu0 0.0
    %1255 = vmatprep.subr.mxu0 0.0
    %1256 = vmatpush1.msra.mxu0 0.0
    %1257 = vmatprep.subr.mxu0 0.0
    %1258 = vmatpush1.msra.mxu0 0.0
    %1259 = vmatprep.subr.mxu0 0.0
    %1260 = vmatpush1.msra.mxu0 0.0
    %1261 = vmatprep.subr.mxu0 0.0
    %1262 = vmatpush1.msra.mxu0 0.0
    %1263 = vmatprep.subr.mxu0 0.0
    %1264 = vmatpush1.msra.mxu0 0.0
    %1265 = vmatprep.subr.mxu0 0.0
    %1266 = vmatpush1.msra.mxu0 0.0
    %1267 = vmatprep.subr.mxu0 0.0
    %1268 = vmatpush1.msra.mxu0 %v1227
    %1269 = vmatprep.subr.mxu0 0.0
    %1270 = vmatpush2.msra.mxu0 0.0
    %1271 = vmatprep.subr.mxu0 0.0
    %1272 = vmatpush2.msra.mxu0 0.0
    %1273 = vmatprep.subr.mxu0 0.0
    %1274 = vmatpush2.msra.mxu0 0.0
    %1275 = vmatprep.subr.mxu0 0.0
    %1276 = vmatpush2.msra.mxu0 0.0
    %1277 = vmatprep.subr.mxu0 0.0
    %1278 = vmatpush2.msra.mxu0 0.0
    %1279 = vmatprep.subr.mxu0 0.0
    %1280 = vmatpush2.msra.mxu0 0.0
    %1281 = vmatprep.subr.mxu0 0.0
    %1282 = vmatpush2.msra.mxu0 0.0
    %1283 = vmatprep.subr.mxu0 0.0
    %1284 = vmatpush2.msra.mxu0 0.0
    %1285 = vmatprep.subr.mxu0 0.0
    %1286 = vmatpush2.msra.mxu0 0.0
    %1287 = vmatprep.subr.mxu0 0.0
    %1288 = vmatpush2.msra.mxu0 0.0
    %1289 = vmatprep.subr.mxu0 0.0
    %1290 = vmatpush2.msra.mxu0 0.0
    %1291 = vmatprep.subr.mxu0 0.0
    %1292 = vmatpush2.msra.mxu0 0.0
    %1293 = vmatprep.subr.mxu0 0.0
    %1294 = vmatpush2.msra.mxu0 0.0
    %1295 = vmatprep.subr.mxu0 0.0
    %1296 = vmatpush2.msra.mxu0 0.0
    %1297 = vmatprep.subr.mxu0 0.0
    %1298 = vmatpush2.msra.mxu0 0.0
    %1299 = vmatprep.subr.mxu0 0.0
    %1300 = vmatpush2.msra.mxu0 0.0
    %1301 = vmatprep.mubr.f32.mxu0 0.0
    %1302 = vmatmul.mubr.f32.gmra.mxu0 %v1080
    %v1303 = vpop.f32.mrf.mxu0
    %v1304 = vadd.f32 %v1235, %v1303
    %v1305 = vpop.f32.mrf.mxu0
    %1306 = vdwg.mxu0
    %v1307 = vmax.f32 %v1304, 0.0
    %1308 = vst.msk [vmem:[%s71] sm:$0xff] %vm327, %v645
    %1309 = vst.msk [vmem:[%s71 + $0x8] sm:$0xff] %vm327, %v990
    %1310 = vst.msk [vmem:[%s71 + $0x10] sm:$0xff] %vm327, %v991
    %1311 = vst.msk [vmem:[%s71 + $0x18] sm:$0xff] %vm327, %v1307
    %v1312 = vld [vmem:[%s45] sm:$0xff]
    %v1313 = vld [vmem:[%s45 + $0x8] sm:$0xff]
    %v1314 = vld [vmem:[%s45 + $0x10] sm:$0xff]
    %v1315 = vld [vmem:[%s45 + $0x18] sm:$0xff]
    %v1316 = vld [vmem:[%s47] sm:$0x1]
    %v1318 = vlaneseq
    %v1319 = vshrl.u32 %v1318, 7
    %v1320 = vsub.s32 0, %v1319
    %v1321 = vrot.slane %v1316, %v1320
    %v1324 = vsel %vm327, %v645, 0
    %v1327 = vsel %vm327, %v990, 0
    %1329 = vmatprep.subr.mxu0 0.0
    %1330 = vmatpush1.msra.mxu0 0.0
    %1331 = vmatprep.subr.mxu0 0.0
    %1332 = vmatpush1.msra.mxu0 0.0
    %1333 = vmatprep.subr.mxu0 0.0
    %1334 = vmatpush1.msra.mxu0 0.0
    %1335 = vmatprep.subr.mxu0 0.0
    %1336 = vmatpush1.msra.mxu0 0.0
    %1337 = vmatprep.subr.mxu0 0.0
    %1338 = vmatpush1.msra.mxu0 0.0
    %1339 = vmatprep.subr.mxu0 0.0
    %1340 = vmatpush1.msra.mxu0 0.0
    %1341 = vmatprep.subr.mxu0 0.0
    %1342 = vmatpush1.msra.mxu0 0.0
    %1343 = vmatprep.subr.mxu0 0.0
    %1344 = vmatpush1.msra.mxu0 0.0
    %1345 = vmatprep.subr.mxu0 0.0
    %1346 = vmatpush1.msra.mxu0 0.0
    %1347 = vmatprep.subr.mxu0 0.0
    %1348 = vmatpush1.msra.mxu0 0.0
    %1349 = vmatprep.subr.mxu0 0.0
    %1350 = vmatpush1.msra.mxu0 0.0
    %1351 = vmatprep.subr.mxu0 0.0
    %1352 = vmatpush1.msra.mxu0 0.0
    %1353 = vmatprep.subr.mxu0 0.0
    %1354 = vmatpush1.msra.mxu0 %v1315
    %1355 = vmatprep.subr.mxu0 0.0
    %1356 = vmatpush1.msra.mxu0 %v1314
    %1357 = vmatprep.subr.mxu0 0.0
    %1358 = vmatpush1.msra.mxu0 %v1313
    %1359 = vmatprep.subr.mxu0 0.0
    %1360 = vmatpush1.msra.mxu0 %v1312
    %1361 = vmatprep.subr.mxu0 0.0
    %1362 = vmatpush2.msra.mxu0 0.0
    %1363 = vmatprep.subr.mxu0 0.0
    %1364 = vmatpush2.msra.mxu0 0.0
    %1365 = vmatprep.subr.mxu0 0.0
    %1366 = vmatpush2.msra.mxu0 0.0
    %1367 = vmatprep.subr.mxu0 0.0
    %1368 = vmatpush2.msra.mxu0 0.0
    %1369 = vmatprep.subr.mxu0 0.0
    %1370 = vmatpush2.msra.mxu0 0.0
    %1371 = vmatprep.subr.mxu0 0.0
    %1372 = vmatpush2.msra.mxu0 0.0
    %1373 = vmatprep.subr.mxu0 0.0
    %1374 = vmatpush2.msra.mxu0 0.0
    %1375 = vmatprep.subr.mxu0 0.0
    %1376 = vmatpush2.msra.mxu0 0.0
    %1377 = vmatprep.subr.mxu0 0.0
    %1378 = vmatpush2.msra.mxu0 0.0
    %1379 = vmatprep.subr.mxu0 0.0
    %1380 = vmatpush2.msra.mxu0 0.0
    %1381 = vmatprep.subr.mxu0 0.0
    %1382 = vmatpush2.msra.mxu0 0.0
    %1383 = vmatprep.subr.mxu0 0.0
    %1384 = vmatpush2.msra.mxu0 0.0
    %1385 = vmatprep.subr.mxu0 0.0
    %1386 = vmatpush2.msra.mxu0 0.0
    %1387 = vmatprep.subr.mxu0 0.0
    %1388 = vmatpush2.msra.mxu0 0.0
    %1389 = vmatprep.subr.mxu0 0.0
    %1390 = vmatpush2.msra.mxu0 0.0
    %1391 = vmatprep.subr.mxu0 0.0
    %1392 = vmatpush2.msra.mxu0 0.0
    %1393 = vmatprep.mubr.f32.mxu0 0.0
    %1394 = vmatmul.mubr.f32.gmra.mxu0 %v1324
    %v1395 = vpop.f32.mrf.mxu0
    %v1396 = vadd.f32 %v1321, %v1395
    %v1397 = vpop.f32.mrf.mxu0
    %1398 = vmatprep.mubr.f32.mxu0 0.0
    %1399 = vmatmul.mubr.f32.gmra.mxu0 %v1327
    %v1400 = vpop.f32.mrf.mxu0
    %v1401 = vadd.f32 %v1321, %v1400
    %v1402 = vpop.f32.mrf.mxu0
    %1403 = vdwg.mxu0
    %v1404 = vtanh.pop %v1396
    %v1405 = vtanh.pop %v1401
    %v1406 = vld [vmem:[%s49] sm:$0x1]
    %v1408 = vlaneseq
    %v1409 = vshrl.u32 %v1408, 7
    %v1410 = vsub.s32 0, %v1409
    %v1411 = vrot.slane %v1406, %v1410
    %v1413 = vmul.f32 %v1404, %v1411
    %v1414 = vmul.f32 %v1405, %v1411
    %v1415 = vsel %vm167, %v1413, 0.0
    %1416 = vadd.xlane.f32.xlu0 %v1415
    %v1417 = vpop.xlane.xlu0 %1416
    %v1418 = vsel %vm167, %v1414, 0.0
    %1419 = vadd.xlane.f32.xlu0 %v1418
    %v1420 = vpop.xlane.xlu0 %1419
    %v1421 = vmax.f32 %v1417, %v1420
    %v1422 = vsub.f32 %v1417, %v1421
    %v1423 = vmul.f32 %v1422, 1.442695
    %v1424 = vpow.pop %v1423
    %v1425 = vsub.f32 %v1420, %v1421
    %v1426 = vmul.f32 %v1425, 1.442695
    %v1427 = vpow.pop %v1426
    %v1428 = vadd.f32 %v1424, %v1427
    %v1429 = vrcp.pop %v1428
    %v1430 = vmul.f32 1.0, %v1429
    %v1431 = vmul.f32 %v1424, %v1430
    %v1432 = vmul.f32 %v1431, %v645
    %v1433 = vmul.f32 %v1427, %v1430
    %v1434 = vmul.f32 %v1433, %v990
    %v1435 = vadd.f32 %v1432, %v1434
    %v1436 = vld [vmem:[%s51] sm:$0xff]
    %v1437 = vld [vmem:[%s51 + $0x8] sm:$0xff]
    %v1438 = vld [vmem:[%s51 + $0x10] sm:$0xff]
    %v1439 = vld [vmem:[%s51 + $0x18] sm:$0xff]
    %v1440 = vld [vmem:[%s53] sm:$0x1]
    %v1442 = vlaneseq
    %v1443 = vshrl.u32 %v1442, 7
    %v1444 = vsub.s32 0, %v1443
    %v1445 = vrot.slane %v1440, %v1444
    %v1448 = vsel %vm327, %v1307, 0
    %v1451 = vsel %vm327, %v991, 0
    %1453 = vmatprep.subr.mxu0 0.0
    %1454 = vmatpush1.msra.mxu0 0.0
    %1455 = vmatprep.subr.mxu0 0.0
    %1456 = vmatpush1.msra.mxu0 0.0
    %1457 = vmatprep.subr.mxu0 0.0
    %1458 = vmatpush1.msra.mxu0 0.0
    %1459 = vmatprep.subr.mxu0 0.0
    %1460 = vmatpush1.msra.mxu0 0.0
    %1461 = vmatprep.subr.mxu0 0.0
    %1462 = vmatpush1.msra.mxu0 0.0
    %1463 = vmatprep.subr.mxu0 0.0
    %1464 = vmatpush1.msra.mxu0 0.0
    %1465 = vmatprep.subr.mxu0 0.0
    %1466 = vmatpush1.msra.mxu0 0.0
    %1467 = vmatprep.subr.mxu0 0.0
    %1468 = vmatpush1.msra.mxu0 0.0
    %1469 = vmatprep.subr.mxu0 0.0
    %1470 = vmatpush1.msra.mxu0 0.0
    %1471 = vmatprep.subr.mxu0 0.0
    %1472 = vmatpush1.msra.mxu0 0.0
    %1473 = vmatprep.subr.mxu0 0.0
    %1474 = vmatpush1.msra.mxu0 0.0
    %1475 = vmatprep.subr.mxu0 0.0
    %1476 = vmatpush1.msra.mxu0 0.0
    %1477 = vmatprep.subr.mxu0 0.0
    %1478 = vmatpush1.msra.mxu0 %v1439
    %1479 = vmatprep.subr.mxu0 0.0
    %1480 = vmatpush1.msra.mxu0 %v1438
    %1481 = vmatprep.subr.mxu0 0.0
    %1482 = vmatpush1.msra.mxu0 %v1437
    %1483 = vmatprep.subr.mxu0 0.0
    %1484 = vmatpush1.msra.mxu0 %v1436
    %1485 = vmatprep.subr.mxu0 0.0
    %1486 = vmatpush2.msra.mxu0 0.0
    %1487 = vmatprep.subr.mxu0 0.0
    %1488 = vmatpush2.msra.mxu0 0.0
    %1489 = vmatprep.subr.mxu0 0.0
    %1490 = vmatpush2.msra.mxu0 0.0
    %1491 = vmatprep.subr.mxu0 0.0
    %1492 = vmatpush2.msra.mxu0 0.0
    %1493 = vmatprep.subr.mxu0 0.0
    %1494 = vmatpush2.msra.mxu0 0.0
    %1495 = vmatprep.subr.mxu0 0.0
    %1496 = vmatpush2.msra.mxu0 0.0
    %1497 = vmatprep.subr.mxu0 0.0
    %1498 = vmatpush2.msra.mxu0 0.0
    %1499 = vmatprep.subr.mxu0 0.0
    %1500 = vmatpush2.msra.mxu0 0.0
    %1501 = vmatprep.subr.mxu0 0.0
    %1502 = vmatpush2.msra.mxu0 0.0
    %1503 = vmatprep.subr.mxu0 0.0
    %1504 = vmatpush2.msra.mxu0 0.0
    %1505 = vmatprep.subr.mxu0 0.0
    %1506 = vmatpush2.msra.mxu0 0.0
    %1507 = vmatprep.subr.mxu0 0.0
    %1508 = vmatpush2.msra.mxu0 0.0
    %1509 = vmatprep.subr.mxu0 0.0
    %1510 = vmatpush2.msra.mxu0 0.0
    %1511 = vmatprep.subr.mxu0 0.0
    %1512 = vmatpush2.msra.mxu0 0.0
    %1513 = vmatprep.subr.mxu0 0.0
    %1514 = vmatpush2.msra.mxu0 0.0
    %1515 = vmatprep.subr.mxu0 0.0
    %1516 = vmatpush2.msra.mxu0 0.0
    %1517 = vmatprep.mubr.f32.mxu0 0.0
    %1518 = vmatmul.mubr.f32.gmra.mxu0 %v1448
    %v1519 = vpop.f32.mrf.mxu0
    %v1520 = vadd.f32 %v1445, %v1519
    %v1521 = vpop.f32.mrf.mxu0
    %1522 = vmatprep.mubr.f32.mxu0 0.0
    %1523 = vmatmul.mubr.f32.gmra.mxu0 %v1451
    %v1524 = vpop.f32.mrf.mxu0
    %v1525 = vadd.f32 %v1445, %v1524
    %v1526 = vpop.f32.mrf.mxu0
    %1527 = vdwg.mxu0
    %v1528 = vtanh.pop %v1520
    %v1529 = vtanh.pop %v1525
    %v1530 = vld [vmem:[%s55] sm:$0x1]
    %v1532 = vlaneseq
    %v1533 = vshrl.u32 %v1532, 7
    %v1534 = vsub.s32 0, %v1533
    %v1535 = vrot.slane %v1530, %v1534
    %v1537 = vmul.f32 %v1528, %v1535
    %v1538 = vmul.f32 %v1529, %v1535
    %v1539 = vsel %vm167, %v1537, 0.0
    %1540 = vadd.xlane.f32.xlu0 %v1539
    %v1541 = vpop.xlane.xlu0 %1540
    %v1542 = vsel %vm167, %v1538, 0.0
    %1543 = vadd.xlane.f32.xlu0 %v1542
    %v1544 = vpop.xlane.xlu0 %1543
    %v1545 = vmax.f32 %v1541, %v1544
    %v1546 = vsub.f32 %v1541, %v1545
    %v1547 = vmul.f32 %v1546, 1.442695
    %v1548 = vpow.pop %v1547
    %v1549 = vsub.f32 %v1544, %v1545
    %v1550 = vmul.f32 %v1549, 1.442695
    %v1551 = vpow.pop %v1550
    %v1552 = vadd.f32 %v1548, %v1551
    %v1553 = vrcp.pop %v1552
    %v1554 = vmul.f32 1.0, %v1553
    %v1555 = vmul.f32 %v1548, %v1554
    %v1556 = vmul.f32 %v1555, %v1307
    %v1557 = vmul.f32 %v1551, %v1554
    %v1558 = vmul.f32 %v1557, %v991
    %v1559 = vadd.f32 %v1556, %v1558
    %1560 = vst.msk [vmem:[#allocation3] sm:$0xff] %vm327, %v1435
    %1561 = vst.msk [vmem:[#allocation3 + $0x8] sm:$0xff] %vm327, %v1559
    %s1562 = sld [smem:[#allocation5]]
    %s1563 = sld [smem:[#allocation5 + $0x1]]
    %s1564 = scalar_lea.vmem [#allocation3], %s1562
    %v1565 = vld [vmem:[%s1564] sm:$0x1]
    %s1566 = scalar_lea.vmem [#allocation3], %s1563
    %v1567 = vld [vmem:[%s1566] sm:$0x1]
    %s1568 = sadd.s32 %s1562, 8
    %s1569 = scalar_lea.vmem %s71, %s1568
    %v1570 = vld [vmem:[%s1569] sm:$0x1]
    %s1571 = sadd.s32 %s1563, 8
    %s1572 = scalar_lea.vmem %s71, %s1571
    %v1573 = vld [vmem:[%s1572] sm:$0x1]
    %p1574 = scmp.lt.s32.totalorder %s1562, 8
    %s1575 = scalar_select %p1574, 0, 16
    %s1576 = sadd.s32 %s1562, %s1575
    %p1577 = scmp.lt.s32.totalorder %s1563, 8
    %s1578 = scalar_select %p1577, 0, 16
    %s1579 = sadd.s32 %s1563, %s1578
    %s1580 = scalar_lea.vmem %s71, %s1576
    %v1581 = vld [vmem:[%s1580] sm:$0x1]
    %s1582 = scalar_lea.vmem %s71, %s1579
    %v1583 = vld [vmem:[%s1582] sm:$0x1]
    %s1584 = sld [smem:[#allocation5 + $0x80]]
    %s1585 = sld [smem:[#allocation5 + $0x81]]
    %s1586 = scalar_lea.vmem [#allocation3], %s1584
    %v1587 = vld [vmem:[%s1586] sm:$0x1]
    %s1588 = scalar_lea.vmem [#allocation3], %s1585
    %v1589 = vld [vmem:[%s1588] sm:$0x1]
    %s1590 = sadd.s32 %s1584, 8
    %s1591 = scalar_lea.vmem %s71, %s1590
    %v1592 = vld [vmem:[%s1591] sm:$0x1]
    %s1593 = sadd.s32 %s1585, 8
    %s1594 = scalar_lea.vmem %s71, %s1593
    %v1595 = vld [vmem:[%s1594] sm:$0x1]
    %p1596 = scmp.lt.s32.totalorder %s1584, 8
    %s1597 = scalar_select %p1596, 0, 16
    %s1598 = sadd.s32 %s1584, %s1597
    %p1599 = scmp.lt.s32.totalorder %s1585, 8
    %s1600 = scalar_select %p1599, 0, 16
    %s1601 = sadd.s32 %s1585, %s1600
    %s1602 = scalar_lea.vmem %s71, %s1598
    %v1603 = vld [vmem:[%s1602] sm:$0x1]
    %s1604 = scalar_lea.vmem %s71, %s1601
    %v1605 = vld [vmem:[%s1604] sm:$0x1]
    %s1606 = sld [smem:[#allocation5 + $0x100]]
    %s1607 = sld [smem:[#allocation5 + $0x101]]
    %s1608 = scalar_lea.vmem [#allocation3], %s1606
    %v1609 = vld [vmem:[%s1608] sm:$0x1]
    %s1610 = scalar_lea.vmem [#allocation3], %s1607
    %v1611 = vld [vmem:[%s1610] sm:$0x1]
    %s1612 = sadd.s32 %s1606, 8
    %s1613 = scalar_lea.vmem %s71, %s1612
    %v1614 = vld [vmem:[%s1613] sm:$0x1]
    %s1615 = sadd.s32 %s1607, 8
    %s1616 = scalar_lea.vmem %s71, %s1615
    %v1617 = vld [vmem:[%s1616] sm:$0x1]
    %p1618 = scmp.lt.s32.totalorder %s1606, 8
    %s1619 = scalar_select %p1618, 0, 16
    %s1620 = sadd.s32 %s1606, %s1619
    %p1621 = scmp.lt.s32.totalorder %s1607, 8
    %s1622 = scalar_select %p1621, 0, 16
    %s1623 = sadd.s32 %s1607, %s1622
    %s1624 = scalar_lea.vmem %s71, %s1620
    %v1625 = vld [vmem:[%s1624] sm:$0x1]
    %s1626 = scalar_lea.vmem %s71, %s1623
    %v1627 = vld [vmem:[%s1626] sm:$0x1]
    %s1628 = sld [smem:[#allocation5 + $0x180]]
    %s1629 = sld [smem:[#allocation5 + $0x181]]
    %s1630 = scalar_lea.vmem [#allocation3], %s1628
    %v1631 = vld [vmem:[%s1630] sm:$0x1]
    %s1632 = scalar_lea.vmem [#allocation3], %s1629
    %v1633 = vld [vmem:[%s1632] sm:$0x1]
    %s1634 = sadd.s32 %s1628, 8
    %s1635 = scalar_lea.vmem %s71, %s1634
    %v1636 = vld [vmem:[%s1635] sm:$0x1]
    %s1637 = sadd.s32 %s1629, 8
    %s1638 = scalar_lea.vmem %s71, %s1637
    %v1639 = vld [vmem:[%s1638] sm:$0x1]
    %p1640 = scmp.lt.s32.totalorder %s1628, 8
    %s1641 = scalar_select %p1640, 0, 16
    %s1642 = sadd.s32 %s1628, %s1641
    %p1643 = scmp.lt.s32.totalorder %s1629, 8
    %s1644 = scalar_select %p1643, 0, 16
    %s1645 = sadd.s32 %s1629, %s1644
    %s1646 = scalar_lea.vmem %s71, %s1642
    %v1647 = vld [vmem:[%s1646] sm:$0x1]
    %s1648 = scalar_lea.vmem %s71, %s1645
    %v1649 = vld [vmem:[%s1648] sm:$0x1]
    %s1650 = sld [smem:[#allocation5 + $0x200]]
    %s1651 = sld [smem:[#allocation5 + $0x201]]
    %s1652 = scalar_lea.vmem [#allocation3], %s1650
    %v1653 = vld [vmem:[%s1652] sm:$0x1]
    %s1654 = scalar_lea.vmem [#allocation3], %s1651
    %v1655 = vld [vmem:[%s1654] sm:$0x1]
    %s1656 = sadd.s32 %s1650, 8
    %s1657 = scalar_lea.vmem %s71, %s1656
    %v1658 = vld [vmem:[%s1657] sm:$0x1]
    %s1659 = sadd.s32 %s1651, 8
    %s1660 = scalar_lea.vmem %s71, %s1659
    %v1661 = vld [vmem:[%s1660] sm:$0x1]
    %p1662 = scmp.lt.s32.totalorder %s1650, 8
    %s1663 = scalar_select %p1662, 0, 16
    %s1664 = sadd.s32 %s1650, %s1663
    %p1665 = scmp.lt.s32.totalorder %s1651, 8
    %s1666 = scalar_select %p1665, 0, 16
    %s1667 = sadd.s32 %s1651, %s1666
    %s1668 = scalar_lea.vmem %s71, %s1664
    %v1669 = vld [vmem:[%s1668] sm:$0x1]
    %s1670 = scalar_lea.vmem %s71, %s1667
    %v1671 = vld [vmem:[%s1670] sm:$0x1]
    %s1672 = sld [smem:[#allocation5 + $0x280]]
    %s1673 = sld [smem:[#allocation5 + $0x281]]
    %s1674 = scalar_lea.vmem [#allocation3], %s1672
    %v1675 = vld [vmem:[%s1674] sm:$0x1]
    %s1676 = scalar_lea.vmem [#allocation3], %s1673
    %v1677 = vld [vmem:[%s1676] sm:$0x1]
    %s1678 = sadd.s32 %s1672, 8
    %s1679 = scalar_lea.vmem %s71, %s1678
    %v1680 = vld [vmem:[%s1679] sm:$0x1]
    %s1681 = sadd.s32 %s1673, 8
    %s1682 = scalar_lea.vmem %s71, %s1681
    %v1683 = vld [vmem:[%s1682] sm:$0x1]
    %p1684 = scmp.lt.s32.totalorder %s1672, 8
    %s1685 = scalar_select %p1684, 0, 16
    %s1686 = sadd.s32 %s1672, %s1685
    %p1687 = scmp.lt.s32.totalorder %s1673, 8
    %s1688 = scalar_select %p1687, 0, 16
    %s1689 = sadd.s32 %s1673, %s1688
    %s1690 = scalar_lea.vmem %s71, %s1686
    %v1691 = vld [vmem:[%s1690] sm:$0x1]
    %s1692 = scalar_lea.vmem %s71, %s1689
    %v1693 = vld [vmem:[%s1692] sm:$0x1]
    %s1694 = sld [smem:[#allocation5 + $0x300]]
    %s1695 = sld [smem:[#allocation5 + $0x301]]
    %s1696 = scalar_lea.vmem [#allocation3], %s1694
    %v1697 = vld [vmem:[%s1696] sm:$0x1]
    %s1698 = scalar_lea.vmem [#allocation3], %s1695
    %v1699 = vld [vmem:[%s1698] sm:$0x1]
    %s1700 = sadd.s32 %s1694, 8
    %s1701 = scalar_lea.vmem %s71, %s1700
    %v1702 = vld [vmem:[%s1701] sm:$0x1]
    %s1703 = sadd.s32 %s1695, 8
    %s1704 = scalar_lea.vmem %s71, %s1703
    %v1705 = vld [vmem:[%s1704] sm:$0x1]
    %p1706 = scmp.lt.s32.totalorder %s1694, 8
    %s1707 = scalar_select %p1706, 0, 16
    %s1708 = sadd.s32 %s1694, %s1707
    %p1709 = scmp.lt.s32.totalorder %s1695, 8
    %s1710 = scalar_select %p1709, 0, 16
    %s1711 = sadd.s32 %s1695, %s1710
    %s1712 = scalar_lea.vmem %s71, %s1708
    %v1713 = vld [vmem:[%s1712] sm:$0x1]
    %s1714 = scalar_lea.vmem %s71, %s1711
    %v1715 = vld [vmem:[%s1714] sm:$0x1]
    %s1716 = sld [smem:[#allocation5 + $0x380]]
    %s1717 = sld [smem:[#allocation5 + $0x381]]
    %s1718 = scalar_lea.vmem [#allocation3], %s1716
    %v1719 = vld [vmem:[%s1718] sm:$0x1]
    %s1720 = scalar_lea.vmem [#allocation3], %s1717
    %v1721 = vld [vmem:[%s1720] sm:$0x1]
    %s1722 = sadd.s32 %s1716, 8
    %s1723 = scalar_lea.vmem %s71, %s1722
    %v1724 = vld [vmem:[%s1723] sm:$0x1]
    %s1725 = sadd.s32 %s1717, 8
    %s1726 = scalar_lea.vmem %s71, %s1725
    %v1727 = vld [vmem:[%s1726] sm:$0x1]
    %p1728 = scmp.lt.s32.totalorder %s1716, 8
    %s1729 = scalar_select %p1728, 0, 16
    %s1730 = sadd.s32 %s1716, %s1729
    %p1731 = scmp.lt.s32.totalorder %s1717, 8
    %s1732 = scalar_select %p1731, 0, 16
    %s1733 = sadd.s32 %s1717, %s1732
    %s1734 = scalar_lea.vmem %s71, %s1730
    %v1735 = vld [vmem:[%s1734] sm:$0x1]
    %s1736 = scalar_lea.vmem %s71, %s1733
    %v1737 = vld [vmem:[%s1736] sm:$0x1]
    %v1739 = vrot.slane %v1587, 7
    %v1742 = vrot.slane %v1609, 6
    %v1745 = vrot.slane %v1631, 5
    %v1748 = vrot.slane %v1653, 4
    %v1751 = vrot.slane %v1675, 3
    %v1754 = vrot.slane %v1697, 2
    %v1757 = vrot.slane %v1719, 1
    %vm1759 = vcmask 1040384
    %v1760 = vsel %vm1759, %v1565, %v1739
    %vm1761 = vcmask 1041408
    %v1762 = vsel %vm1761, %v1760, %v1742
    %vm1763 = vcmask 1042432
    %v1764 = vsel %vm1763, %v1762, %v1745
    %vm1765 = vcmask 1043456
    %v1766 = vsel %vm1765, %v1764, %v1748
    %vm1767 = vcmask 1044480
    %v1768 = vsel %vm1767, %v1766, %v1751
    %vm1769 = vcmask 1045504
    %v1770 = vsel %vm1769, %v1768, %v1754
    %vm1771 = vcmask 1046528
    %v1772 = vsel %vm1771, %v1770, %v1757
    %v1774 = vrot.slane %v1589, 7
    %v1777 = vrot.slane %v1611, 6
    %v1780 = vrot.slane %v1633, 5
    %v1783 = vrot.slane %v1655, 4
    %v1786 = vrot.slane %v1677, 3
    %v1789 = vrot.slane %v1699, 2
    %v1792 = vrot.slane %v1721, 1
    %v1794 = vsel %vm1759, %v1567, %v1774
    %v1795 = vsel %vm1761, %v1794, %v1777
    %v1796 = vsel %vm1763, %v1795, %v1780
    %v1797 = vsel %vm1765, %v1796, %v1783
    %v1798 = vsel %vm1767, %v1797, %v1786
    %v1799 = vsel %vm1769, %v1798, %v1789
    %v1800 = vsel %vm1771, %v1799, %v1792
    %1802 = vrot.lane.b32.xlu0 %v1800, 32
    %v1803 = vpop.permute.xlu0 %1802
    %v1805 = vsel %vm327, %v1772, %v1803
    %v1807 = vrot.slane %v1592, 7
    %v1810 = vrot.slane %v1614, 6
    %v1813 = vrot.slane %v1636, 5
    %v1816 = vrot.slane %v1658, 4
    %v1819 = vrot.slane %v1680, 3
    %v1822 = vrot.slane %v1702, 2
    %v1825 = vrot.slane %v1724, 1
    %v1827 = vsel %vm1759, %v1570, %v1807
    %v1828 = vsel %vm1761, %v1827, %v1810
    %v1829 = vsel %vm1763, %v1828, %v1813
    %v1830 = vsel %vm1765, %v1829, %v1816
    %v1831 = vsel %vm1767, %v1830, %v1819
    %v1832 = vsel %vm1769, %v1831, %v1822
    %v1833 = vsel %vm1771, %v1832, %v1825
    %v1835 = vrot.slane %v1595, 7
    %v1838 = vrot.slane %v1617, 6
    %v1841 = vrot.slane %v1639, 5
    %v1844 = vrot.slane %v1661, 4
    %v1847 = vrot.slane %v1683, 3
    %v1850 = vrot.slane %v1705, 2
    %v1853 = vrot.slane %v1727, 1
    %v1855 = vsel %vm1759, %v1573, %v1835
    %v1856 = vsel %vm1761, %v1855, %v1838
    %v1857 = vsel %vm1763, %v1856, %v1841
    %v1858 = vsel %vm1765, %v1857, %v1844
    %v1859 = vsel %vm1767, %v1858, %v1847
    %v1860 = vsel %vm1769, %v1859, %v1850
    %v1861 = vsel %vm1771, %v1860, %v1853
    %1863 = vrot.lane.b32.xlu0 %v1861, 32
    %v1864 = vpop.permute.xlu0 %1863
    %v1866 = vsel %vm327, %v1833, %v1864
    %v1868 = vrot.slane %v1603, 7
    %v1871 = vrot.slane %v1625, 6
    %v1874 = vrot.slane %v1647, 5
    %v1877 = vrot.slane %v1669, 4
    %v1880 = vrot.slane %v1691, 3
    %v1883 = vrot.slane %v1713, 2
    %v1886 = vrot.slane %v1735, 1
    %v1888 = vsel %vm1759, %v1581, %v1868
    %v1889 = vsel %vm1761, %v1888, %v1871
    %v1890 = vsel %vm1763, %v1889, %v1874
    %v1891 = vsel %vm1765, %v1890, %v1877
    %v1892 = vsel %vm1767, %v1891, %v1880
    %v1893 = vsel %vm1769, %v1892, %v1883
    %v1894 = vsel %vm1771, %v1893, %v1886
    %v1896 = vrot.slane %v1605, 7
    %v1899 = vrot.slane %v1627, 6
    %v1902 = vrot.slane %v1649, 5
    %v1905 = vrot.slane %v1671, 4
    %v1908 = vrot.slane %v1693, 3
    %v1911 = vrot.slane %v1715, 2
    %v1914 = vrot.slane %v1737, 1
    %v1916 = vsel %vm1759, %v1583, %v1896
    %v1917 = vsel %vm1761, %v1916, %v1899
    %v1918 = vsel %vm1763, %v1917, %v1902
    %v1919 = vsel %vm1765, %v1918, %v1905
    %v1920 = vsel %vm1767, %v1919, %v1908
    %v1921 = vsel %vm1769, %v1920, %v1911
    %v1922 = vsel %vm1771, %v1921, %v1914
    %1924 = vrot.lane.b32.xlu0 %v1922, 32
    %v1925 = vpop.permute.xlu0 %1924
    %v1927 = vsel %vm327, %v1894, %v1925
    %v1928 = vld [vmem:[%s69] sm:$0xff]
    %v1929 = vld [vmem:[%s57] sm:$0xff]
    %v1930 = vld [vmem:[%s57 + $0x8] sm:$0xff]
    %v1931 = vld [vmem:[%s57 + $0x10] sm:$0xff]
    %v1932 = vld [vmem:[%s57 + $0x18] sm:$0xff]
    %v1933 = vld [vmem:[%s57 + $0x20] sm:$0xff]
    %v1934 = vld [vmem:[%s57 + $0x28] sm:$0xff]
    %v1935 = vld [vmem:[%s57 + $0x30] sm:$0xff]
    %v1936 = vld [vmem:[%s57 + $0x38] sm:$0xff]
    %v1937 = vld [vmem:[%s59] sm:$0x1]
    %v1939 = vlaneseq
    %v1940 = vshrl.u32 %v1939, 7
    %v1941 = vsub.s32 0, %v1940
    %v1942 = vrot.slane %v1937, %v1941
    %vm1944 = vcmask 523264
    %v1946 = vsel %vm1944, %v1805, 0
    %1948 = vmatprep.subr.mxu0 0.0
    %1949 = vmatpush1.msra.mxu0 0.0
    %1950 = vmatprep.subr.mxu0 0.0
    %1951 = vmatpush1.msra.mxu0 0.0
    %1952 = vmatprep.subr.mxu0 0.0
    %1953 = vmatpush1.msra.mxu0 0.0
    %1954 = vmatprep.subr.mxu0 0.0
    %1955 = vmatpush1.msra.mxu0 0.0
    %1956 = vmatprep.subr.mxu0 0.0
    %1957 = vmatpush1.msra.mxu0 0.0
    %1958 = vmatprep.subr.mxu0 0.0
    %1959 = vmatpush1.msra.mxu0 0.0
    %1960 = vmatprep.subr.mxu0 0.0
    %1961 = vmatpush1.msra.mxu0 0.0
    %1962 = vmatprep.subr.mxu0 0.0
    %1963 = vmatpush1.msra.mxu0 0.0
    %1964 = vmatprep.subr.mxu0 0.0
    %1965 = vmatpush1.msra.mxu0 %v1936
    %1966 = vmatprep.subr.mxu0 0.0
    %1967 = vmatpush1.msra.mxu0 %v1935
    %1968 = vmatprep.subr.mxu0 0.0
    %1969 = vmatpush1.msra.mxu0 %v1934
    %1970 = vmatprep.subr.mxu0 0.0
    %1971 = vmatpush1.msra.mxu0 %v1933
    %1972 = vmatprep.subr.mxu0 0.0
    %1973 = vmatpush1.msra.mxu0 %v1932
    %1974 = vmatprep.subr.mxu0 0.0
    %1975 = vmatpush1.msra.mxu0 %v1931
    %1976 = vmatprep.subr.mxu0 0.0
    %1977 = vmatpush1.msra.mxu0 %v1930
    %1978 = vmatprep.subr.mxu0 0.0
    %1979 = vmatpush1.msra.mxu0 %v1929
    %1980 = vmatprep.subr.mxu0 0.0
    %1981 = vmatpush2.msra.mxu0 0.0
    %1982 = vmatprep.subr.mxu0 0.0
    %1983 = vmatpush2.msra.mxu0 0.0
    %1984 = vmatprep.subr.mxu0 0.0
    %1985 = vmatpush2.msra.mxu0 0.0
    %1986 = vmatprep.subr.mxu0 0.0
    %1987 = vmatpush2.msra.mxu0 0.0
    %1988 = vmatprep.subr.mxu0 0.0
    %1989 = vmatpush2.msra.mxu0 0.0
    %1990 = vmatprep.subr.mxu0 0.0
    %1991 = vmatpush2.msra.mxu0 0.0
    %1992 = vmatprep.subr.mxu0 0.0
    %1993 = vmatpush2.msra.mxu0 0.0
    %1994 = vmatprep.subr.mxu0 0.0
    %1995 = vmatpush2.msra.mxu0 0.0
    %1996 = vmatprep.subr.mxu0 0.0
    %1997 = vmatpush2.msra.mxu0 0.0
    %1998 = vmatprep.subr.mxu0 0.0
    %1999 = vmatpush2.msra.mxu0 0.0
    %2000 = vmatprep.subr.mxu0 0.0
    %2001 = vmatpush2.msra.mxu0 0.0
    %2002 = vmatprep.subr.mxu0 0.0
    %2003 = vmatpush2.msra.mxu0 0.0
    %2004 = vmatprep.subr.mxu0 0.0
    %2005 = vmatpush2.msra.mxu0 0.0
    %2006 = vmatprep.subr.mxu0 0.0
    %2007 = vmatpush2.msra.mxu0 0.0
    %2008 = vmatprep.subr.mxu0 0.0
    %2009 = vmatpush2.msra.mxu0 0.0
    %2010 = vmatprep.subr.mxu0 0.0
    %2011 = vmatpush2.msra.mxu0 0.0
    %2012 = vmatprep.mubr.f32.mxu0 0.0
    %2013 = vmatmul.mubr.f32.gmra.mxu0 %v1946
    %v2014 = vpop.f32.mrf.mxu0
    %v2015 = vadd.f32 %v1942, %v2014
    %v2016 = vpop.f32.mrf.mxu0
    %2017 = vdwg.mxu0
    %v2018 = vsel %vm327, %v2015, 0.0
    %v2019 = vrot.slane %v2018, 4
    %v2020 = vadd.f32 %v2018, %v2019
    %v2021 = vrot.slane %v2020, 2
    %v2022 = vadd.f32 %v2020, %v2021
    %v2023 = vrot.slane %v2022, 1
    %v2024 = vadd.f32 %v2022, %v2023
    %v2025 = vrcp.pop 8.0
    %v2026 = vmul.f32 %v2024, %v2025
    %v2027 = vsub.f32 %v2015, %v2026
    %v2028 = vmul.f32 %v2027, %v2027
    %v2029 = vsel %vm327, %v2028, 0.0
    %v2030 = vrot.slane %v2029, 4
    %v2031 = vadd.f32 %v2029, %v2030
    %v2032 = vrot.slane %v2031, 2
    %v2033 = vadd.f32 %v2031, %v2032
    %v2034 = vrot.slane %v2033, 1
    %v2035 = vadd.f32 %v2033, %v2034
    %v2036 = vmul.f32 %v2035, %v2025
    %v2037 = vadd.f32 %v2036, 1e-05
    %v2038 = vrsqrt.pop %v2037
    %v2039 = vmul.f32 %v2027, %v2038
    %v2040 = vld [vmem:[%s61] sm:$0x1]
    %v2042 = vlaneseq
    %v2043 = vshrl.u32 %v2042, 7
    %v2044 = vsub.s32 0, %v2043
    %v2045 = vrot.slane %v2040, %v2044
    %v2047 = vmul.f32 %v2039, %v2045
    %v2048 = vld [vmem:[%s63] sm:$0x1]
    %v2050 = vlaneseq
    %v2051 = vshrl.u32 %v2050, 7
    %v2052 = vsub.s32 0, %v2051
    %v2053 = vrot.slane %v2048, %v2052
    %v2055 = vadd.f32 %v2047, %v2053
    %v2056 = vmax.f32 %v2055, 0.0
    %v2057 = vld [vmem:[%s65] sm:$0x1]
    %v2059 = vlaneseq
    %v2060 = vshrl.u32 %v2059, 7
    %v2061 = vsub.s32 0, %v2060
    %v2062 = vrot.slane %v2057, %v2061
    %v2064 = vmul.f32 %v2056, %v2062
    %v2065 = vsel %vm327, %v2064, 0.0
    %2066 = vadd.xlane.f32.xlu0 %v2065
    %v2067 = vpop.xlane.xlu0 %2066
    %v2068 = vld [vmem:[%s67] sm:$0x1]
    %v2070 = vlaneseq
    %v2071 = vshrl.u32 %v2070, 7
    %v2072 = vsub.s32 0, %v2071
    %v2073 = vrot.slane %v2068, %v2072
    %v2075 = vadd.f32 %v2067, %v2073
    %v2076 = vxor.u32 %v2075, 2147483648
    %v2077 = vmul.f32 %v2076, 1.442695
    %v2078 = vpow.pop %v2077
    %v2079 = vadd.f32 %v2078, 1.0
    %v2080 = vrcp.pop %v2079
    %v2081 = vmul.f32 1.0, %v2080
    %v2082 = vmax.f32 %v2081, 1e-07
    %v2083 = vmin.f32 %v2082, 0.9999999
    %v2084 = vlog2.pop %v2083
    %v2085 = vmul.f32 %v2084, 0.6931472
    %v2086 = vmul.f32 %v1928, %v2085
    %v2087 = vsub.f32 1.0, %v1928
    %v2088 = vsub.f32 1.0, %v2083
    %v2089 = vlog2.pop %v2088
    %v2090 = vmul.f32 %v2089, 0.6931472
    %v2091 = vmul.f32 %v2087, %v2090
    %v2092 = vadd.f32 %v2086, %v2091
    %v2093 = vsub.f32 0.0, %v2092
    %vm2094 = vcmask 7168
    %v2095 = vsel %vm2094, %v2093, 0.0
    %2096 = vadd.xlane.f32.xlu0 %v2095
    %v2097 = vpop.xlane.xlu0 %2096
    %v2098 = vrot.slane %v2097, 4
    %v2099 = vadd.f32 %v2097, %v2098
    %v2100 = vrot.slane %v2099, 2
    %v2101 = vadd.f32 %v2099, %v2100
    %v2102 = vrot.slane %v2101, 1
    %v2103 = vadd.f32 %v2101, %v2102
    %s2104 = vtos %v2103
    %v2105 = vstv %s2104
    %v2106 = vmul.f32 %v2105, %v2025
    %s2107 = scalar_lea.vmem %s57, 64
    %v2108 = vld [vmem:[%s2107] sm:$0xff]
    %v2109 = vld [vmem:[%s2107 + $0x8] sm:$0xff]
    %v2110 = vld [vmem:[%s2107 + $0x10] sm:$0xff]
    %v2111 = vld [vmem:[%s2107 + $0x18] sm:$0xff]
    %v2112 = vld [vmem:[%s2107 + $0x20] sm:$0xff]
    %v2113 = vld [vmem:[%s2107 + $0x28] sm:$0xff]
    %v2114 = vld [vmem:[%s2107 + $0x30] sm:$0xff]
    %v2115 = vld [vmem:[%s2107 + $0x38] sm:$0xff]
    %s2116 = scalar_lea.vmem %s59, 1
    %v2117 = vld [vmem:[%s2116] sm:$0x1]
    %v2119 = vlaneseq
    %v2120 = vshrl.u32 %v2119, 7
    %v2121 = vsub.s32 0, %v2120
    %v2122 = vrot.slane %v2117, %v2121
    %v2125 = vsel %vm1944, %v1866, 0
    %2127 = vmatprep.subr.mxu0 0.0
    %2128 = vmatpush1.msra.mxu0 0.0
    %2129 = vmatprep.subr.mxu0 0.0
    %2130 = vmatpush1.msra.mxu0 0.0
    %2131 = vmatprep.subr.mxu0 0.0
    %2132 = vmatpush1.msra.mxu0 0.0
    %2133 = vmatprep.subr.mxu0 0.0
    %2134 = vmatpush1.msra.mxu0 0.0
    %2135 = vmatprep.subr.mxu0 0.0
    %2136 = vmatpush1.msra.mxu0 0.0
    %2137 = vmatprep.subr.mxu0 0.0
    %2138 = vmatpush1.msra.mxu0 0.0
    %2139 = vmatprep.subr.mxu0 0.0
    %2140 = vmatpush1.msra.mxu0 0.0
    %2141 = vmatprep.subr.mxu0 0.0
    %2142 = vmatpush1.msra.mxu0 0.0
    %2143 = vmatprep.subr.mxu0 0.0
    %2144 = vmatpush1.msra.mxu0 %v2115
    %2145 = vmatprep.subr.mxu0 0.0
    %2146 = vmatpush1.msra.mxu0 %v2114
    %2147 = vmatprep.subr.mxu0 0.0
    %2148 = vmatpush1.msra.mxu0 %v2113
    %2149 = vmatprep.subr.mxu0 0.0
    %2150 = vmatpush1.msra.mxu0 %v2112
    %2151 = vmatprep.subr.mxu0 0.0
    %2152 = vmatpush1.msra.mxu0 %v2111
    %2153 = vmatprep.subr.mxu0 0.0
    %2154 = vmatpush1.msra.mxu0 %v2110
    %2155 = vmatprep.subr.mxu0 0.0
    %2156 = vmatpush1.msra.mxu0 %v2109
    %2157 = vmatprep.subr.mxu0 0.0
    %2158 = vmatpush1.msra.mxu0 %v2108
    %2159 = vmatprep.subr.mxu0 0.0
    %2160 = vmatpush2.msra.mxu0 0.0
    %2161 = vmatprep.subr.mxu0 0.0
    %2162 = vmatpush2.msra.mxu0 0.0
    %2163 = vmatprep.subr.mxu0 0.0
    %2164 = vmatpush2.msra.mxu0 0.0
    %2165 = vmatprep.subr.mxu0 0.0
    %2166 = vmatpush2.msra.mxu0 0.0
    %2167 = vmatprep.subr.mxu0 0.0
    %2168 = vmatpush2.msra.mxu0 0.0
    %2169 = vmatprep.subr.mxu0 0.0
    %2170 = vmatpush2.msra.mxu0 0.0
    %2171 = vmatprep.subr.mxu0 0.0
    %2172 = vmatpush2.msra.mxu0 0.0
    %2173 = vmatprep.subr.mxu0 0.0
    %2174 = vmatpush2.msra.mxu0 0.0
    %2175 = vmatprep.subr.mxu0 0.0
    %2176 = vmatpush2.msra.mxu0 0.0
    %2177 = vmatprep.subr.mxu0 0.0
    %2178 = vmatpush2.msra.mxu0 0.0
    %2179 = vmatprep.subr.mxu0 0.0
    %2180 = vmatpush2.msra.mxu0 0.0
    %2181 = vmatprep.subr.mxu0 0.0
    %2182 = vmatpush2.msra.mxu0 0.0
    %2183 = vmatprep.subr.mxu0 0.0
    %2184 = vmatpush2.msra.mxu0 0.0
    %2185 = vmatprep.subr.mxu0 0.0
    %2186 = vmatpush2.msra.mxu0 0.0
    %2187 = vmatprep.subr.mxu0 0.0
    %2188 = vmatpush2.msra.mxu0 0.0
    %2189 = vmatprep.subr.mxu0 0.0
    %2190 = vmatpush2.msra.mxu0 0.0
    %2191 = vmatprep.mubr.f32.mxu0 0.0
    %2192 = vmatmul.mubr.f32.gmra.mxu0 %v2125
    %v2193 = vpop.f32.mrf.mxu0
    %v2194 = vadd.f32 %v2122, %v2193
    %v2195 = vpop.f32.mrf.mxu0
    %2196 = vdwg.mxu0
    %v2197 = vsel %vm327, %v2194, 0.0
    %v2198 = vrot.slane %v2197, 4
    %v2199 = vadd.f32 %v2197, %v2198
    %v2200 = vrot.slane %v2199, 2
    %v2201 = vadd.f32 %v2199, %v2200
    %v2202 = vrot.slane %v2201, 1
    %v2203 = vadd.f32 %v2201, %v2202
    %v2204 = vmul.f32 %v2203, %v2025
    %v2205 = vsub.f32 %v2194, %v2204
    %v2206 = vmul.f32 %v2205, %v2205
    %v2207 = vsel %vm327, %v2206, 0.0
    %v2208 = vrot.slane %v2207, 4
    %v2209 = vadd.f32 %v2207, %v2208
    %v2210 = vrot.slane %v2209, 2
    %v2211 = vadd.f32 %v2209, %v2210
    %v2212 = vrot.slane %v2211, 1
    %v2213 = vadd.f32 %v2211, %v2212
    %v2214 = vmul.f32 %v2213, %v2025
    %v2215 = vadd.f32 %v2214, 1e-05
    %v2216 = vrsqrt.pop %v2215
    %v2217 = vmul.f32 %v2205, %v2216
    %s2218 = scalar_lea.vmem %s61, 1
    %v2219 = vld [vmem:[%s2218] sm:$0x1]
    %v2221 = vlaneseq
    %v2222 = vshrl.u32 %v2221, 7
    %v2223 = vsub.s32 0, %v2222
    %v2224 = vrot.slane %v2219, %v2223
    %v2226 = vmul.f32 %v2217, %v2224
    %s2227 = scalar_lea.vmem %s63, 1
    %v2228 = vld [vmem:[%s2227] sm:$0x1]
    %v2230 = vlaneseq
    %v2231 = vshrl.u32 %v2230, 7
    %v2232 = vsub.s32 0, %v2231
    %v2233 = vrot.slane %v2228, %v2232
    %v2235 = vadd.f32 %v2226, %v2233
    %v2236 = vmax.f32 %v2235, 0.0
    %s2237 = scalar_lea.vmem %s65, 1
    %v2238 = vld [vmem:[%s2237] sm:$0x1]
    %v2240 = vlaneseq
    %v2241 = vshrl.u32 %v2240, 7
    %v2242 = vsub.s32 0, %v2241
    %v2243 = vrot.slane %v2238, %v2242
    %v2245 = vmul.f32 %v2236, %v2243
    %v2246 = vsel %vm327, %v2245, 0.0
    %2247 = vadd.xlane.f32.xlu0 %v2246
    %v2248 = vpop.xlane.xlu0 %2247
    %s2249 = scalar_lea.vmem %s67, 1
    %v2250 = vld [vmem:[%s2249] sm:$0x1]
    %v2252 = vlaneseq
    %v2253 = vshrl.u32 %v2252, 7
    %v2254 = vsub.s32 0, %v2253
    %v2255 = vrot.slane %v2250, %v2254
    %v2257 = vadd.f32 %v2248, %v2255
    %v2258 = vxor.u32 %v2257, 2147483648
    %v2259 = vmul.f32 %v2258, 1.442695
    %v2260 = vpow.pop %v2259
    %v2261 = vadd.f32 %v2260, 1.0
    %v2262 = vrcp.pop %v2261
    %v2263 = vmul.f32 1.0, %v2262
    %v2264 = vmax.f32 %v2263, 1e-07
    %v2265 = vmin.f32 %v2264, 0.9999999
    %v2266 = vlog2.pop %v2265
    %v2267 = vmul.f32 %v2266, 0.6931472
    %v2268 = vmul.f32 %v1928, %v2267
    %v2269 = vsub.f32 1.0, %v2265
    %v2270 = vlog2.pop %v2269
    %v2271 = vmul.f32 %v2270, 0.6931472
    %v2272 = vmul.f32 %v2087, %v2271
    %v2273 = vadd.f32 %v2268, %v2272
    %v2274 = vsub.f32 0.0, %v2273
    %v2275 = vsel %vm2094, %v2274, 0.0
    %2276 = vadd.xlane.f32.xlu0 %v2275
    %v2277 = vpop.xlane.xlu0 %2276
    %v2278 = vrot.slane %v2277, 4
    %v2279 = vadd.f32 %v2277, %v2278
    %v2280 = vrot.slane %v2279, 2
    %v2281 = vadd.f32 %v2279, %v2280
    %v2282 = vrot.slane %v2281, 1
    %v2283 = vadd.f32 %v2281, %v2282
    %s2284 = vtos %v2283
    %v2285 = vstv %s2284
    %v2286 = vmul.f32 %v2285, %v2025
    %s2287 = scalar_lea.vmem %s57, 128
    %v2288 = vld [vmem:[%s2287] sm:$0xff]
    %v2289 = vld [vmem:[%s2287 + $0x8] sm:$0xff]
    %v2290 = vld [vmem:[%s2287 + $0x10] sm:$0xff]
    %v2291 = vld [vmem:[%s2287 + $0x18] sm:$0xff]
    %v2292 = vld [vmem:[%s2287 + $0x20] sm:$0xff]
    %v2293 = vld [vmem:[%s2287 + $0x28] sm:$0xff]
    %v2294 = vld [vmem:[%s2287 + $0x30] sm:$0xff]
    %v2295 = vld [vmem:[%s2287 + $0x38] sm:$0xff]
    %s2296 = scalar_lea.vmem %s59, 2
    %v2297 = vld [vmem:[%s2296] sm:$0x1]
    %v2299 = vlaneseq
    %v2300 = vshrl.u32 %v2299, 7
    %v2301 = vsub.s32 0, %v2300
    %v2302 = vrot.slane %v2297, %v2301
    %v2305 = vsel %vm1944, %v1927, 0
    %2307 = vmatprep.subr.mxu0 0.0
    %2308 = vmatpush1.msra.mxu0 0.0
    %2309 = vmatprep.subr.mxu0 0.0
    %2310 = vmatpush1.msra.mxu0 0.0
    %2311 = vmatprep.subr.mxu0 0.0
    %2312 = vmatpush1.msra.mxu0 0.0
    %2313 = vmatprep.subr.mxu0 0.0
    %2314 = vmatpush1.msra.mxu0 0.0
    %2315 = vmatprep.subr.mxu0 0.0
    %2316 = vmatpush1.msra.mxu0 0.0
    %2317 = vmatprep.subr.mxu0 0.0
    %2318 = vmatpush1.msra.mxu0 0.0
    %2319 = vmatprep.subr.mxu0 0.0
    %2320 = vmatpush1.msra.mxu0 0.0
    %2321 = vmatprep.subr.mxu0 0.0
    %2322 = vmatpush1.msra.mxu0 0.0
    %2323 = vmatprep.subr.mxu0 0.0
    %2324 = vmatpush1.msra.mxu0 %v2295
    %2325 = vmatprep.subr.mxu0 0.0
    %2326 = vmatpush1.msra.mxu0 %v2294
    %2327 = vmatprep.subr.mxu0 0.0
    %2328 = vmatpush1.msra.mxu0 %v2293
    %2329 = vmatprep.subr.mxu0 0.0
    %2330 = vmatpush1.msra.mxu0 %v2292
    %2331 = vmatprep.subr.mxu0 0.0
    %2332 = vmatpush1.msra.mxu0 %v2291
    %2333 = vmatprep.subr.mxu0 0.0
    %2334 = vmatpush1.msra.mxu0 %v2290
    %2335 = vmatprep.subr.mxu0 0.0
    %2336 = vmatpush1.msra.mxu0 %v2289
    %2337 = vmatprep.subr.mxu0 0.0
    %2338 = vmatpush1.msra.mxu0 %v2288
    %2339 = vmatprep.subr.mxu0 0.0
    %2340 = vmatpush2.msra.mxu0 0.0
    %2341 = vmatprep.subr.mxu0 0.0
    %2342 = vmatpush2.msra.mxu0 0.0
    %2343 = vmatprep.subr.mxu0 0.0
    %2344 = vmatpush2.msra.mxu0 0.0
    %2345 = vmatprep.subr.mxu0 0.0
    %2346 = vmatpush2.msra.mxu0 0.0
    %2347 = vmatprep.subr.mxu0 0.0
    %2348 = vmatpush2.msra.mxu0 0.0
    %2349 = vmatprep.subr.mxu0 0.0
    %2350 = vmatpush2.msra.mxu0 0.0
    %2351 = vmatprep.subr.mxu0 0.0
    %2352 = vmatpush2.msra.mxu0 0.0
    %2353 = vmatprep.subr.mxu0 0.0
    %2354 = vmatpush2.msra.mxu0 0.0
    %2355 = vmatprep.subr.mxu0 0.0
    %2356 = vmatpush2.msra.mxu0 0.0
    %2357 = vmatprep.subr.mxu0 0.0
    %2358 = vmatpush2.msra.mxu0 0.0
    %2359 = vmatprep.subr.mxu0 0.0
    %2360 = vmatpush2.msra.mxu0 0.0
    %2361 = vmatprep.subr.mxu0 0.0
    %2362 = vmatpush2.msra.mxu0 0.0
    %2363 = vmatprep.subr.mxu0 0.0
    %2364 = vmatpush2.msra.mxu0 0.0
    %2365 = vmatprep.subr.mxu0 0.0
    %2366 = vmatpush2.msra.mxu0 0.0
    %2367 = vmatprep.subr.mxu0 0.0
    %2368 = vmatpush2.msra.mxu0 0.0
    %2369 = vmatprep.subr.mxu0 0.0
    %2370 = vmatpush2.msra.mxu0 0.0
    %2371 = vmatprep.mubr.f32.mxu0 0.0
    %2372 = vmatmul.mubr.f32.gmra.mxu0 %v2305
    %v2373 = vpop.f32.mrf.mxu0
    %v2374 = vadd.f32 %v2302, %v2373
    %v2375 = vpop.f32.mrf.mxu0
    %2376 = vdwg.mxu0
    %v2377 = vsel %vm327, %v2374, 0.0
    %v2378 = vrot.slane %v2377, 4
    %v2379 = vadd.f32 %v2377, %v2378
    %v2380 = vrot.slane %v2379, 2
    %v2381 = vadd.f32 %v2379, %v2380
    %v2382 = vrot.slane %v2381, 1
    %v2383 = vadd.f32 %v2381, %v2382
    %v2384 = vmul.f32 %v2383, %v2025
    %v2385 = vsub.f32 %v2374, %v2384
    %v2386 = vmul.f32 %v2385, %v2385
    %v2387 = vsel %vm327, %v2386, 0.0
    %v2388 = vrot.slane %v2387, 4
    %v2389 = vadd.f32 %v2387, %v2388
    %v2390 = vrot.slane %v2389, 2
    %v2391 = vadd.f32 %v2389, %v2390
    %v2392 = vrot.slane %v2391, 1
    %v2393 = vadd.f32 %v2391, %v2392
    %v2394 = vmul.f32 %v2393, %v2025
    %v2395 = vadd.f32 %v2394, 1e-05
    %v2396 = vrsqrt.pop %v2395
    %v2397 = vmul.f32 %v2385, %v2396
    %s2398 = scalar_lea.vmem %s61, 2
    %v2399 = vld [vmem:[%s2398] sm:$0x1]
    %v2401 = vlaneseq
    %v2402 = vshrl.u32 %v2401, 7
    %v2403 = vsub.s32 0, %v2402
    %v2404 = vrot.slane %v2399, %v2403
    %v2406 = vmul.f32 %v2397, %v2404
    %s2407 = scalar_lea.vmem %s63, 2
    %v2408 = vld [vmem:[%s2407] sm:$0x1]
    %v2410 = vlaneseq
    %v2411 = vshrl.u32 %v2410, 7
    %v2412 = vsub.s32 0, %v2411
    %v2413 = vrot.slane %v2408, %v2412
    %v2415 = vadd.f32 %v2406, %v2413
    %v2416 = vmax.f32 %v2415, 0.0
    %s2417 = scalar_lea.vmem %s65, 2
    %v2418 = vld [vmem:[%s2417] sm:$0x1]
    %v2420 = vlaneseq
    %v2421 = vshrl.u32 %v2420, 7
    %v2422 = vsub.s32 0, %v2421
    %v2423 = vrot.slane %v2418, %v2422
    %v2425 = vmul.f32 %v2416, %v2423
    %v2426 = vsel %vm327, %v2425, 0.0
    %2427 = vadd.xlane.f32.xlu0 %v2426
    %v2428 = vpop.xlane.xlu0 %2427
    %s2429 = scalar_lea.vmem %s67, 2
    %v2430 = vld [vmem:[%s2429] sm:$0x1]
    %v2432 = vlaneseq
    %v2433 = vshrl.u32 %v2432, 7
    %v2434 = vsub.s32 0, %v2433
    %v2435 = vrot.slane %v2430, %v2434
    %v2437 = vadd.f32 %v2428, %v2435
    %v2438 = vxor.u32 %v2437, 2147483648
    %v2439 = vmul.f32 %v2438, 1.442695
    %v2440 = vpow.pop %v2439
    %v2441 = vadd.f32 %v2440, 1.0
    %v2442 = vrcp.pop %v2441
    %v2443 = vmul.f32 1.0, %v2442
    %v2444 = vmax.f32 %v2443, 1e-07
    %v2445 = vmin.f32 %v2444, 0.9999999
    %v2446 = vlog2.pop %v2445
    %v2447 = vmul.f32 %v2446, 0.6931472
    %v2448 = vmul.f32 %v1928, %v2447
    %v2449 = vsub.f32 1.0, %v2445
    %v2450 = vlog2.pop %v2449
    %v2451 = vmul.f32 %v2450, 0.6931472
    %v2452 = vmul.f32 %v2087, %v2451
    %v2453 = vadd.f32 %v2448, %v2452
    %v2454 = vsub.f32 0.0, %v2453
    %v2455 = vsel %vm2094, %v2454, 0.0
    %2456 = vadd.xlane.f32.xlu0 %v2455
    %v2457 = vpop.xlane.xlu0 %2456
    %v2458 = vrot.slane %v2457, 4
    %v2459 = vadd.f32 %v2457, %v2458
    %v2460 = vrot.slane %v2459, 2
    %v2461 = vadd.f32 %v2459, %v2460
    %v2462 = vrot.slane %v2461, 1
    %v2463 = vadd.f32 %v2461, %v2462
    %s2464 = vtos %v2463
    %v2465 = vstv %s2464
    %v2466 = vmul.f32 %v2465, %v2025
    %2467 = vst.msk [vmem:[%s73] sm:$0xff] %vm2094, %v2081
    %v2468 = vadd.f32 %v2286, %v2466
    %v2469 = vmul.f32 %v2468, 0.5
    %v2470 = vadd.f32 %v2106, %v2469
    %vm2471 = vcmask 0
    %2472 = vst.msk [vmem:[#allocation6] sm:$0x1] %vm2471, %v2470
    // Predicated region
    $region138: #{ccgnn_forward.1} parent=1 // pred_check
      _
    $region139: #{ccgnn_forward.1} parent=1 // pred_check_branch
      %2474 = sbr.rel (0) target = $region141
    $region140: #{ccgnn_forward.1} parent=1 // pred_region
      _
    $region141: #{ccgnn_forward.1} parent=1 // pred_fallthru
      _
    // Predicated region
    $region142: #{ccgnn_forward.1} parent=1 // pred_check
      _
    $region143: #{ccgnn_forward.1} parent=1 // pred_check_branch
      %2476 = sbr.rel (0) target = $region145
    $region144: #{ccgnn_forward.1} parent=1 // pred_region
      _
    $region145: #{ccgnn_forward.1} parent=1 // pred_fallthru
      _
    // Predicated region
    $region146: #{ccgnn_forward.1} parent=1 // pred_check
      _
    $region147: #{ccgnn_forward.1} parent=1 // pred_check_branch
      %2478 = sbr.rel (0) target = $region149
    $region148: #{ccgnn_forward.1} parent=1 // pred_region
      %s2480 = ssub.s32 16, 16
      %2481 = vsyncadd [#allocation7], %s2480
      %s2483 = sshll.u32 [#allocation6], 4
      %s2484 = int_to_ptr.vmem [resolvable:$true] %s2483
      %2486 = dma.vmem_to_hbm [thread:$0]  %s2484, 16, %s75, [#allocation7]
    $region149: #{ccgnn_forward.1} parent=1 // pred_fallthru
      _
    // Predicated region
    $region150: #{ccgnn_forward.1} parent=1 // pred_check
      _
    $region151: #{ccgnn_forward.1} parent=1 // pred_check_branch
      %2488 = sbr.rel (0) target = $region153
    $region152: #{ccgnn_forward.1} parent=1 // pred_region
      _
    $region153: #{ccgnn_forward.1} parent=1 // pred_fallthru
      _
    // Predicated region
    $region154: #{ccgnn_forward.1} parent=1 // pred_check
      _
    $region155: #{ccgnn_forward.1} parent=1 // pred_check_branch
      %2490 = sbr.rel (0) target = $region157
    $region156: #{ccgnn_forward.1} parent=1 // pred_region
      _
    $region157: #{ccgnn_forward.1} parent=1 // pred_fallthru
      _
    // Predicated region
    $region158: #{ccgnn_forward.1} parent=1 // pred_check
      _
    $region159: #{ccgnn_forward.1} parent=1 // pred_check_branch
      %2492 = sbr.rel (0) target = $region161
    $region160: #{ccgnn_forward.1} parent=1 // pred_region
      %2493 = dma.done [#allocation7], 16
    $region161: #{ccgnn_forward.1} parent=1 // pred_fallthru
      _
    %2494 = vsyncpa [#allocation7], 1

</llo_original>
